<compile_context>
chip_gen: v7x
topology: tpu7x:2x2x1
jax: 0.10.0
libtpu: 0.0.40
codegen_flags: <defaults>
</compile_context>

<pallas_src>
import jax
import jax.numpy as jnp
import numpy as np
from jax import lax
from jax.experimental import pallas as pl
from jax.experimental.pallas import tpu as pltpu

INPUT_DIM = 16
C1, C2, C3 = 32, 32, 32
TENSOR_NEURONS = 16          # fixed by fully_connected_first = torch.nn.Linear(16, 16)
NMAX = 16                    # per-graph node-count padding
PB = 8                       # graph pairs per grid step (set 4 on v5e for a 128-row block)
G = 2 * PB                   # graphs per block
M = G * NMAX                 # stacked node rows per block


def _dot(a, b):
    return jnp.dot(a, b, preferred_element_type=jnp.float32)


def _dot_ta(a, b):           # a^T @ b   (contract dim 0 with dim 0)
    return lax.dot_general(a, b, (((0,), (0,)), ((), ())),
                           preferred_element_type=jnp.float32)


# ---------------------------------------------------------------------------
# Fused kernel: one grid step == one block of PB graph pairs (2*PB graphs).
# ---------------------------------------------------------------------------
def simgnn_kernel(a_ref, x_ref, seg_ref, invc_ref,
                  w_gcn_ref, w_ntn_ref, ntn_mask_ref, w_tail_ref, bias_ref,
                  out_ref):
    # unpack resident packed weights / biases (static, sublane-aligned slices)
    w1 = w_gcn_ref[0:INPUT_DIM, :]
    w2 = w_gcn_ref[INPUT_DIM:INPUT_DIM + C1, :]
    w3 = w_gcn_ref[INPUT_DIM + C1:INPUT_DIM + C1 + C2, :]
    wa = w_gcn_ref[INPUT_DIM + C1 + C2:INPUT_DIM + C1 + C2 + C3, :]
    biases = bias_ref[...]
    b1 = biases[0:1, :C1]
    b2 = biases[1:2, :C2]
    b3 = biases[2:3, :C3]
    b_ntn = biases[3:4, :TENSOR_NEURONS]
    b_fc = biases[4:5, :TENSOR_NEURONS]
    b_sc = biases[5:6, 0:1]
    wb1 = w_tail_ref[0:C3, :]
    wb2 = w_tail_ref[C3:2 * C3, :]
    w_fc = w_tail_ref[2 * C3:2 * C3 + TENSOR_NEURONS, :]
    w_sc = w_tail_ref[2 * C3 + TENSOR_NEURONS:2 * C3 + 2 * TENSOR_NEURONS, :]  # col 0 real

    a = a_ref[...]          # (M, M)  block-diagonal normalized adjacency (2*PB graphs)
    x = x_ref[...]          # (M, INPUT_DIM) stacked node features
    seg = seg_ref[...]      # (M, G)  0/1 valid-node segment matrix
    inv_c = invc_ref[...]   # (G, 1)  1 / max(node_count, 1) per graph

    # --- 3x GCN over all 2*PB graphs at once (block-diagonal A keeps graphs separate) ---
    h = jnp.maximum(_dot(_dot(a, x), w1) + b1, 0.0)       # GCN1 + relu
    h = jnp.maximum(_dot(_dot(a, h), w2) + b2, 0.0)       # GCN2 + relu
    h = _dot(_dot(a, h), w3) + b3                          # GCN3      (M, C3)

    # --- SimGNN attention pooling, batched per graph via segment-matrix MXU contractions ---
    mean = _dot_ta(seg, h) * inv_c                         # (G, C3) per-graph mean of valid rows
    ctx = jnp.tanh(_dot(mean, wa))                         # (G, C3)
    ctx_rows = _dot(seg, ctx)                              # (M, C3) each row gets its graph's ctx
    ones_c = jnp.ones((C3, 1), jnp.float32)
    att = jax.nn.sigmoid(_dot(h * ctx_rows, ones_c))       # (M, 1)  per-node attention
    e = _dot_ta(seg, att * h)                              # (G, C3) padded rows excluded by seg

    e1 = e[0:PB, :]          # first graph of each pair
    e2 = e[PB:2 * PB, :]     # second graph of each pair

    # --- NTN bilinear: ntn[p,k] = e1[p] @ W[:,:,k] @ e2[p]^T via two matmuls + constant mask ---
    v = _dot(e1, w_ntn_ref[...])                           # (PB, T*C3)
    e2_rep = jnp.concatenate([e2] * TENSOR_NEURONS, axis=1)  # (PB, T*C3) lane-tiled e2
    ntn = _dot(v * e2_rep, ntn_mask_ref[...])              # (PB, T)

    blk = _dot(e1, wb1) + _dot(e2, wb2)                    # (PB, T)
    scores = jnp.maximum(ntn + blk + b_ntn, 0.0)
    hidden = jnp.tanh(_dot(scores, w_fc) + b_fc)           # (PB, T)
    logit = _dot(hidden, w_sc)[:, 0:1] + b_sc              # (PB, 1)
    out_ref[...] = jnp.broadcast_to(jax.nn.sigmoid(logit), out_ref.shape)


# ---------------------------------------------------------------------------
# One-time parameter packing (hoisted out of the jitted forward).
# ---------------------------------------------------------------------------
def pack_params(p):
    w_gcn = jnp.concatenate([p["w1"], p["w2"], p["w3"], p["w_att"]], axis=0)      # (112, 32)
    # w_ntn stored (T, C3, C3) with w_ntn[k, i, j] = W[i, j, k]; flatten so that
    # w_ntn_flat[i, k*C3 + j] = W[i, j, k]
    w_ntn_flat = jnp.transpose(p["w_ntn"], (1, 0, 2)).reshape(C3, TENSOR_NEURONS * C3)
    w_sc_p = jnp.zeros((TENSOR_NEURONS, TENSOR_NEURONS), jnp.float32).at[:, 0:1].set(p["w_sc"])
    w_tail = jnp.concatenate([p["wb1"], p["wb2"], p["w_fc"], w_sc_p], axis=0)      # (96, 16)

    biases = jnp.zeros((8, C3), jnp.float32)
    biases = biases.at[0, :C1].set(p["b1"][0])
    biases = biases.at[1, :C2].set(p["b2"][0])
    biases = biases.at[2, :C3].set(p["b3"][0])
    biases = biases.at[3, :TENSOR_NEURONS].set(p["b_ntn"][0])
    biases = biases.at[4, :TENSOR_NEURONS].set(p["b_fc"][0])
    biases = biases.at[5, 0].set(p["b_sc"][0, 0])

    # constant NTN block-diagonal selector: mask[k*C3 + j, k] = 1
    rows = np.arange(TENSOR_NEURONS * C3)
    ntn_mask = jnp.asarray(
        (rows[:, None] // C3 == np.arange(TENSOR_NEURONS)[None, :]).astype(np.float32))

    return {"w_gcn": w_gcn, "w_ntn": w_ntn_flat, "ntn_mask": ntn_mask,
            "w_tail": w_tail, "biases": biases}


# ---------------------------------------------------------------------------
# Wrapper: builds the per-block block-diagonal inputs and runs one pallas_call.
# ---------------------------------------------------------------------------
@jax.jit
def simgnn_forward_batch(a1, x1, a2, x2, counts, packed):
    B = a1.shape[0]
    pad = (-B) % PB
    if pad:                                               # pad with empty graphs (count 0)
        a1 = jnp.concatenate([a1, jnp.zeros((pad, NMAX, NMAX), a1.dtype)], axis=0)
        a2 = jnp.concatenate([a2, jnp.zeros((pad, NMAX, NMAX), a2.dtype)], axis=0)
        x1 = jnp.concatenate([x1, jnp.zeros((pad, NMAX, INPUT_DIM), x1.dtype)], axis=0)
        x2 = jnp.concatenate([x2, jnp.zeros((pad, NMAX, INPUT_DIM), x2.dtype)], axis=0)
        counts = jnp.concatenate([counts, jnp.zeros((pad, 2), counts.dtype)], axis=0)
    nb = (B + pad) // PB

    # graphs 0..PB-1 of each block = lhs of its PB pairs, PB..2PB-1 = rhs
    a_g = jnp.concatenate([a1.reshape(nb, PB, NMAX, NMAX),
                           a2.reshape(nb, PB, NMAX, NMAX)], axis=1)      # (nb, G, n, n)
    x_big = jnp.concatenate([x1.reshape(nb, PB, NMAX, INPUT_DIM),
                             x2.reshape(nb, PB, NMAX, INPUT_DIM)],
                            axis=1).reshape(nb, M, INPUT_DIM)
    # block-diagonal normalized adjacency per block
    eye_g = jnp.eye(G, dtype=a1.dtype)
    a_big = jnp.einsum("bgij,gh->bgihj", a_g, eye_g).reshape(nb, M, M)

    # per-graph valid-node segment matrix + reciprocal counts (guard empty graphs)
    cnt = jnp.concatenate([counts[:, 0].reshape(nb, PB),
                           counts[:, 1].reshape(nb, PB)], axis=1)        # (nb, G) int32
    ridx = jnp.arange(M, dtype=jnp.int32)
    same = (ridx[:, None] // NMAX) == jnp.arange(G, dtype=jnp.int32)[None, :]   # (M, G)
    valid = (ridx % NMAX)[None, :, None] < cnt[:, None, :]               # (nb, M, G)
    seg = (same[None] & valid).astype(jnp.float32)                       # (nb, M, G)
    inv_cnt = (1.0 / jnp.maximum(cnt.astype(jnp.float32), 1.0))[..., None]  # (nb, G, 1)

    grid_spec = pltpu.PrefetchScalarGridSpec(
        num_scalar_prefetch=0,
        grid=(nb,),
        in_specs=[
            pl.BlockSpec((None, M, M), lambda i: (i, 0, 0)),             # block-diag A
            pl.BlockSpec((None, M, INPUT_DIM), lambda i: (i, 0, 0)),     # stacked X
            pl.BlockSpec((None, M, G), lambda i: (i, 0, 0)),             # segment matrix
            pl.BlockSpec((None, G, 1), lambda i: (i, 0, 0)),             # 1/count
            pl.BlockSpec(packed["w_gcn"].shape, lambda i: (0, 0)),       # resident weights
            pl.BlockSpec(packed["w_ntn"].shape, lambda i: (0, 0)),
            pl.BlockSpec(packed["ntn_mask"].shape, lambda i: (0, 0)),
            pl.BlockSpec(packed["w_tail"].shape, lambda i: (0, 0)),
            pl.BlockSpec(packed["biases"].shape, lambda i: (0, 0)),
        ],
        out_specs=pl.BlockSpec((None, PB, 128), lambda i: (i, 0, 0)),
    )
    out = pl.pallas_call(
        simgnn_kernel,
        out_shape=jax.ShapeDtypeStruct((nb, PB, 128), jnp.float32),
        grid_spec=grid_spec,
        compiler_params=pltpu.CompilerParams(
            dimension_semantics=("parallel",)),
    )(a_big, x_big, seg, inv_cnt,
      packed["w_gcn"], packed["w_ntn"], packed["ntn_mask"],
      packed["w_tail"], packed["biases"])
    return out[:, :, 0].reshape(-1)[:B]                   # (B,) similarity scores


# ---------------------------------------------------------------------------
# Glue: parameters, adjacency normalization, padding, pure-JAX reference.
# ---------------------------------------------------------------------------
def init_params(key):
    ks = jax.random.split(key, 16)

    def w(k, shape, scale):
        return (scale * jax.random.normal(k, shape, jnp.float32)).astype(jnp.float32)

    return {
        "w1": w(ks[0], (INPUT_DIM, C1), 1.0 / np.sqrt(INPUT_DIM)),
        "b1": 0.1 * jax.random.normal(ks[1], (1, C1), jnp.float32),
        "w2": w(ks[2], (C1, C2), 1.0 / np.sqrt(C1)),
        "b2": 0.1 * jax.random.normal(ks[3], (1, C2), jnp.float32),
        "w3": w(ks[4], (C2, C3), 1.0 / np.sqrt(C2)),
        "b3": 0.1 * jax.random.normal(ks[5], (1, C3), jnp.float32),
        "w_att": w(ks[6], (C3, C3), 1.0 / np.sqrt(C3)),
        # NTN weight, torch shape (C3, C3, T); stored here as (T, C3, C3): w_ntn[k] = W[:, :, k]
        "w_ntn": w(ks[7], (TENSOR_NEURONS, C3, C3), 1.0 / C3),
        # W_block torch (T, 2*C3) applied to cat(e1,e2); split + transposed (C3, T) halves
        "wb1": w(ks[8], (C3, TENSOR_NEURONS), 1.0 / (2 * C3)),
        "wb2": w(ks[9], (C3, TENSOR_NEURONS), 1.0 / (2 * C3)),
        "b_ntn": 0.1 * jax.random.normal(ks[10], (1, TENSOR_NEURONS), jnp.float32),
        "w_fc": w(ks[11], (TENSOR_NEURONS, TENSOR_NEURONS), 1.0 / TENSOR_NEURONS),
        "b_fc": 0.1 * jax.random.normal(ks[12], (1, TENSOR_NEURONS), jnp.float32),
        "w_sc": w(ks[13], (TENSOR_NEURONS, 1), 1.0 / np.sqrt(TENSOR_NEURONS)),
        "b_sc": 0.1 * jax.random.normal(ks[14], (1, 1), jnp.float32),
    }


# TODO(synk): edge_index -> dense normalized adjacency (scatter) is done in JAX glue, not in-kernel.
def normalized_adjacency(key, n, p_edge=0.4):
    a = jax.random.bernoulli(key, p_edge, (n, n)).astype(jnp.float32)
    a = jnp.triu(a, 1)
    a = a + a.T                                        # undirected graph
    a_hat = a + jnp.eye(n, dtype=jnp.float32)          # GCNConv adds self-loops
    d_inv_sqrt = 1.0 / jnp.sqrt(jnp.sum(a_hat, axis=1))
    return a_hat * d_inv_sqrt[:, None] * d_inv_sqrt[None, :]


def pad_adj(a, nmax):
    n = a.shape[0]
    return jnp.zeros((nmax, nmax), jnp.float32).at[:n, :n].set(a)


def pad_feat(x, nmax):
    n = x.shape[0]
    return jnp.zeros((nmax, x.shape[1]), jnp.float32).at[:n, :].set(x)


def simgnn_reference(a1, x1, a2, x2, p):
    def gcn_pool(a, x):
        h = jnp.maximum(a @ x @ p["w1"] + p["b1"], 0.0)
        h = jnp.maximum(a @ h @ p["w2"] + p["b2"], 0.0)
        h = a @ h @ p["w3"] + p["b3"]
        ctx = jnp.tanh(jnp.mean(h @ p["w_att"], axis=0, keepdims=True))
        att = jax.nn.sigmoid(jnp.sum(h * ctx, axis=1, keepdims=True))
        return jnp.sum(h * att, axis=0, keepdims=True)

    e1 = gcn_pool(a1, x1)
    e2 = gcn_pool(a2, x2)
    ntn = jnp.einsum("ai,kij,aj->ak", e1, p["w_ntn"], e2)
    block = e1 @ p["wb1"] + e2 @ p["wb2"]
    scores = jnp.maximum(ntn + block + p["b_ntn"], 0.0)
    hidden = jnp.tanh(scores @ p["w_fc"] + p["b_fc"])
    return jax.nn.sigmoid(hidden @ p["w_sc"] + p["b_sc"])[0, 0]


if __name__ == "__main__":
    root = jax.random.PRNGKey(0)
    params = init_params(jax.random.fold_in(root, 1))
    packed = pack_params(params)           # packed once, outside the jitted forward

    rng = np.random.RandomState(0)
    B = 16                                  # 2 blocks of PB=8 pairs -> grid of 2 steps
    pair_counts = [(int(rng.randint(5, NMAX + 1)), int(rng.randint(5, NMAX + 1)))
                   for _ in range(B)]

    A1, X1, A2, X2, refs = [], [], [], [], []
    gkey = jax.random.fold_in(root, 2)
    for i, (n1, n2) in enumerate(pair_counts):
        k1, k2, k3, k4 = jax.random.split(jax.random.fold_in(gkey, i), 4)
        a1 = normalized_adjacency(k1, n1)
        a2 = normalized_adjacency(k2, n2)
        x1 = jax.random.normal(k3, (n1, INPUT_DIM), jnp.float32)
        x2 = jax.random.normal(k4, (n2, INPUT_DIM), jnp.float32)
        refs.append(simgnn_reference(a1, x1, a2, x2, params))
        A1.append(pad_adj(a1, NMAX))
        X1.append(pad_feat(x1, NMAX))
        A2.append(pad_adj(a2, NMAX))
        X2.append(pad_feat(x2, NMAX))

    A1 = jnp.stack(A1)
    X1 = jnp.stack(X1)
    A2 = jnp.stack(A2)
    X2 = jnp.stack(X2)
    counts = jnp.asarray(pair_counts, dtype=jnp.int32)

    out = simgnn_forward_batch(A1, X1, A2, X2, counts, packed)
    out = jax.block_until_ready(out)

    ref = jnp.stack(refs)
    np.testing.assert_allclose(np.asarray(out), np.asarray(ref), rtol=5e-2, atol=5e-3)
    print("KERNEL_OK")
</pallas_src>

<mosaic_0001>
module attributes {stable_mosaic.version = 11 : i64} {
  func.func @simgnn_kernel(%arg0: i32, %arg1: memref<1x256x256xf32, #tpu.memory_space<vmem>>, %arg2: memref<1x256x16xf32, #tpu.memory_space<vmem>>, %arg3: memref<1x256x16xf32, #tpu.memory_space<vmem>>, %arg4: memref<1x16x1xf32, #tpu.memory_space<vmem>>, %arg5: memref<112x32xf32, #tpu.memory_space<vmem>>, %arg6: memref<32x512xf32, #tpu.memory_space<vmem>>, %arg7: memref<512x16xf32, #tpu.memory_space<vmem>>, %arg8: memref<96x16xf32, #tpu.memory_space<vmem>>, %arg9: memref<8x32xf32, #tpu.memory_space<vmem>>, %arg10: memref<1x8x128xf32, #tpu.memory_space<vmem>>) attributes {dimension_semantics = [#tpu.dimension_semantics<parallel>], iteration_bounds = array<i64: 2>, scalar_prefetch = 0 : i64, scratch_operands = 0 : i64, tpu.core_type = #tpu.core_type<tc>, window_params = [{transform_indices = @transform_0, window_bounds = array<i64: 1, 256, 256>}, {transform_indices = @transform_1, window_bounds = array<i64: 1, 256, 16>}, {transform_indices = @transform_2, window_bounds = array<i64: 1, 256, 16>}, {transform_indices = @transform_3, window_bounds = array<i64: 1, 16, 1>}, {pipeline_mode = #tpu.pipeline_mode<synchronous>, transform_indices = @transform_4, window_bounds = array<i64: 112, 32>}, {pipeline_mode = #tpu.pipeline_mode<synchronous>, transform_indices = @transform_5, window_bounds = array<i64: 32, 512>}, {pipeline_mode = #tpu.pipeline_mode<synchronous>, transform_indices = @transform_6, window_bounds = array<i64: 512, 16>}, {pipeline_mode = #tpu.pipeline_mode<synchronous>, transform_indices = @transform_7, window_bounds = array<i64: 96, 16>}, {pipeline_mode = #tpu.pipeline_mode<synchronous>, transform_indices = @transform_8, window_bounds = array<i64: 8, 32>}, {transform_indices = @transform_9, window_bounds = array<i64: 1, 8, 128>}]} {
    %c0 = arith.constant 0 : index
    %c0_0 = arith.constant 0 : index
    %0 = vector.load %arg5[%c0, %c0_0] : memref<112x32xf32, #tpu.memory_space<vmem>>, vector<16x32xf32>
    %c16 = arith.constant 16 : index
    %c0_1 = arith.constant 0 : index
    %1 = vector.load %arg5[%c16, %c0_1] : memref<112x32xf32, #tpu.memory_space<vmem>>, vector<32x32xf32>
    %c48 = arith.constant 48 : index
    %c0_2 = arith.constant 0 : index
    %2 = vector.load %arg5[%c48, %c0_2] : memref<112x32xf32, #tpu.memory_space<vmem>>, vector<32x32xf32>
    %c80 = arith.constant 80 : index
    %c0_3 = arith.constant 0 : index
    %3 = vector.load %arg5[%c80, %c0_3] : memref<112x32xf32, #tpu.memory_space<vmem>>, vector<32x32xf32>
    %c0_4 = arith.constant 0 : index
    %c0_5 = arith.constant 0 : index
    %4 = vector.load %arg9[%c0_4, %c0_5] : memref<8x32xf32, #tpu.memory_space<vmem>>, vector<8x32xf32>
    %5 = vector.extract_strided_slice %4 {offsets = [0, 0], sizes = [1, 32], strides = [1, 1]} : vector<8x32xf32> to vector<1x32xf32>
    %6 = vector.extract_strided_slice %4 {offsets = [1, 0], sizes = [1, 32], strides = [1, 1]} : vector<8x32xf32> to vector<1x32xf32>
    %7 = vector.extract_strided_slice %4 {offsets = [2, 0], sizes = [1, 32], strides = [1, 1]} : vector<8x32xf32> to vector<1x32xf32>
    %8 = vector.extract_strided_slice %4 {offsets = [3, 0], sizes = [1, 16], strides = [1, 1]} : vector<8x32xf32> to vector<1x16xf32>
    %9 = vector.extract_strided_slice %4 {offsets = [4, 0], sizes = [1, 16], strides = [1, 1]} : vector<8x32xf32> to vector<1x16xf32>
    %10 = vector.extract_strided_slice %4 {offsets = [5, 0], sizes = [1, 1], strides = [1, 1]} : vector<8x32xf32> to vector<1x1xf32>
    %c0_6 = arith.constant 0 : index
    %c0_7 = arith.constant 0 : index
    %11 = vector.load %arg8[%c0_6, %c0_7] : memref<96x16xf32, #tpu.memory_space<vmem>>, vector<32x16xf32>
    %c32 = arith.constant 32 : index
    %c0_8 = arith.constant 0 : index
    %12 = vector.load %arg8[%c32, %c0_8] : memref<96x16xf32, #tpu.memory_space<vmem>>, vector<32x16xf32>
    %c64 = arith.constant 64 : index
    %c0_9 = arith.constant 0 : index
    %13 = vector.load %arg8[%c64, %c0_9] : memref<96x16xf32, #tpu.memory_space<vmem>>, vector<16x16xf32>
    %c80_10 = arith.constant 80 : index
    %c0_11 = arith.constant 0 : index
    %14 = vector.load %arg8[%c80_10, %c0_11] : memref<96x16xf32, #tpu.memory_space<vmem>>, vector<16x16xf32>
    %c0_12 = arith.constant 0 : index
    %c0_13 = arith.constant 0 : index
    %c0_14 = arith.constant 0 : index
    %15 = vector.load %arg1[%c0_12, %c0_13, %c0_14] : memref<1x256x256xf32, #tpu.memory_space<vmem>>, vector<1x256x256xf32>
    %16 = vector.shape_cast %15 : vector<1x256x256xf32> to vector<256x256xf32>
    %c0_15 = arith.constant 0 : index
    %c0_16 = arith.constant 0 : index
    %c0_17 = arith.constant 0 : index
    %17 = vector.load %arg2[%c0_15, %c0_16, %c0_17] : memref<1x256x16xf32, #tpu.memory_space<vmem>>, vector<1x256x16xf32>
    %18 = vector.shape_cast %17 : vector<1x256x16xf32> to vector<256x16xf32>
    %c0_18 = arith.constant 0 : index
    %c0_19 = arith.constant 0 : index
    %c0_20 = arith.constant 0 : index
    %19 = vector.load %arg3[%c0_18, %c0_19, %c0_20] : memref<1x256x16xf32, #tpu.memory_space<vmem>>, vector<1x256x16xf32>
    %20 = vector.shape_cast %19 : vector<1x256x16xf32> to vector<256x16xf32>
    %c0_21 = arith.constant 0 : index
    %c0_22 = arith.constant 0 : index
    %c0_23 = arith.constant 0 : index
    %21 = vector.load %arg4[%c0_21, %c0_22, %c0_23] : memref<1x16x1xf32, #tpu.memory_space<vmem>>, vector<1x16x1xf32>
    %22 = vector.shape_cast %21 : vector<1x16x1xf32> to vector<16x1xf32>
    %cst = arith.constant dense<0.000000e+00> : vector<256x16xf32>
    %23 = tpu.matmul %16, %18, %cst {dimension_numbers = #tpu.dot_dimension_numbers<[1], [0], [0], [1], [0, 0, 1, 1], [], []>} : vector<256x256xf32>, vector<256x16xf32>, vector<256x16xf32> -> vector<256x16xf32>
    %cst_24 = arith.constant dense<0.000000e+00> : vector<256x32xf32>
    %24 = tpu.matmul %23, %0, %cst_24 {dimension_numbers = #tpu.dot_dimension_numbers<[1], [0], [0], [1], [0, 0, 1, 1], [], []>} : vector<256x16xf32>, vector<16x32xf32>, vector<256x32xf32> -> vector<256x32xf32>
    %25 = vector.broadcast %5 : vector<1x32xf32> to vector<256x32xf32>
    %26 = arith.addf %24, %25 : vector<256x32xf32>
    %cst_25 = arith.constant 0.000000e+00 : f32
    %27 = vector.broadcast %cst_25 : f32 to vector<256x32xf32>
    %28 = arith.maximumf %26, %27 : vector<256x32xf32>
    %cst_26 = arith.constant dense<0.000000e+00> : vector<256x32xf32>
    %29 = tpu.matmul %16, %28, %cst_26 {dimension_numbers = #tpu.dot_dimension_numbers<[1], [0], [0], [1], [0, 0, 1, 1], [], []>} : vector<256x256xf32>, vector<256x32xf32>, vector<256x32xf32> -> vector<256x32xf32>
    %cst_27 = arith.constant dense<0.000000e+00> : vector<256x32xf32>
    %30 = tpu.matmul %29, %1, %cst_27 {dimension_numbers = #tpu.dot_dimension_numbers<[1], [0], [0], [1], [0, 0, 1, 1], [], []>} : vector<256x32xf32>, vector<32x32xf32>, vector<256x32xf32> -> vector<256x32xf32>
    %31 = vector.broadcast %6 : vector<1x32xf32> to vector<256x32xf32>
    %32 = arith.addf %30, %31 : vector<256x32xf32>
    %cst_28 = arith.constant 0.000000e+00 : f32
    %33 = vector.broadcast %cst_28 : f32 to vector<256x32xf32>
    %34 = arith.maximumf %32, %33 : vector<256x32xf32>
    %cst_29 = arith.constant dense<0.000000e+00> : vector<256x32xf32>
    %35 = tpu.matmul %16, %34, %cst_29 {dimension_numbers = #tpu.dot_dimension_numbers<[1], [0], [0], [1], [0, 0, 1, 1], [], []>} : vector<256x256xf32>, vector<256x32xf32>, vector<256x32xf32> -> vector<256x32xf32>
    %cst_30 = arith.constant dense<0.000000e+00> : vector<256x32xf32>
    %36 = tpu.matmul %35, %2, %cst_30 {dimension_numbers = #tpu.dot_dimension_numbers<[1], [0], [0], [1], [0, 0, 1, 1], [], []>} : vector<256x32xf32>, vector<32x32xf32>, vector<256x32xf32> -> vector<256x32xf32>
    %37 = vector.broadcast %7 : vector<1x32xf32> to vector<256x32xf32>
    %38 = arith.addf %36, %37 : vector<256x32xf32>
    %cst_31 = arith.constant dense<0.000000e+00> : vector<16x32xf32>
    %39 = tpu.matmul %20, %38, %cst_31 {dimension_numbers = #tpu.dot_dimension_numbers<[0], [0], [1], [1], [0, 1, 1, 1], [], []>} : vector<256x16xf32>, vector<256x32xf32>, vector<16x32xf32> -> vector<16x32xf32>
    %40 = vector.broadcast %22 : vector<16x1xf32> to vector<16x32xf32>
    %41 = arith.mulf %39, %40 : vector<16x32xf32>
    %cst_32 = arith.constant dense<0.000000e+00> : vector<16x32xf32>
    %42 = tpu.matmul %41, %3, %cst_32 {dimension_numbers = #tpu.dot_dimension_numbers<[1], [0], [0], [1], [0, 0, 1, 1], [], []>} : vector<16x32xf32>, vector<32x32xf32>, vector<16x32xf32> -> vector<16x32xf32>
    %43 = math.tanh %42 : vector<16x32xf32>
    %cst_33 = arith.constant dense<0.000000e+00> : vector<256x32xf32>
    %44 = tpu.matmul %20, %43, %cst_33 {dimension_numbers = #tpu.dot_dimension_numbers<[1], [0], [0], [1], [0, 0, 1, 1], [], []>} : vector<256x16xf32>, vector<16x32xf32>, vector<256x32xf32> -> vector<256x32xf32>
    %cst_34 = arith.constant 1.000000e+00 : f32
    %45 = vector.broadcast %cst_34 : f32 to vector<32x1xf32>
    %46 = arith.mulf %38, %44 : vector<256x32xf32>
    %cst_35 = arith.constant dense<0.000000e+00> : vector<256x1xf32>
    %47 = tpu.matmul %46, %45, %cst_35 {dimension_numbers = #tpu.dot_dimension_numbers<[1], [0], [0], [1], [0, 0, 1, 1], [], []>} : vector<256x32xf32>, vector<32x1xf32>, vector<256x1xf32> -> vector<256x1xf32>
    %48 = arith.negf %47 : vector<256x1xf32>
    %49 = math.exp %48 : vector<256x1xf32>
    %cst_36 = arith.constant 1.000000e+00 : f32
    %50 = vector.broadcast %cst_36 : f32 to vector<256x1xf32>
    %51 = arith.addf %50, %49 : vector<256x1xf32>
    %52 = arith.divf %50, %51 : vector<256x1xf32>
    %53 = vector.broadcast %52 : vector<256x1xf32> to vector<256x32xf32>
    %54 = arith.mulf %53, %38 : vector<256x32xf32>
    %cst_37 = arith.constant dense<0.000000e+00> : vector<16x32xf32>
    %55 = tpu.matmul %20, %54, %cst_37 {dimension_numbers = #tpu.dot_dimension_numbers<[0], [0], [1], [1], [0, 1, 1, 1], [], []>} : vector<256x16xf32>, vector<256x32xf32>, vector<16x32xf32> -> vector<16x32xf32>
    %56 = vector.extract_strided_slice %55 {offsets = [0, 0], sizes = [8, 32], strides = [1, 1]} : vector<16x32xf32> to vector<8x32xf32>
    %57 = vector.extract_strided_slice %55 {offsets = [8, 0], sizes = [8, 32], strides = [1, 1]} : vector<16x32xf32> to vector<8x32xf32>
    %c0_38 = arith.constant 0 : index
    %c0_39 = arith.constant 0 : index
    %58 = vector.load %arg6[%c0_38, %c0_39] : memref<32x512xf32, #tpu.memory_space<vmem>>, vector<32x512xf32>
    %cst_40 = arith.constant dense<0.000000e+00> : vector<8x512xf32>
    %59 = tpu.matmul %56, %58, %cst_40 {dimension_numbers = #tpu.dot_dimension_numbers<[1], [0], [0], [1], [0, 0, 1, 1], [], []>} : vector<8x32xf32>, vector<32x512xf32>, vector<8x512xf32> -> vector<8x512xf32>
    %60 = tpu.concatenate %57, %57, %57, %57, %57, %57, %57, %57, %57, %57, %57, %57, %57, %57, %57, %57 in 1 : vector<8x32xf32>, vector<8x32xf32>, vector<8x32xf32>, vector<8x32xf32>, vector<8x32xf32>, vector<8x32xf32>, vector<8x32xf32>, vector<8x32xf32>, vector<8x32xf32>, vector<8x32xf32>, vector<8x32xf32>, vector<8x32xf32>, vector<8x32xf32>, vector<8x32xf32>, vector<8x32xf32>, vector<8x32xf32> -> vector<8x512xf32>
    %61 = arith.mulf %59, %60 : vector<8x512xf32>
    %c0_41 = arith.constant 0 : index
    %c0_42 = arith.constant 0 : index
    %62 = vector.load %arg7[%c0_41, %c0_42] : memref<512x16xf32, #tpu.memory_space<vmem>>, vector<512x16xf32>
    %cst_43 = arith.constant dense<0.000000e+00> : vector<8x16xf32>
    %63 = tpu.matmul %61, %62, %cst_43 {dimension_numbers = #tpu.dot_dimension_numbers<[1], [0], [0], [1], [0, 0, 1, 1], [], []>} : vector<8x512xf32>, vector<512x16xf32>, vector<8x16xf32> -> vector<8x16xf32>
    %cst_44 = arith.constant dense<0.000000e+00> : vector<8x16xf32>
    %64 = tpu.matmul %56, %11, %cst_44 {dimension_numbers = #tpu.dot_dimension_numbers<[1], [0], [0], [1], [0, 0, 1, 1], [], []>} : vector<8x32xf32>, vector<32x16xf32>, vector<8x16xf32> -> vector<8x16xf32>
    %cst_45 = arith.constant dense<0.000000e+00> : vector<8x16xf32>
    %65 = tpu.matmul %57, %12, %cst_45 {dimension_numbers = #tpu.dot_dimension_numbers<[1], [0], [0], [1], [0, 0, 1, 1], [], []>} : vector<8x32xf32>, vector<32x16xf32>, vector<8x16xf32> -> vector<8x16xf32>
    %66 = arith.addf %64, %65 : vector<8x16xf32>
    %67 = arith.addf %63, %66 : vector<8x16xf32>
    %68 = vector.broadcast %8 : vector<1x16xf32> to vector<8x16xf32>
    %69 = arith.addf %67, %68 : vector<8x16xf32>
    %cst_46 = arith.constant 0.000000e+00 : f32
    %70 = vector.broadcast %cst_46 : f32 to vector<8x16xf32>
    %71 = arith.maximumf %69, %70 : vector<8x16xf32>
    %cst_47 = arith.constant dense<0.000000e+00> : vector<8x16xf32>
    %72 = tpu.matmul %71, %13, %cst_47 {dimension_numbers = #tpu.dot_dimension_numbers<[1], [0], [0], [1], [0, 0, 1, 1], [], []>} : vector<8x16xf32>, vector<16x16xf32>, vector<8x16xf32> -> vector<8x16xf32>
    %73 = vector.broadcast %9 : vector<1x16xf32> to vector<8x16xf32>
    %74 = arith.addf %72, %73 : vector<8x16xf32>
    %75 = math.tanh %74 : vector<8x16xf32>
    %cst_48 = arith.constant dense<0.000000e+00> : vector<8x16xf32>
    %76 = tpu.matmul %75, %14, %cst_48 {dimension_numbers = #tpu.dot_dimension_numbers<[1], [0], [0], [1], [0, 0, 1, 1], [], []>} : vector<8x16xf32>, vector<16x16xf32>, vector<8x16xf32> -> vector<8x16xf32>
    %77 = vector.extract_strided_slice %76 {offsets = [0, 0], sizes = [8, 1], strides = [1, 1]} : vector<8x16xf32> to vector<8x1xf32>
    %78 = vector.broadcast %10 : vector<1x1xf32> to vector<8x1xf32>
    %79 = arith.addf %77, %78 : vector<8x1xf32>
    %80 = arith.negf %79 : vector<8x1xf32>
    %81 = math.exp %80 : vector<8x1xf32>
    %cst_49 = arith.constant 1.000000e+00 : f32
    %82 = vector.broadcast %cst_49 : f32 to vector<8x1xf32>
    %83 = arith.addf %82, %81 : vector<8x1xf32>
    %84 = arith.divf %82, %83 : vector<8x1xf32>
    %85 = vector.shape_cast %84 : vector<8x1xf32> to vector<8x1xf32>
    %86 = vector.broadcast %85 : vector<8x1xf32> to vector<8x128xf32>
    %c0_50 = arith.constant 0 : index
    %c0_51 = arith.constant 0 : index
    %c0_52 = arith.constant 0 : index
    %87 = vector.load %arg10[%c0_50, %c0_51, %c0_52] : memref<1x8x128xf32, #tpu.memory_space<vmem>>, vector<1x8x128xf32>
    %88 = vector.shape_cast %87 : vector<1x8x128xf32> to vector<8x128xf32>
    %89 = vector.shape_cast %86 : vector<8x128xf32> to vector<1x8x128xf32>
    tpu.vector_store %arg10[%c0_50, %c0_51, %c0_52], %89 {strides = array<i32>} : memref<1x8x128xf32, #tpu.memory_space<vmem>>, vector<1x8x128xf32>,
    return
  }
  func.func @transform_0(%arg0: i32) -> (i32, i32, i32) {
    %c0_i32 = arith.constant 0 : i32
    %c0_i32_0 = arith.constant 0 : i32
    %c0_i32_1 = arith.constant 0 : i32
    return %arg0, %c0_i32, %c0_i32_0 : i32, i32, i32
  }
  func.func @transform_1(%arg0: i32) -> (i32, i32, i32) {
    %c0_i32 = arith.constant 0 : i32
    %c0_i32_0 = arith.constant 0 : i32
    %c0_i32_1 = arith.constant 0 : i32
    return %arg0, %c0_i32, %c0_i32_0 : i32, i32, i32
  }
  func.func @transform_2(%arg0: i32) -> (i32, i32, i32) {
    %c0_i32 = arith.constant 0 : i32
    %c0_i32_0 = arith.constant 0 : i32
    %c0_i32_1 = arith.constant 0 : i32
    return %arg0, %c0_i32, %c0_i32_0 : i32, i32, i32
  }
  func.func @transform_3(%arg0: i32) -> (i32, i32, i32) {
    %c0_i32 = arith.constant 0 : i32
    %c0_i32_0 = arith.constant 0 : i32
    %c0_i32_1 = arith.constant 0 : i32
    return %arg0, %c0_i32, %c0_i32_0 : i32, i32, i32
  }
  func.func @transform_4(%arg0: i32) -> (i32, i32) {
    %c0_i32 = arith.constant 0 : i32
    %c0_i32_0 = arith.constant 0 : i32
    %c0_i32_1 = arith.constant 0 : i32
    return %c0_i32, %c0_i32_0 : i32, i32
  }
  func.func @transform_5(%arg0: i32) -> (i32, i32) {
    %c0_i32 = arith.constant 0 : i32
    %c0_i32_0 = arith.constant 0 : i32
    %c0_i32_1 = arith.constant 0 : i32
    return %c0_i32, %c0_i32_0 : i32, i32
  }
  func.func @transform_6(%arg0: i32) -> (i32, i32) {
    %c0_i32 = arith.constant 0 : i32
    %c0_i32_0 = arith.constant 0 : i32
    %c0_i32_1 = arith.constant 0 : i32
    return %c0_i32, %c0_i32_0 : i32, i32
  }
  func.func @transform_7(%arg0: i32) -> (i32, i32) {
    %c0_i32 = arith.constant 0 : i32
    %c0_i32_0 = arith.constant 0 : i32
    %c0_i32_1 = arith.constant 0 : i32
    return %c0_i32, %c0_i32_0 : i32, i32
  }
  func.func @transform_8(%arg0: i32) -> (i32, i32) {
    %c0_i32 = arith.constant 0 : i32
    %c0_i32_0 = arith.constant 0 : i32
    %c0_i32_1 = arith.constant 0 : i32
    return %c0_i32, %c0_i32_0 : i32, i32
  }
  func.func @transform_9(%arg0: i32) -> (i32, i32, i32) {
    %c0_i32 = arith.constant 0 : i32
    %c0_i32_0 = arith.constant 0 : i32
    %c0_i32_1 = arith.constant 0 : i32
    return %arg0, %c0_i32, %c0_i32_0 : i32, i32, i32
  }
}

</mosaic_0001>

<llo_original>
// kernel: squeeze.4
$region0: #{squeeze.4}
  %s0 = inlined_call_operand.vmem [shape: s32[16], index: 0, kind: input, shape index: {}]
  %s1 = inlined_call_operand.vmem [shape: s32[2,8], index: 1, kind: output, shape index: {}]
  $region1: #{squeeze.4} parent=0
    #allocation0 [shape = 'u8[4096]{0}', space=vmem, size = 0x1000, scoped, tag = 'scoped mem for output reshape']
    #allocation1 [shape = 'u8[4096]{0}', space=vmem, size = 0x1000, scoped, tag = 'scoped mem for input reshape']
    %s3 = sshllo.u32 0, 1
    %v4 = vld [vmem:[%s0] sm:%s3]
    %5 = vst [vmem:[#allocation1] sm:%s3] %v4
    %v6 = vld [vmem:[#allocation1] sm:$0x1]
    %vm7 = vcmask 64512
    %8 = vst.msk [vmem:[#allocation0] sm:$0x1] %vm7, %v6
    %v9 = vld [vmem:[#allocation1] sm:$0x1]
    %10 = vrot.lane.b32.xlu0 %v9, 120
    %v11 = vpop.permute.xlu0 %10
    %vm12 = vcmask 64512
    %s13 = scalar_lea.vmem [#allocation0], 1
    %14 = vst.msk [vmem:[%s13] sm:$0x1] %vm12, %v11
    %s16 = sshllo.u32 0, 2
    %v18 = vld [vmem:[#allocation0] sm:%s16]
    %s19 = sshllo.u32 0, 2
    %20 = vst [vmem:[%s1] sm:%s19] %v18

// kernel: squeeze.5
$region0: #{squeeze.5}
  %s0 = inlined_call_operand.vmem [shape: f32[2,8], index: 0, kind: input, shape index: {}]
  %s1 = inlined_call_operand.hbm [shape: f32[16], index: 1, kind: output, shape index: {}]
  $region1: #{squeeze.5} parent=0
    #allocation0 [shape = 'u8[512]{0}', space=vmem, size = 0x400, scoped, tag = 'operand span for operand 1']
    #allocation1 [shape = 's32[1]{0}', space=sflag, size = 0x4, scoped, tag = 'scoped memory for squeeze.5']
    #allocation2 [shape = 'u8[4096]{0}', space=vmem, size = 0x1000, scoped, tag = 'scoped mem for output reshape']
    #allocation3 [shape = 'u8[4096]{0}', space=vmem, size = 0x1000, scoped, tag = 'scoped mem for input reshape']
    %2 = vsyncpa [#allocation1], 0
    %s4 = sshllo.u32 0, 2
    %v5 = vld [vmem:[%s0] sm:%s4]
    %6 = vst [vmem:[#allocation3] sm:%s4] %v5
    %v7 = vld [vmem:[#allocation3] sm:$0x1]
    %vm8 = vcmask 64512
    %9 = vst.msk [vmem:[#allocation2] sm:$0x1] %vm8, %v7
    %s10 = scalar_lea.vmem [#allocation3], 1
    %v11 = vld [vmem:[%s10] sm:$0x1]
    %12 = vrot.lane.b32.xlu0 %v11, 8
    %v13 = vpop.permute.xlu0 %12
    %vm14 = vcmask 130112
    %15 = vst.msk [vmem:[#allocation2] sm:$0x1] %vm14, %v13
    %s17 = sshllo.u32 0, 1
    %v19 = vld [vmem:[#allocation2] sm:%s17]
    %s20 = sshllo.u32 0, 1
    %21 = vst [vmem:[#allocation0] sm:%s20] %v19
    %s23 = ssub.s32 16, 16
    %24 = vsyncadd [#allocation1], %s23
    %s26 = sshll.u32 [#allocation0], 4
    %s27 = int_to_ptr.vmem [resolvable:$true] %s26
    %29 = dma.vmem_to_hbm [thread:$0]  %s27, 16, %s1, [#allocation1]
    %30 = dma.done [#allocation1], 16
    %31 = vsyncpa [#allocation1], 1

// kernel: simgnn_forward_batch.1
$region0: #{simgnn_forward_batch.1}
  #allocation0 [shape = 'u32[]', space=smem, size = 0x4, offset = 0x4, fixed_abs, tag = 'smem constant byte address 0x4 - core index']
  #allocation1 [shape = 'u32[144,128]{1,0:T(1,128)}', space=vmem, size = 0x12000, scoped, tag = 'internal scratch']
  %s0 = inlined_call_operand.vmem [shape: f32[2,256,256], index: 0, kind: input, shape index: {}]
  %s1 = inlined_call_operand.vmem [shape: f32[2,256,16], index: 1, kind: input, shape index: {}]
  %s2 = inlined_call_operand.vmem [shape: f32[2,256,16], index: 2, kind: input, shape index: {}]
  %s3 = inlined_call_operand.vmem [shape: f32[2,16,1], index: 3, kind: input, shape index: {}]
  %s4 = inlined_call_operand.vmem [shape: f32[112,32], index: 4, kind: input, shape index: {}]
  %s5 = inlined_call_operand.vmem [shape: f32[32,512], index: 5, kind: input, shape index: {}]
  %s6 = inlined_call_operand.vmem [shape: f32[512,16], index: 6, kind: input, shape index: {}]
  %s7 = inlined_call_operand.vmem [shape: f32[96,16], index: 7, kind: input, shape index: {}]
  %s8 = inlined_call_operand.vmem [shape: f32[8,32], index: 8, kind: input, shape index: {}]
  %s9 = inlined_call_operand.vmem [shape: f32[2,8,128], index: 9, kind: output, shape index: {}]
  %s10 = sld [smem:[#allocation0]]
  $region69: #{simgnn_forward_batch.1} parent=0
    _
  %s12 = ssub.s32 1, %s10
  %s13 = scalar_select 0, %s12, %s10
  loop: start=0, step=1, limit=4
  $region2: #{simgnn_forward_batch.1} parent=0 // loop_pre_header
    _
  $region3: #{simgnn_forward_batch.1} parent=0 // loop_header
    %s15 = sphi 0, %s19
    %p16 = scmp.ge.s32.totalorder %s15, 4
    %s25 = sphi 0, %s27
    %s28 = sphi 0, %s25
    %s29 = sphi 0, %s28
    %s45 = sphi 0, %s29
    %s51 = sphi 0, %s53
    %s54 = sphi 0, %s51
    %s55 = sphi 0, %s54
    %s71 = sphi 0, %s55
    %s77 = sphi 0, %s79
    %s80 = sphi 0, %s77
    %s81 = sphi 0, %s80
    %s97 = sphi 0, %s81
    %s103 = sphi 0, %s105
    %s106 = sphi 0, %s103
    %s107 = sphi 0, %s106
    %s123 = sphi 0, %s107
    %s127 = sphi 0, %s127
    %s129 = sphi 0, %s127
    %s130 = sphi 0, %s129
    %s144 = sphi 0, %s130
    %s148 = sphi 0, %s148
    %s150 = sphi 0, %s148
    %s151 = sphi 0, %s150
    %s165 = sphi 0, %s151
    %s169 = sphi 0, %s169
    %s171 = sphi 0, %s169
    %s172 = sphi 0, %s171
    %s186 = sphi 0, %s172
    %s190 = sphi 0, %s190
    %s192 = sphi 0, %s190
    %s193 = sphi 0, %s192
    %s207 = sphi 0, %s193
    %s211 = sphi 0, %s211
    %s213 = sphi 0, %s211
    %s214 = sphi 0, %s213
    %s228 = sphi 0, %s214
    %s234 = sphi 0, %s236
    %s237 = sphi 0, %s234
    %s238 = sphi 0, %s237
    %s254 = sphi 0, %s238
  $region4: #{simgnn_forward_batch.1} parent=0 // loop_header_branch
    %18 = sbr.rel (%p16) target = $region8
  $region5: #{simgnn_forward_batch.1} parent=0 // loop_body
    %s20 = ssub.s32 %s15, 1
    %s21 = ssub.s32 %s15, 2
    %s22 = sadd.s32 %s15, 1
    %s23 = ssub.s32 %s15, %s22
    %p24 = scmp.eq.s32.totalorder %s23, 0
    %s26 = sadd.s32 %s25, 1
    %s27 = scalar_select %p24, %s25, %s26
    %p30 = pneg %p24
    %p31 = scmp.eq.s32.totalorder %s15, 1
    %p32 = por %p30, %p31
    %p33 = scmp.ne.s32.totalorder %s25, %s28
    %p34 = scmp.eq.s32.totalorder %s15, 0
    %p35 = por %p33, %p34
    %p36 = scmp.ne.s32.totalorder %s25, %s28
    %p37 = scmp.eq.s32.totalorder %s20, 1
    %p38 = por %p36, %p37
    %p39 = scmp.ne.s32.totalorder %s28, %s29
    %p40 = scmp.eq.s32.totalorder %s20, 0
    %p41 = por %p39, %p40
    %p42 = scmp.ne.s32.totalorder %s28, %s29
    %p43 = scmp.eq.s32.totalorder %s21, 1
    %p44 = por %p42, %p43
    %p46 = scmp.ne.s32.totalorder %s29, %s45
    %p47 = scmp.eq.s32.totalorder %s21, 0
    %p48 = por %p46, %p47
    %s49 = ssub.s32 %s15, %s22
    %p50 = scmp.eq.s32.totalorder %s49, 0
    %s52 = sadd.s32 %s51, 1
    %s53 = scalar_select %p50, %s51, %s52
    %p56 = pneg %p50
    %p57 = scmp.eq.s32.totalorder %s15, 1
    %p58 = por %p56, %p57
    %p59 = scmp.ne.s32.totalorder %s51, %s54
    %p60 = scmp.eq.s32.totalorder %s15, 0
    %p61 = por %p59, %p60
    %p62 = scmp.ne.s32.totalorder %s51, %s54
    %p63 = scmp.eq.s32.totalorder %s20, 1
    %p64 = por %p62, %p63
    %p65 = scmp.ne.s32.totalorder %s54, %s55
    %p66 = scmp.eq.s32.totalorder %s20, 0
    %p67 = por %p65, %p66
    %p68 = scmp.ne.s32.totalorder %s54, %s55
    %p69 = scmp.eq.s32.totalorder %s21, 1
    %p70 = por %p68, %p69
    %p72 = scmp.ne.s32.totalorder %s55, %s71
    %p73 = scmp.eq.s32.totalorder %s21, 0
    %p74 = por %p72, %p73
    %s75 = ssub.s32 %s15, %s22
    %p76 = scmp.eq.s32.totalorder %s75, 0
    %s78 = sadd.s32 %s77, 1
    %s79 = scalar_select %p76, %s77, %s78
    %p82 = pneg %p76
    %p83 = scmp.eq.s32.totalorder %s15, 1
    %p84 = por %p82, %p83
    %p85 = scmp.ne.s32.totalorder %s77, %s80
    %p86 = scmp.eq.s32.totalorder %s15, 0
    %p87 = por %p85, %p86
    %p88 = scmp.ne.s32.totalorder %s77, %s80
    %p89 = scmp.eq.s32.totalorder %s20, 1
    %p90 = por %p88, %p89
    %p91 = scmp.ne.s32.totalorder %s80, %s81
    %p92 = scmp.eq.s32.totalorder %s20, 0
    %p93 = por %p91, %p92
    %p94 = scmp.ne.s32.totalorder %s80, %s81
    %p95 = scmp.eq.s32.totalorder %s21, 1
    %p96 = por %p94, %p95
    %p98 = scmp.ne.s32.totalorder %s81, %s97
    %p99 = scmp.eq.s32.totalorder %s21, 0
    %p100 = por %p98, %p99
    %s101 = ssub.s32 %s15, %s22
    %p102 = scmp.eq.s32.totalorder %s101, 0
    %s104 = sadd.s32 %s103, 1
    %s105 = scalar_select %p102, %s103, %s104
    %p108 = pneg %p102
    %p109 = scmp.eq.s32.totalorder %s15, 1
    %p110 = por %p108, %p109
    %p111 = scmp.ne.s32.totalorder %s103, %s106
    %p112 = scmp.eq.s32.totalorder %s15, 0
    %p113 = por %p111, %p112
    %p114 = scmp.ne.s32.totalorder %s103, %s106
    %p115 = scmp.eq.s32.totalorder %s20, 1
    %p116 = por %p114, %p115
    %p117 = scmp.ne.s32.totalorder %s106, %s107
    %p118 = scmp.eq.s32.totalorder %s20, 0
    %p119 = por %p117, %p118
    %p120 = scmp.ne.s32.totalorder %s106, %s107
    %p121 = scmp.eq.s32.totalorder %s21, 1
    %p122 = por %p120, %p121
    %p124 = scmp.ne.s32.totalorder %s107, %s123
    %p125 = scmp.eq.s32.totalorder %s21, 0
    %p126 = por %p124, %p125
    %s128 = sadd.s32 %s127, 1
    %p131 = scmp.eq.s32.totalorder %s15, 1
    %p132 = scmp.ne.s32.totalorder %s127, %s129
    %p133 = scmp.eq.s32.totalorder %s15, 0
    %p134 = por %p132, %p133
    %p135 = scmp.ne.s32.totalorder %s127, %s129
    %p136 = scmp.eq.s32.totalorder %s20, 1
    %p137 = por %p135, %p136
    %p138 = scmp.ne.s32.totalorder %s129, %s130
    %p139 = scmp.eq.s32.totalorder %s20, 0
    %p140 = por %p138, %p139
    %p141 = scmp.ne.s32.totalorder %s129, %s130
    %p142 = scmp.eq.s32.totalorder %s21, 1
    %p143 = por %p141, %p142
    %p145 = scmp.ne.s32.totalorder %s130, %s144
    %p146 = scmp.eq.s32.totalorder %s21, 0
    %p147 = por %p145, %p146
    %s149 = sadd.s32 %s148, 1
    %p152 = scmp.eq.s32.totalorder %s15, 1
    %p153 = scmp.ne.s32.totalorder %s148, %s150
    %p154 = scmp.eq.s32.totalorder %s15, 0
    %p155 = por %p153, %p154
    %p156 = scmp.ne.s32.totalorder %s148, %s150
    %p157 = scmp.eq.s32.totalorder %s20, 1
    %p158 = por %p156, %p157
    %p159 = scmp.ne.s32.totalorder %s150, %s151
    %p160 = scmp.eq.s32.totalorder %s20, 0
    %p161 = por %p159, %p160
    %p162 = scmp.ne.s32.totalorder %s150, %s151
    %p163 = scmp.eq.s32.totalorder %s21, 1
    %p164 = por %p162, %p163
    %p166 = scmp.ne.s32.totalorder %s151, %s165
    %p167 = scmp.eq.s32.totalorder %s21, 0
    %p168 = por %p166, %p167
    %s170 = sadd.s32 %s169, 1
    %p173 = scmp.eq.s32.totalorder %s15, 1
    %p174 = scmp.ne.s32.totalorder %s169, %s171
    %p175 = scmp.eq.s32.totalorder %s15, 0
    %p176 = por %p174, %p175
    %p177 = scmp.ne.s32.totalorder %s169, %s171
    %p178 = scmp.eq.s32.totalorder %s20, 1
    %p179 = por %p177, %p178
    %p180 = scmp.ne.s32.totalorder %s171, %s172
    %p181 = scmp.eq.s32.totalorder %s20, 0
    %p182 = por %p180, %p181
    %p183 = scmp.ne.s32.totalorder %s171, %s172
    %p184 = scmp.eq.s32.totalorder %s21, 1
    %p185 = por %p183, %p184
    %p187 = scmp.ne.s32.totalorder %s172, %s186
    %p188 = scmp.eq.s32.totalorder %s21, 0
    %p189 = por %p187, %p188
    %s191 = sadd.s32 %s190, 1
    %p194 = scmp.eq.s32.totalorder %s15, 1
    %p195 = scmp.ne.s32.totalorder %s190, %s192
    %p196 = scmp.eq.s32.totalorder %s15, 0
    %p197 = por %p195, %p196
    %p198 = scmp.ne.s32.totalorder %s190, %s192
    %p199 = scmp.eq.s32.totalorder %s20, 1
    %p200 = por %p198, %p199
    %p201 = scmp.ne.s32.totalorder %s192, %s193
    %p202 = scmp.eq.s32.totalorder %s20, 0
    %p203 = por %p201, %p202
    %p204 = scmp.ne.s32.totalorder %s192, %s193
    %p205 = scmp.eq.s32.totalorder %s21, 1
    %p206 = por %p204, %p205
    %p208 = scmp.ne.s32.totalorder %s193, %s207
    %p209 = scmp.eq.s32.totalorder %s21, 0
    %p210 = por %p208, %p209
    %s212 = sadd.s32 %s211, 1
    %p215 = scmp.eq.s32.totalorder %s15, 1
    %p216 = scmp.ne.s32.totalorder %s211, %s213
    %p217 = scmp.eq.s32.totalorder %s15, 0
    %p218 = por %p216, %p217
    %p219 = scmp.ne.s32.totalorder %s211, %s213
    %p220 = scmp.eq.s32.totalorder %s20, 1
    %p221 = por %p219, %p220
    %p222 = scmp.ne.s32.totalorder %s213, %s214
    %p223 = scmp.eq.s32.totalorder %s20, 0
    %p224 = por %p222, %p223
    %p225 = scmp.ne.s32.totalorder %s213, %s214
    %p226 = scmp.eq.s32.totalorder %s21, 1
    %p227 = por %p225, %p226
    %p229 = scmp.ne.s32.totalorder %s214, %s228
    %p230 = scmp.eq.s32.totalorder %s21, 0
    %p231 = por %p229, %p230
    %s232 = ssub.s32 %s15, %s22
    %p233 = scmp.eq.s32.totalorder %s232, 0
    %s235 = sadd.s32 %s234, 1
    %s236 = scalar_select %p233, %s234, %s235
    %p239 = pneg %p233
    %p240 = scmp.eq.s32.totalorder %s15, 1
    %p241 = por %p239, %p240
    %p242 = scmp.ne.s32.totalorder %s234, %s237
    %p243 = scmp.eq.s32.totalorder %s15, 0
    %p244 = por %p242, %p243
    %p245 = scmp.ne.s32.totalorder %s234, %s237
    %p246 = scmp.eq.s32.totalorder %s20, 1
    %p247 = por %p245, %p246
    %p248 = scmp.ne.s32.totalorder %s237, %s238
    %p249 = scmp.eq.s32.totalorder %s20, 0
    %p250 = por %p248, %p249
    %p251 = scmp.ne.s32.totalorder %s237, %s238
    %p252 = scmp.eq.s32.totalorder %s21, 1
    %p253 = por %p251, %p252
    %p255 = scmp.ne.s32.totalorder %s238, %s254
    %p256 = scmp.eq.s32.totalorder %s21, 0
    %p257 = por %p255, %p256
    %p258 = scmp.le.s32.totalorder 1, %s15
    %p259 = scmp.lt.s32.totalorder %s15, 3
    %p260 = pnand %p258, %p259
    %p261 = pneg %p260
    // Predicated region
    $region9: #{simgnn_forward_batch.1} parent=5 // pred_check
      _
    $region10: #{simgnn_forward_batch.1} parent=5 // pred_check_branch
      %263 = sbr.rel (%p260) target = $region12
    $region11: #{simgnn_forward_batch.1} parent=5 // pred_region
      %s264 = ssub.s32 %s15, 1
      // Predicated region
      $region13: #{simgnn_forward_batch.1} parent=11 // pred_check
        %p265 = pneg %p140
      $region14: #{simgnn_forward_batch.1} parent=11 // pred_check_branch
        %267 = sbr.rel (%p265) target = $region16
      $region15: #{simgnn_forward_batch.1} parent=11 // pred_region
        _
      $region16: #{simgnn_forward_batch.1} parent=11 // pred_fallthru
        _
      // Predicated region
      $region17: #{simgnn_forward_batch.1} parent=11 // pred_check
        %p268 = pneg %p161
      $region18: #{simgnn_forward_batch.1} parent=11 // pred_check_branch
        %270 = sbr.rel (%p268) target = $region20
      $region19: #{simgnn_forward_batch.1} parent=11 // pred_region
        _
      $region20: #{simgnn_forward_batch.1} parent=11 // pred_fallthru
        _
      // Predicated region
      $region21: #{simgnn_forward_batch.1} parent=11 // pred_check
        %p271 = pneg %p182
      $region22: #{simgnn_forward_batch.1} parent=11 // pred_check_branch
        %273 = sbr.rel (%p271) target = $region24
      $region23: #{simgnn_forward_batch.1} parent=11 // pred_region
        _
      $region24: #{simgnn_forward_batch.1} parent=11 // pred_fallthru
        _
      // Predicated region
      $region25: #{simgnn_forward_batch.1} parent=11 // pred_check
        %p274 = pneg %p203
      $region26: #{simgnn_forward_batch.1} parent=11 // pred_check_branch
        %276 = sbr.rel (%p274) target = $region28
      $region27: #{simgnn_forward_batch.1} parent=11 // pred_region
        _
      $region28: #{simgnn_forward_batch.1} parent=11 // pred_fallthru
        _
      // Predicated region
      $region29: #{simgnn_forward_batch.1} parent=11 // pred_check
        %p277 = pneg %p224
      $region30: #{simgnn_forward_batch.1} parent=11 // pred_check_branch
        %279 = sbr.rel (%p277) target = $region32
      $region31: #{simgnn_forward_batch.1} parent=11 // pred_region
        _
      $region32: #{simgnn_forward_batch.1} parent=11 // pred_fallthru
        _
    $region12: #{simgnn_forward_batch.1} parent=5 // pred_fallthru
      _
    %p280 = scmp.lt.s32.totalorder %s15, 2
    // Predicated region
    $region33: #{simgnn_forward_batch.1} parent=5 // pred_check
      %p281 = pneg %p280
    $region34: #{simgnn_forward_batch.1} parent=5 // pred_check_branch
      %283 = sbr.rel (%p281) target = $region36
    $region35: #{simgnn_forward_batch.1} parent=5 // pred_region
      // Predicated region
      $region37: #{simgnn_forward_batch.1} parent=35 // pred_check
        %p284 = pneg %p35
      $region38: #{simgnn_forward_batch.1} parent=35 // pred_check_branch
        %286 = sbr.rel (%p284) target = $region40
      $region39: #{simgnn_forward_batch.1} parent=35 // pred_region
        %p287 = scmp.lt.s32.totalorder %s15, 1
        %s288 = scalar_select %p287, %s15, 1
        %s289 = smul.addr %s288, 64
        %s290 = smul.addr %s289, 8
        %s291 = scalar_lea.vmem %s0, %s290
      $region40: #{simgnn_forward_batch.1} parent=35 // pred_fallthru
        _
      // Predicated region
      $region41: #{simgnn_forward_batch.1} parent=35 // pred_check
        %p292 = pneg %p61
      $region42: #{simgnn_forward_batch.1} parent=35 // pred_check_branch
        %294 = sbr.rel (%p292) target = $region44
      $region43: #{simgnn_forward_batch.1} parent=35 // pred_region
        %p295 = scmp.lt.s32.totalorder %s15, 1
        %s296 = scalar_select %p295, %s15, 1
        %s297 = smul.addr %s296, 32
        %s298 = smul.addr %s297, 8
        %s299 = scalar_lea.vmem %s1, %s298
      $region44: #{simgnn_forward_batch.1} parent=35 // pred_fallthru
        _
      // Predicated region
      $region45: #{simgnn_forward_batch.1} parent=35 // pred_check
        %p300 = pneg %p87
      $region46: #{simgnn_forward_batch.1} parent=35 // pred_check_branch
        %302 = sbr.rel (%p300) target = $region48
      $region47: #{simgnn_forward_batch.1} parent=35 // pred_region
        %p303 = scmp.lt.s32.totalorder %s15, 1
        %s304 = scalar_select %p303, %s15, 1
        %s305 = smul.addr %s304, 32
        %s306 = smul.addr %s305, 8
        %s307 = scalar_lea.vmem %s2, %s306
      $region48: #{simgnn_forward_batch.1} parent=35 // pred_fallthru
        _
      // Predicated region
      $region49: #{simgnn_forward_batch.1} parent=35 // pred_check
        %p308 = pneg %p113
      $region50: #{simgnn_forward_batch.1} parent=35 // pred_check_branch
        %310 = sbr.rel (%p308) target = $region52
      $region51: #{simgnn_forward_batch.1} parent=35 // pred_region
        %p311 = scmp.lt.s32.totalorder %s15, 1
        %s312 = scalar_select %p311, %s15, 1
        %s313 = smul.addr %s312, 2
        %s314 = smul.addr %s313, 8
        %s315 = scalar_lea.vmem %s3, %s314
      $region52: #{simgnn_forward_batch.1} parent=35 // pred_fallthru
        _
    $region36: #{simgnn_forward_batch.1} parent=5 // pred_fallthru
      _
    %p316 = scmp.le.s32.totalorder 1, %s15
    %p317 = scmp.lt.s32.totalorder %s15, 3
    %p318 = pnand %p316, %p317
    %p319 = pneg %p318
    // Predicated region
    $region53: #{simgnn_forward_batch.1} parent=5 // pred_check
      _
    $region54: #{simgnn_forward_batch.1} parent=5 // pred_check_branch
      %321 = sbr.rel (%p318) target = $region56
    $region55: #{simgnn_forward_batch.1} parent=5 // pred_region
      %s322 = ssub.s32 %s15, 1
      %p323 = scmp.lt.s32.totalorder %s20, 1
      %s324 = scalar_select %p323, %s20, 1
      %s325 = smul.addr %s324, 64
      %s326 = smul.addr %s325, 8
      %s327 = scalar_lea.vmem %s0, %s326
      %p328 = pneg %p41
      %p329 = pneg %p38
      %p330 = scmp.lt.s32.totalorder %s20, 1
      %s331 = scalar_select %p330, %s20, 1
      %s332 = smul.addr %s331, 32
      %s333 = smul.addr %s332, 8
      %s334 = scalar_lea.vmem %s1, %s333
      %p335 = pneg %p67
      %p336 = pneg %p64
      %p337 = scmp.lt.s32.totalorder %s20, 1
      %s338 = scalar_select %p337, %s20, 1
      %s339 = smul.addr %s338, 32
      %s340 = smul.addr %s339, 8
      %s341 = scalar_lea.vmem %s2, %s340
      %p342 = pneg %p93
      %p343 = pneg %p90
      %p344 = scmp.lt.s32.totalorder %s20, 1
      %s345 = scalar_select %p344, %s20, 1
      %s346 = smul.addr %s345, 2
      %s347 = smul.addr %s346, 8
      %s348 = scalar_lea.vmem %s3, %s347
      %p349 = pneg %p119
      %p350 = pneg %p116
      %p351 = pneg %p140
      %p352 = pneg %p137
      %p353 = pneg %p161
      %p354 = pneg %p158
      %p355 = pneg %p182
      %p356 = pneg %p179
      %p357 = pneg %p203
      %p358 = pneg %p200
      %p359 = pneg %p224
      %p360 = pneg %p221
      %p361 = pneg %p250
      %p362 = pneg %p247
      %p363 = scmp.lt.s32.totalorder %s20, 1
      %s364 = scalar_select %p363, %s20, 1
      %s365 = smul.addr %s364, 8
      %s366 = scalar_lea.vmem %s9, %s365
      %p367 = scmp.lt.s32.totalorder %s20, 1
      %s368 = scalar_select %p367, %s20, 1
      %s369 = smul.addr %s368, 64
      %s370 = smul.addr %s369, 8
      %s371 = scalar_lea.vmem %s0, %s370
      %p372 = scmp.lt.s32.totalorder %s20, 1
      %s373 = scalar_select %p372, %s20, 1
      %s374 = smul.addr %s373, 32
      %s375 = smul.addr %s374, 8
      %s376 = scalar_lea.vmem %s1, %s375
      %p377 = scmp.lt.s32.totalorder %s20, 1
      %s378 = scalar_select %p377, %s20, 1
      %s379 = smul.addr %s378, 32
      %s380 = smul.addr %s379, 8
      %s381 = scalar_lea.vmem %s2, %s380
      %p382 = scmp.lt.s32.totalorder %s20, 1
      %s383 = scalar_select %p382, %s20, 1
      %s384 = smul.addr %s383, 2
      %s385 = smul.addr %s384, 8
      %s386 = scalar_lea.vmem %s3, %s385
      %p387 = scmp.lt.s32.totalorder %s20, 1
      %s388 = scalar_select %p387, %s20, 1
      %s389 = smul.addr %s388, 8
      %s390 = scalar_lea.vmem %s9, %s389
      %v391 = vld [vmem:[%s4] sm:$0xff]
      %v392 = vld [vmem:[%s4 + $0x8] sm:$0xff]
      %v393 = vld [vmem:[%s4 + $0x10] sm:$0xff]
      %v394 = vld [vmem:[%s4 + $0x18] sm:$0xff]
      %v395 = vld [vmem:[%s4 + $0x20] sm:$0xff]
      %v396 = vld [vmem:[%s4 + $0x28] sm:$0xff]
      %v397 = vld [vmem:[%s4 + $0x30] sm:$0xff]
      %v398 = vld [vmem:[%s4 + $0x38] sm:$0xff]
      %v399 = vld [vmem:[%s4 + $0x40] sm:$0xff]
      %v400 = vld [vmem:[%s4 + $0x48] sm:$0xff]
      %v401 = vld [vmem:[%s4 + $0x50] sm:$0xff]
      %v402 = vld [vmem:[%s4 + $0x58] sm:$0xff]
      %v403 = vld [vmem:[%s4 + $0x60] sm:$0xff]
      %v404 = vld [vmem:[%s4 + $0x68] sm:$0xff]
      %v405 = vld [vmem:[%s8] sm:$0xff]
      %v406 = vld [vmem:[%s7] sm:$0xff]
      %v407 = vld [vmem:[%s7 + $0x8] sm:$0xff]
      %v408 = vld [vmem:[%s7 + $0x10] sm:$0xff]
      %v409 = vld [vmem:[%s7 + $0x18] sm:$0xff]
      %v410 = vld [vmem:[%s7 + $0x20] sm:$0xff]
      %v411 = vld [vmem:[%s7 + $0x28] sm:$0xff]
      %v412 = vld [vmem:[%s7 + $0x30] sm:$0xff]
      %v413 = vld [vmem:[%s7 + $0x38] sm:$0xff]
      %v414 = vld [vmem:[%s7 + $0x40] sm:$0xff]
      %v415 = vld [vmem:[%s7 + $0x48] sm:$0xff]
      %v416 = vld [vmem:[%s7 + $0x50] sm:$0xff]
      %v417 = vld [vmem:[%s7 + $0x58] sm:$0xff]
      %v418 = vld [vmem:[%s371] sm:$0xff]
      %v419 = vld [vmem:[%s371 + $0x8] sm:$0xff]
      %v420 = vld [vmem:[%s371 + $0x10] sm:$0xff]
      %v421 = vld [vmem:[%s371 + $0x18] sm:$0xff]
      %v422 = vld [vmem:[%s371 + $0x20] sm:$0xff]
      %v423 = vld [vmem:[%s371 + $0x28] sm:$0xff]
      %v424 = vld [vmem:[%s371 + $0x30] sm:$0xff]
      %v425 = vld [vmem:[%s371 + $0x38] sm:$0xff]
      %v426 = vld [vmem:[%s371 + $0x40] sm:$0xff]
      %v427 = vld [vmem:[%s371 + $0x48] sm:$0xff]
      %v428 = vld [vmem:[%s371 + $0x50] sm:$0xff]
      %v429 = vld [vmem:[%s371 + $0x58] sm:$0xff]
      %v430 = vld [vmem:[%s371 + $0x60] sm:$0xff]
      %v431 = vld [vmem:[%s371 + $0x68] sm:$0xff]
      %v432 = vld [vmem:[%s371 + $0x70] sm:$0xff]
      %v433 = vld [vmem:[%s371 + $0x78] sm:$0xff]
      %v434 = vld [vmem:[%s371 + $0x80] sm:$0xff]
      %v435 = vld [vmem:[%s371 + $0x88] sm:$0xff]
      %v436 = vld [vmem:[%s371 + $0x90] sm:$0xff]
      %v437 = vld [vmem:[%s371 + $0x98] sm:$0xff]
      %v438 = vld [vmem:[%s371 + $0xa0] sm:$0xff]
      %v439 = vld [vmem:[%s371 + $0xa8] sm:$0xff]
      %v440 = vld [vmem:[%s371 + $0xb0] sm:$0xff]
      %v441 = vld [vmem:[%s371 + $0xb8] sm:$0xff]
      %v442 = vld [vmem:[%s371 + $0xc0] sm:$0xff]
      %v443 = vld [vmem:[%s371 + $0xc8] sm:$0xff]
      %v444 = vld [vmem:[%s371 + $0xd0] sm:$0xff]
      %v445 = vld [vmem:[%s371 + $0xd8] sm:$0xff]
      %v446 = vld [vmem:[%s371 + $0xe0] sm:$0xff]
      %v447 = vld [vmem:[%s371 + $0xe8] sm:$0xff]
      %v448 = vld [vmem:[%s371 + $0xf0] sm:$0xff]
      %v449 = vld [vmem:[%s371 + $0xf8] sm:$0xff]
      %v450 = vld [vmem:[%s371 + $0x100] sm:$0xff]
      %v451 = vld [vmem:[%s371 + $0x108] sm:$0xff]
      %v452 = vld [vmem:[%s371 + $0x110] sm:$0xff]
      %v453 = vld [vmem:[%s371 + $0x118] sm:$0xff]
      %v454 = vld [vmem:[%s371 + $0x120] sm:$0xff]
      %v455 = vld [vmem:[%s371 + $0x128] sm:$0xff]
      %v456 = vld [vmem:[%s371 + $0x130] sm:$0xff]
      %v457 = vld [vmem:[%s371 + $0x138] sm:$0xff]
      %v458 = vld [vmem:[%s371 + $0x140] sm:$0xff]
      %v459 = vld [vmem:[%s371 + $0x148] sm:$0xff]
      %v460 = vld [vmem:[%s371 + $0x150] sm:$0xff]
      %v461 = vld [vmem:[%s371 + $0x158] sm:$0xff]
      %v462 = vld [vmem:[%s371 + $0x160] sm:$0xff]
      %v463 = vld [vmem:[%s371 + $0x168] sm:$0xff]
      %v464 = vld [vmem:[%s371 + $0x170] sm:$0xff]
      %v465 = vld [vmem:[%s371 + $0x178] sm:$0xff]
      %v466 = vld [vmem:[%s371 + $0x180] sm:$0xff]
      %v467 = vld [vmem:[%s371 + $0x188] sm:$0xff]
      %v468 = vld [vmem:[%s371 + $0x190] sm:$0xff]
      %v469 = vld [vmem:[%s371 + $0x198] sm:$0xff]
      %v470 = vld [vmem:[%s371 + $0x1a0] sm:$0xff]
      %v471 = vld [vmem:[%s371 + $0x1a8] sm:$0xff]
      %v472 = vld [vmem:[%s371 + $0x1b0] sm:$0xff]
      %v473 = vld [vmem:[%s371 + $0x1b8] sm:$0xff]
      %v474 = vld [vmem:[%s371 + $0x1c0] sm:$0xff]
      %v475 = vld [vmem:[%s371 + $0x1c8] sm:$0xff]
      %v476 = vld [vmem:[%s371 + $0x1d0] sm:$0xff]
      %v477 = vld [vmem:[%s371 + $0x1d8] sm:$0xff]
      %v478 = vld [vmem:[%s371 + $0x1e0] sm:$0xff]
      %v479 = vld [vmem:[%s371 + $0x1e8] sm:$0xff]
      %v480 = vld [vmem:[%s371 + $0x1f0] sm:$0xff]
      %v481 = vld [vmem:[%s371 + $0x1f8] sm:$0xff]
      %v482 = vld [vmem:[%s376] sm:$0xff]
      %v483 = vld [vmem:[%s376 + $0x8] sm:$0xff]
      %v484 = vld [vmem:[%s376 + $0x10] sm:$0xff]
      %v485 = vld [vmem:[%s376 + $0x18] sm:$0xff]
      %v486 = vld [vmem:[%s376 + $0x20] sm:$0xff]
      %v487 = vld [vmem:[%s376 + $0x28] sm:$0xff]
      %v488 = vld [vmem:[%s376 + $0x30] sm:$0xff]
      %v489 = vld [vmem:[%s376 + $0x38] sm:$0xff]
      %v490 = vld [vmem:[%s376 + $0x40] sm:$0xff]
      %v491 = vld [vmem:[%s376 + $0x48] sm:$0xff]
      %v492 = vld [vmem:[%s376 + $0x50] sm:$0xff]
      %v493 = vld [vmem:[%s376 + $0x58] sm:$0xff]
      %v494 = vld [vmem:[%s376 + $0x60] sm:$0xff]
      %v495 = vld [vmem:[%s376 + $0x68] sm:$0xff]
      %v496 = vld [vmem:[%s376 + $0x70] sm:$0xff]
      %v497 = vld [vmem:[%s376 + $0x78] sm:$0xff]
      %v498 = vld [vmem:[%s376 + $0x80] sm:$0xff]
      %v499 = vld [vmem:[%s376 + $0x88] sm:$0xff]
      %v500 = vld [vmem:[%s376 + $0x90] sm:$0xff]
      %v501 = vld [vmem:[%s376 + $0x98] sm:$0xff]
      %v502 = vld [vmem:[%s376 + $0xa0] sm:$0xff]
      %v503 = vld [vmem:[%s376 + $0xa8] sm:$0xff]
      %v504 = vld [vmem:[%s376 + $0xb0] sm:$0xff]
      %v505 = vld [vmem:[%s376 + $0xb8] sm:$0xff]
      %v506 = vld [vmem:[%s376 + $0xc0] sm:$0xff]
      %v507 = vld [vmem:[%s376 + $0xc8] sm:$0xff]
      %v508 = vld [vmem:[%s376 + $0xd0] sm:$0xff]
      %v509 = vld [vmem:[%s376 + $0xd8] sm:$0xff]
      %v510 = vld [vmem:[%s376 + $0xe0] sm:$0xff]
      %v511 = vld [vmem:[%s376 + $0xe8] sm:$0xff]
      %v512 = vld [vmem:[%s376 + $0xf0] sm:$0xff]
      %v513 = vld [vmem:[%s376 + $0xf8] sm:$0xff]
      %v514 = vld [vmem:[%s381] sm:$0xff]
      %v515 = vld [vmem:[%s381 + $0x8] sm:$0xff]
      %v516 = vld [vmem:[%s381 + $0x10] sm:$0xff]
      %v517 = vld [vmem:[%s381 + $0x18] sm:$0xff]
      %v518 = vld [vmem:[%s381 + $0x20] sm:$0xff]
      %v519 = vld [vmem:[%s381 + $0x28] sm:$0xff]
      %v520 = vld [vmem:[%s381 + $0x30] sm:$0xff]
      %v521 = vld [vmem:[%s381 + $0x38] sm:$0xff]
      %v522 = vld [vmem:[%s381 + $0x40] sm:$0xff]
      %v523 = vld [vmem:[%s381 + $0x48] sm:$0xff]
      %v524 = vld [vmem:[%s381 + $0x50] sm:$0xff]
      %v525 = vld [vmem:[%s381 + $0x58] sm:$0xff]
      %v526 = vld [vmem:[%s381 + $0x60] sm:$0xff]
      %v527 = vld [vmem:[%s381 + $0x68] sm:$0xff]
      %v528 = vld [vmem:[%s381 + $0x70] sm:$0xff]
      %v529 = vld [vmem:[%s381 + $0x78] sm:$0xff]
      %v530 = vld [vmem:[%s381 + $0x80] sm:$0xff]
      %v531 = vld [vmem:[%s381 + $0x88] sm:$0xff]
      %v532 = vld [vmem:[%s381 + $0x90] sm:$0xff]
      %v533 = vld [vmem:[%s381 + $0x98] sm:$0xff]
      %v534 = vld [vmem:[%s381 + $0xa0] sm:$0xff]
      %v535 = vld [vmem:[%s381 + $0xa8] sm:$0xff]
      %v536 = vld [vmem:[%s381 + $0xb0] sm:$0xff]
      %v537 = vld [vmem:[%s381 + $0xb8] sm:$0xff]
      %v538 = vld [vmem:[%s381 + $0xc0] sm:$0xff]
      %v539 = vld [vmem:[%s381 + $0xc8] sm:$0xff]
      %v540 = vld [vmem:[%s381 + $0xd0] sm:$0xff]
      %v541 = vld [vmem:[%s381 + $0xd8] sm:$0xff]
      %v542 = vld [vmem:[%s381 + $0xe0] sm:$0xff]
      %v543 = vld [vmem:[%s381 + $0xe8] sm:$0xff]
      %v544 = vld [vmem:[%s381 + $0xf0] sm:$0xff]
      %v545 = vld [vmem:[%s381 + $0xf8] sm:$0xff]
      %v546 = vld [vmem:[%s386] sm:$0xff]
      %v547 = vld [vmem:[%s386 + $0x8] sm:$0xff]
      %548 = vmatprep.subr.mxu0 0.0
      %549 = vmatpush1.msra.mxu0 %v482
      %550 = vmatprep.subr.mxu0 0.0
      %551 = vmatpush1.msra.mxu0 %v483
      %552 = vmatprep.subr.mxu0 0.0
      %553 = vmatpush1.msra.mxu0 %v484
      %554 = vmatprep.subr.mxu0 0.0
      %555 = vmatpush1.msra.mxu0 %v485
      %556 = vmatprep.subr.mxu0 0.0
      %557 = vmatpush1.msra.mxu0 %v486
      %558 = vmatprep.subr.mxu0 0.0
      %559 = vmatpush1.msra.mxu0 %v487
      %560 = vmatprep.subr.mxu0 0.0
      %561 = vmatpush1.msra.mxu0 %v488
      %562 = vmatprep.subr.mxu0 0.0
      %563 = vmatpush1.msra.mxu0 %v489
      %564 = vmatprep.subr.mxu0 0.0
      %565 = vmatpush1.msra.mxu0 %v490
      %566 = vmatprep.subr.mxu0 0.0
      %567 = vmatpush1.msra.mxu0 %v491
      %568 = vmatprep.subr.mxu0 0.0
      %569 = vmatpush1.msra.mxu0 %v492
      %570 = vmatprep.subr.mxu0 0.0
      %571 = vmatpush1.msra.mxu0 %v493
      %572 = vmatprep.subr.mxu0 0.0
      %573 = vmatpush1.msra.mxu0 %v494
      %574 = vmatprep.subr.mxu0 0.0
      %575 = vmatpush1.msra.mxu0 %v495
      %576 = vmatprep.subr.mxu0 0.0
      %577 = vmatpush1.msra.mxu0 %v496
      %578 = vmatprep.subr.mxu0 0.0
      %579 = vmatpush1.msra.mxu0 %v497
      %580 = vmatprep.subr.mxu0 0.0
      %581 = vmatpush1.msra.mxu0 %v498
      %582 = vmatprep.subr.mxu0 0.0
      %583 = vmatpush1.msra.mxu0 %v499
      %584 = vmatprep.subr.mxu0 0.0
      %585 = vmatpush1.msra.mxu0 %v500
      %586 = vmatprep.subr.mxu0 0.0
      %587 = vmatpush1.msra.mxu0 %v501
      %588 = vmatprep.subr.mxu0 0.0
      %589 = vmatpush1.msra.mxu0 %v502
      %590 = vmatprep.subr.mxu0 0.0
      %591 = vmatpush1.msra.mxu0 %v503
      %592 = vmatprep.subr.mxu0 0.0
      %593 = vmatpush1.msra.mxu0 %v504
      %594 = vmatprep.subr.mxu0 0.0
      %595 = vmatpush1.msra.mxu0 %v505
      %596 = vmatprep.subr.mxu0 0.0
      %597 = vmatpush1.msra.mxu0 %v506
      %598 = vmatprep.subr.mxu0 0.0
      %599 = vmatpush1.msra.mxu0 %v507
      %600 = vmatprep.subr.mxu0 0.0
      %601 = vmatpush1.msra.mxu0 %v508
      %602 = vmatprep.subr.mxu0 0.0
      %603 = vmatpush1.msra.mxu0 %v509
      %604 = vmatprep.subr.mxu0 0.0
      %605 = vmatpush1.msra.mxu0 %v510
      %606 = vmatprep.subr.mxu0 0.0
      %607 = vmatpush1.msra.mxu0 %v511
      %608 = vmatprep.subr.mxu0 0.0
      %609 = vmatpush1.msra.mxu0 %v512
      %610 = vmatprep.subr.mxu0 0.0
      %611 = vmatpush1.msra.mxu0 %v513
      %612 = vmatprep.mubr.f32.mxu0 %v419
      %613 = vmatmul.mubr.f32.gmra.mrb[0].mxu0 %v418
      %v614 = vpop.f32.mrb[0].mxu0
      %v615 = vadd.f32 0.0, %v614
      %v616 = vpop.f32.mrb[0].mxu0
      %617 = vmatprep.mubr.f32.mxu0 %v421
      %618 = vmatmul.mubr.f32.gmra.mrb[0].mxu0 %v420
      %v619 = vpop.f32.mrb[0].mxu0
      %v620 = vadd.f32 0.0, %v619
      %v621 = vpop.f32.mrb[0].mxu0
      %622 = vmatprep.mubr.f32.mxu0 %v423
      %623 = vmatmul.mubr.f32.gmra.mrb[0].mxu0 %v422
      %v624 = vpop.f32.mrb[0].mxu0
      %v625 = vadd.f32 0.0, %v624
      %v626 = vpop.f32.mrb[0].mxu0
      %627 = vmatprep.mubr.f32.mxu0 %v425
      %628 = vmatmul.mubr.f32.gmra.mrb[0].mxu0 %v424
      %v629 = vpop.f32.mrb[0].mxu0
      %v630 = vadd.f32 0.0, %v629
      %v631 = vpop.f32.mrb[0].mxu0
      %632 = vmatprep.mubr.f32.mxu0 %v427
      %633 = vmatmul.mubr.f32.gmra.mrb[0].mxu0 %v426
      %v634 = vpop.f32.mrb[0].mxu0
      %v635 = vadd.f32 0.0, %v634
      %v636 = vpop.f32.mrb[0].mxu0
      %637 = vmatprep.mubr.f32.mxu0 %v429
      %638 = vmatmul.mubr.f32.gmra.mrb[0].mxu0 %v428
      %v639 = vpop.f32.mrb[0].mxu0
      %v640 = vadd.f32 0.0, %v639
      %v641 = vpop.f32.mrb[0].mxu0
      %642 = vmatprep.mubr.f32.mxu0 %v431
      %643 = vmatmul.mubr.f32.gmra.mrb[0].mxu0 %v430
      %v644 = vpop.f32.mrb[0].mxu0
      %v645 = vadd.f32 0.0, %v644
      %v646 = vpop.f32.mrb[0].mxu0
      %647 = vmatprep.mubr.f32.mxu0 %v433
      %648 = vmatmul.mubr.f32.gmra.mrb[0].mxu0 %v432
      %v649 = vpop.f32.mrb[0].mxu0
      %v650 = vadd.f32 0.0, %v649
      %v651 = vpop.f32.mrb[0].mxu0
      %652 = vmatprep.mubr.f32.mxu0 %v435
      %653 = vmatmul.mubr.f32.gmra.mrb[0].mxu0 %v434
      %v654 = vpop.f32.mrb[0].mxu0
      %v655 = vadd.f32 0.0, %v654
      %v656 = vpop.f32.mrb[0].mxu0
      %657 = vmatprep.mubr.f32.mxu0 %v437
      %658 = vmatmul.mubr.f32.gmra.mrb[0].mxu0 %v436
      %v659 = vpop.f32.mrb[0].mxu0
      %v660 = vadd.f32 0.0, %v659
      %v661 = vpop.f32.mrb[0].mxu0
      %662 = vmatprep.mubr.f32.mxu0 %v439
      %663 = vmatmul.mubr.f32.gmra.mrb[0].mxu0 %v438
      %v664 = vpop.f32.mrb[0].mxu0
      %v665 = vadd.f32 0.0, %v664
      %v666 = vpop.f32.mrb[0].mxu0
      %667 = vmatprep.mubr.f32.mxu0 %v441
      %668 = vmatmul.mubr.f32.gmra.mrb[0].mxu0 %v440
      %v669 = vpop.f32.mrb[0].mxu0
      %v670 = vadd.f32 0.0, %v669
      %v671 = vpop.f32.mrb[0].mxu0
      %672 = vmatprep.mubr.f32.mxu0 %v443
      %673 = vmatmul.mubr.f32.gmra.mrb[0].mxu0 %v442
      %v674 = vpop.f32.mrb[0].mxu0
      %v675 = vadd.f32 0.0, %v674
      %v676 = vpop.f32.mrb[0].mxu0
      %677 = vmatprep.mubr.f32.mxu0 %v445
      %678 = vmatmul.mubr.f32.gmra.mrb[0].mxu0 %v444
      %v679 = vpop.f32.mrb[0].mxu0
      %v680 = vadd.f32 0.0, %v679
      %v681 = vpop.f32.mrb[0].mxu0
      %682 = vmatprep.mubr.f32.mxu0 %v447
      %683 = vmatmul.mubr.f32.gmra.mrb[0].mxu0 %v446
      %v684 = vpop.f32.mrb[0].mxu0
      %v685 = vadd.f32 0.0, %v684
      %v686 = vpop.f32.mrb[0].mxu0
      %687 = vmatprep.mubr.f32.mxu0 %v449
      %688 = vmatmul.mubr.f32.gmra.mrb[0].mxu0 %v448
      %v689 = vpop.f32.mrb[0].mxu0
      %v690 = vadd.f32 0.0, %v689
      %v691 = vpop.f32.mrb[0].mxu0
      %692 = vmatprep.mubr.f32.mxu0 %v451
      %693 = vmatmul.mubr.f32.gmra.mrb[0].mxu0 %v450
      %v694 = vpop.f32.mrb[0].mxu0
      %v695 = vadd.f32 0.0, %v694
      %v696 = vpop.f32.mrb[0].mxu0
      %697 = vmatprep.mubr.f32.mxu0 %v453
      %698 = vmatmul.mubr.f32.gmra.mrb[0].mxu0 %v452
      %v699 = vpop.f32.mrb[0].mxu0
      %v700 = vadd.f32 0.0, %v699
      %v701 = vpop.f32.mrb[0].mxu0
      %702 = vmatprep.mubr.f32.mxu0 %v455
      %703 = vmatmul.mubr.f32.gmra.mrb[0].mxu0 %v454
      %v704 = vpop.f32.mrb[0].mxu0
      %v705 = vadd.f32 0.0, %v704
      %v706 = vpop.f32.mrb[0].mxu0
      %707 = vmatprep.mubr.f32.mxu0 %v457
      %708 = vmatmul.mubr.f32.gmra.mrb[0].mxu0 %v456
      %v709 = vpop.f32.mrb[0].mxu0
      %v710 = vadd.f32 0.0, %v709
      %v711 = vpop.f32.mrb[0].mxu0
      %712 = vmatprep.mubr.f32.mxu0 %v459
      %713 = vmatmul.mubr.f32.gmra.mrb[0].mxu0 %v458
      %v714 = vpop.f32.mrb[0].mxu0
      %v715 = vadd.f32 0.0, %v714
      %v716 = vpop.f32.mrb[0].mxu0
      %717 = vmatprep.mubr.f32.mxu0 %v461
      %718 = vmatmul.mubr.f32.gmra.mrb[0].mxu0 %v460
      %v719 = vpop.f32.mrb[0].mxu0
      %v720 = vadd.f32 0.0, %v719
      %v721 = vpop.f32.mrb[0].mxu0
      %722 = vmatprep.mubr.f32.mxu0 %v463
      %723 = vmatmul.mubr.f32.gmra.mrb[0].mxu0 %v462
      %v724 = vpop.f32.mrb[0].mxu0
      %v725 = vadd.f32 0.0, %v724
      %v726 = vpop.f32.mrb[0].mxu0
      %727 = vmatprep.mubr.f32.mxu0 %v465
      %728 = vmatmul.mubr.f32.gmra.mrb[0].mxu0 %v464
      %v729 = vpop.f32.mrb[0].mxu0
      %v730 = vadd.f32 0.0, %v729
      %v731 = vpop.f32.mrb[0].mxu0
      %732 = vmatprep.mubr.f32.mxu0 %v467
      %733 = vmatmul.mubr.f32.gmra.mrb[0].mxu0 %v466
      %v734 = vpop.f32.mrb[0].mxu0
      %v735 = vadd.f32 0.0, %v734
      %v736 = vpop.f32.mrb[0].mxu0
      %737 = vmatprep.mubr.f32.mxu0 %v469
      %738 = vmatmul.mubr.f32.gmra.mrb[0].mxu0 %v468
      %v739 = vpop.f32.mrb[0].mxu0
      %v740 = vadd.f32 0.0, %v739
      %v741 = vpop.f32.mrb[0].mxu0
      %742 = vmatprep.mubr.f32.mxu0 %v471
      %743 = vmatmul.mubr.f32.gmra.mrb[0].mxu0 %v470
      %v744 = vpop.f32.mrb[0].mxu0
      %v745 = vadd.f32 0.0, %v744
      %v746 = vpop.f32.mrb[0].mxu0
      %747 = vmatprep.mubr.f32.mxu0 %v473
      %748 = vmatmul.mubr.f32.gmra.mrb[0].mxu0 %v472
      %v749 = vpop.f32.mrb[0].mxu0
      %v750 = vadd.f32 0.0, %v749
      %v751 = vpop.f32.mrb[0].mxu0
      %752 = vmatprep.mubr.f32.mxu0 %v475
      %753 = vmatmul.mubr.f32.gmra.mrb[0].mxu0 %v474
      %v754 = vpop.f32.mrb[0].mxu0
      %v755 = vadd.f32 0.0, %v754
      %v756 = vpop.f32.mrb[0].mxu0
      %757 = vmatprep.mubr.f32.mxu0 %v477
      %758 = vmatmul.mubr.f32.gmra.mrb[0].mxu0 %v476
      %v759 = vpop.f32.mrb[0].mxu0
      %v760 = vadd.f32 0.0, %v759
      %v761 = vpop.f32.mrb[0].mxu0
      %762 = vmatprep.mubr.f32.mxu0 %v479
      %763 = vmatmul.mubr.f32.gmra.mrb[0].mxu0 %v478
      %v764 = vpop.f32.mrb[0].mxu0
      %v765 = vadd.f32 0.0, %v764
      %v766 = vpop.f32.mrb[0].mxu0
      %767 = vmatprep.mubr.f32.mxu0 %v481
      %768 = vmatmul.mubr.f32.gmra.mrb[0].mxu0 %v480
      %v769 = vpop.f32.mrb[0].mxu0
      %v770 = vadd.f32 0.0, %v769
      %v771 = vpop.f32.mrb[0].mxu0
      %772 = vdwg.mxu0
      %v773 = vlaneseq
      %v774 = vshrl.u32 %v773, 7
      %v775 = vsub.s32 0, %v774
      %v776 = vrot.slane %v405, %v775
      %vm777 = vcmask 130048
      %v779 = vsel %vm777, %v615, 0
      %v782 = vsel %vm777, %v620, 0
      %v785 = vsel %vm777, %v625, 0
      %v788 = vsel %vm777, %v630, 0
      %v791 = vsel %vm777, %v635, 0
      %v794 = vsel %vm777, %v640, 0
      %v797 = vsel %vm777, %v645, 0
      %v800 = vsel %vm777, %v650, 0
      %v803 = vsel %vm777, %v655, 0
      %v806 = vsel %vm777, %v660, 0
      %v809 = vsel %vm777, %v665, 0
      %v812 = vsel %vm777, %v670, 0
      %v815 = vsel %vm777, %v675, 0
      %v818 = vsel %vm777, %v680, 0
      %v821 = vsel %vm777, %v685, 0
      %v824 = vsel %vm777, %v690, 0
      %v827 = vsel %vm777, %v695, 0
      %v830 = vsel %vm777, %v700, 0
      %v833 = vsel %vm777, %v705, 0
      %v836 = vsel %vm777, %v710, 0
      %v839 = vsel %vm777, %v715, 0
      %v842 = vsel %vm777, %v720, 0
      %v845 = vsel %vm777, %v725, 0
      %v848 = vsel %vm777, %v730, 0
      %v851 = vsel %vm777, %v735, 0
      %v854 = vsel %vm777, %v740, 0
      %v857 = vsel %vm777, %v745, 0
      %v860 = vsel %vm777, %v750, 0
      %v863 = vsel %vm777, %v755, 0
      %v866 = vsel %vm777, %v760, 0
      %v869 = vsel %vm777, %v765, 0
      %v872 = vsel %vm777, %v770, 0
      %874 = vmatprep.subr.mxu0 0.0
      %875 = vmatpush1.msra.mxu0 %v391
      %876 = vmatprep.subr.mxu0 0.0
      %877 = vmatpush1.msra.mxu0 %v392
      %878 = vmatprep.subr.mxu0 0.0
      %879 = vmatpush1.msra.mxu0 0.0
      %880 = vmatprep.subr.mxu0 0.0
      %881 = vmatpush1.msra.mxu0 0.0
      %882 = vmatprep.subr.mxu0 0.0
      %883 = vmatpush1.msra.mxu0 0.0
      %884 = vmatprep.subr.mxu0 0.0
      %885 = vmatpush1.msra.mxu0 0.0
      %886 = vmatprep.subr.mxu0 0.0
      %887 = vmatpush1.msra.mxu0 0.0
      %888 = vmatprep.subr.mxu0 0.0
      %889 = vmatpush1.msra.mxu0 0.0
      %890 = vmatprep.subr.mxu0 0.0
      %891 = vmatpush1.msra.mxu0 0.0
      %892 = vmatprep.subr.mxu0 0.0
      %893 = vmatpush1.msra.mxu0 0.0
      %894 = vmatprep.subr.mxu0 0.0
      %895 = vmatpush1.msra.mxu0 0.0
      %896 = vmatprep.subr.mxu0 0.0
      %897 = vmatpush1.msra.mxu0 0.0
      %898 = vmatprep.subr.mxu0 0.0
      %899 = vmatpush1.msra.mxu0 0.0
      %900 = vmatprep.subr.mxu0 0.0
      %901 = vmatpush1.msra.mxu0 0.0
      %902 = vmatprep.subr.mxu0 0.0
      %903 = vmatpush1.msra.mxu0 0.0
      %904 = vmatprep.subr.mxu0 0.0
      %905 = vmatpush1.msra.mxu0 0.0
      %906 = vmatprep.subr.mxu0 0.0
      %907 = vmatpush1.msra.mxu0 0.0
      %908 = vmatprep.subr.mxu0 0.0
      %909 = vmatpush1.msra.mxu0 0.0
      %910 = vmatprep.subr.mxu0 0.0
      %911 = vmatpush1.msra.mxu0 0.0
      %912 = vmatprep.subr.mxu0 0.0
      %913 = vmatpush1.msra.mxu0 0.0
      %914 = vmatprep.subr.mxu0 0.0
      %915 = vmatpush1.msra.mxu0 0.0
      %916 = vmatprep.subr.mxu0 0.0
      %917 = vmatpush1.msra.mxu0 0.0
      %918 = vmatprep.subr.mxu0 0.0
      %919 = vmatpush1.msra.mxu0 0.0
      %920 = vmatprep.subr.mxu0 0.0
      %921 = vmatpush1.msra.mxu0 0.0
      %922 = vmatprep.subr.mxu0 0.0
      %923 = vmatpush1.msra.mxu0 0.0
      %924 = vmatprep.subr.mxu0 0.0
      %925 = vmatpush1.msra.mxu0 0.0
      %926 = vmatprep.subr.mxu0 0.0
      %927 = vmatpush1.msra.mxu0 0.0
      %928 = vmatprep.subr.mxu0 0.0
      %929 = vmatpush1.msra.mxu0 0.0
      %930 = vmatprep.subr.mxu0 0.0
      %931 = vmatpush1.msra.mxu0 0.0
      %932 = vmatprep.subr.mxu0 0.0
      %933 = vmatpush1.msra.mxu0 0.0
      %934 = vmatprep.subr.mxu0 0.0
      %935 = vmatpush1.msra.mxu0 0.0
      %936 = vmatprep.subr.mxu0 0.0
      %937 = vmatpush1.msra.mxu0 0.0
      %938 = vmatprep.mubr.f32.mxu0 0.0
      %939 = vmatmul.mubr.f32.gmra.mrb[0].mxu0 %v779
      %v940 = vpop.f32.mrb[0].mxu0
      %v941 = vadd.f32 %v776, %v940
      %v942 = vpop.f32.mrb[0].mxu0
      %943 = vmatprep.mubr.f32.mxu0 0.0
      %944 = vmatmul.mubr.f32.gmra.mrb[0].mxu0 %v782
      %v945 = vpop.f32.mrb[0].mxu0
      %v946 = vadd.f32 %v776, %v945
      %v947 = vpop.f32.mrb[0].mxu0
      %948 = vmatprep.mubr.f32.mxu0 0.0
      %949 = vmatmul.mubr.f32.gmra.mrb[0].mxu0 %v785
      %v950 = vpop.f32.mrb[0].mxu0
      %v951 = vadd.f32 %v776, %v950
      %v952 = vpop.f32.mrb[0].mxu0
      %953 = vmatprep.mubr.f32.mxu0 0.0
      %954 = vmatmul.mubr.f32.gmra.mrb[0].mxu0 %v788
      %v955 = vpop.f32.mrb[0].mxu0
      %v956 = vadd.f32 %v776, %v955
      %v957 = vpop.f32.mrb[0].mxu0
      %958 = vmatprep.mubr.f32.mxu0 0.0
      %959 = vmatmul.mubr.f32.gmra.mrb[0].mxu0 %v791
      %v960 = vpop.f32.mrb[0].mxu0
      %v961 = vadd.f32 %v776, %v960
      %v962 = vpop.f32.mrb[0].mxu0
      %963 = vmatprep.mubr.f32.mxu0 0.0
      %964 = vmatmul.mubr.f32.gmra.mrb[0].mxu0 %v794
      %v965 = vpop.f32.mrb[0].mxu0
      %v966 = vadd.f32 %v776, %v965
      %v967 = vpop.f32.mrb[0].mxu0
      %968 = vmatprep.mubr.f32.mxu0 0.0
      %969 = vmatmul.mubr.f32.gmra.mrb[0].mxu0 %v797
      %v970 = vpop.f32.mrb[0].mxu0
      %v971 = vadd.f32 %v776, %v970
      %v972 = vpop.f32.mrb[0].mxu0
      %973 = vmatprep.mubr.f32.mxu0 0.0
      %974 = vmatmul.mubr.f32.gmra.mrb[0].mxu0 %v800
      %v975 = vpop.f32.mrb[0].mxu0
      %v976 = vadd.f32 %v776, %v975
      %v977 = vpop.f32.mrb[0].mxu0
      %978 = vmatprep.mubr.f32.mxu0 0.0
      %979 = vmatmul.mubr.f32.gmra.mrb[0].mxu0 %v803
      %v980 = vpop.f32.mrb[0].mxu0
      %v981 = vadd.f32 %v776, %v980
      %v982 = vpop.f32.mrb[0].mxu0
      %983 = vmatprep.mubr.f32.mxu0 0.0
      %984 = vmatmul.mubr.f32.gmra.mrb[0].mxu0 %v806
      %v985 = vpop.f32.mrb[0].mxu0
      %v986 = vadd.f32 %v776, %v985
      %v987 = vpop.f32.mrb[0].mxu0
      %988 = vmatprep.mubr.f32.mxu0 0.0
      %989 = vmatmul.mubr.f32.gmra.mrb[0].mxu0 %v809
      %v990 = vpop.f32.mrb[0].mxu0
      %v991 = vadd.f32 %v776, %v990
      %v992 = vpop.f32.mrb[0].mxu0
      %993 = vmatprep.mubr.f32.mxu0 0.0
      %994 = vmatmul.mubr.f32.gmra.mrb[0].mxu0 %v812
      %v995 = vpop.f32.mrb[0].mxu0
      %v996 = vadd.f32 %v776, %v995
      %v997 = vpop.f32.mrb[0].mxu0
      %998 = vmatprep.mubr.f32.mxu0 0.0
      %999 = vmatmul.mubr.f32.gmra.mrb[0].mxu0 %v815
      %v1000 = vpop.f32.mrb[0].mxu0
      %v1001 = vadd.f32 %v776, %v1000
      %v1002 = vpop.f32.mrb[0].mxu0
      %1003 = vmatprep.mubr.f32.mxu0 0.0
      %1004 = vmatmul.mubr.f32.gmra.mrb[0].mxu0 %v818
      %v1005 = vpop.f32.mrb[0].mxu0
      %v1006 = vadd.f32 %v776, %v1005
      %v1007 = vpop.f32.mrb[0].mxu0
      %1008 = vmatprep.mubr.f32.mxu0 0.0
      %1009 = vmatmul.mubr.f32.gmra.mrb[0].mxu0 %v821
      %v1010 = vpop.f32.mrb[0].mxu0
      %v1011 = vadd.f32 %v776, %v1010
      %v1012 = vpop.f32.mrb[0].mxu0
      %1013 = vmatprep.mubr.f32.mxu0 0.0
      %1014 = vmatmul.mubr.f32.gmra.mrb[0].mxu0 %v824
      %v1015 = vpop.f32.mrb[0].mxu0
      %v1016 = vadd.f32 %v776, %v1015
      %v1017 = vpop.f32.mrb[0].mxu0
      %1018 = vmatprep.mubr.f32.mxu0 0.0
      %1019 = vmatmul.mubr.f32.gmra.mrb[0].mxu0 %v827
      %v1020 = vpop.f32.mrb[0].mxu0
      %v1021 = vadd.f32 %v776, %v1020
      %v1022 = vpop.f32.mrb[0].mxu0
      %1023 = vmatprep.mubr.f32.mxu0 0.0
      %1024 = vmatmul.mubr.f32.gmra.mrb[0].mxu0 %v830
      %v1025 = vpop.f32.mrb[0].mxu0
      %v1026 = vadd.f32 %v776, %v1025
      %v1027 = vpop.f32.mrb[0].mxu0
      %1028 = vmatprep.mubr.f32.mxu0 0.0
      %1029 = vmatmul.mubr.f32.gmra.mrb[0].mxu0 %v833
      %v1030 = vpop.f32.mrb[0].mxu0
      %v1031 = vadd.f32 %v776, %v1030
      %v1032 = vpop.f32.mrb[0].mxu0
      %1033 = vmatprep.mubr.f32.mxu0 0.0
      %1034 = vmatmul.mubr.f32.gmra.mrb[0].mxu0 %v836
      %v1035 = vpop.f32.mrb[0].mxu0
      %v1036 = vadd.f32 %v776, %v1035
      %v1037 = vpop.f32.mrb[0].mxu0
      %1038 = vmatprep.mubr.f32.mxu0 0.0
      %1039 = vmatmul.mubr.f32.gmra.mrb[0].mxu0 %v839
      %v1040 = vpop.f32.mrb[0].mxu0
      %v1041 = vadd.f32 %v776, %v1040
      %v1042 = vpop.f32.mrb[0].mxu0
      %1043 = vmatprep.mubr.f32.mxu0 0.0
      %1044 = vmatmul.mubr.f32.gmra.mrb[0].mxu0 %v842
      %v1045 = vpop.f32.mrb[0].mxu0
      %v1046 = vadd.f32 %v776, %v1045
      %v1047 = vpop.f32.mrb[0].mxu0
      %1048 = vmatprep.mubr.f32.mxu0 0.0
      %1049 = vmatmul.mubr.f32.gmra.mrb[0].mxu0 %v845
      %v1050 = vpop.f32.mrb[0].mxu0
      %v1051 = vadd.f32 %v776, %v1050
      %v1052 = vpop.f32.mrb[0].mxu0
      %1053 = vmatprep.mubr.f32.mxu0 0.0
      %1054 = vmatmul.mubr.f32.gmra.mrb[0].mxu0 %v848
      %v1055 = vpop.f32.mrb[0].mxu0
      %v1056 = vadd.f32 %v776, %v1055
      %v1057 = vpop.f32.mrb[0].mxu0
      %1058 = vmatprep.mubr.f32.mxu0 0.0
      %1059 = vmatmul.mubr.f32.gmra.mrb[0].mxu0 %v851
      %v1060 = vpop.f32.mrb[0].mxu0
      %v1061 = vadd.f32 %v776, %v1060
      %v1062 = vpop.f32.mrb[0].mxu0
      %1063 = vmatprep.mubr.f32.mxu0 0.0
      %1064 = vmatmul.mubr.f32.gmra.mrb[0].mxu0 %v854
      %v1065 = vpop.f32.mrb[0].mxu0
      %v1066 = vadd.f32 %v776, %v1065
      %v1067 = vpop.f32.mrb[0].mxu0
      %1068 = vmatprep.mubr.f32.mxu0 0.0
      %1069 = vmatmul.mubr.f32.gmra.mrb[0].mxu0 %v857
      %v1070 = vpop.f32.mrb[0].mxu0
      %v1071 = vadd.f32 %v776, %v1070
      %v1072 = vpop.f32.mrb[0].mxu0
      %1073 = vmatprep.mubr.f32.mxu0 0.0
      %1074 = vmatmul.mubr.f32.gmra.mrb[0].mxu0 %v860
      %v1075 = vpop.f32.mrb[0].mxu0
      %v1076 = vadd.f32 %v776, %v1075
      %v1077 = vpop.f32.mrb[0].mxu0
      %1078 = vmatprep.mubr.f32.mxu0 0.0
      %1079 = vmatmul.mubr.f32.gmra.mrb[0].mxu0 %v863
      %v1080 = vpop.f32.mrb[0].mxu0
      %v1081 = vadd.f32 %v776, %v1080
      %v1082 = vpop.f32.mrb[0].mxu0
      %1083 = vmatprep.mubr.f32.mxu0 0.0
      %1084 = vmatmul.mubr.f32.gmra.mrb[0].mxu0 %v866
      %v1085 = vpop.f32.mrb[0].mxu0
      %v1086 = vadd.f32 %v776, %v1085
      %v1087 = vpop.f32.mrb[0].mxu0
      %1088 = vmatprep.mubr.f32.mxu0 0.0
      %1089 = vmatmul.mubr.f32.gmra.mrb[0].mxu0 %v869
      %v1090 = vpop.f32.mrb[0].mxu0
      %v1091 = vadd.f32 %v776, %v1090
      %v1092 = vpop.f32.mrb[0].mxu0
      %1093 = vmatprep.mubr.f32.mxu0 0.0
      %1094 = vmatmul.mubr.f32.gmra.mrb[0].mxu0 %v872
      %v1095 = vpop.f32.mrb[0].mxu0
      %v1096 = vadd.f32 %v776, %v1095
      %v1097 = vpop.f32.mrb[0].mxu0
      %1098 = vdwg.mxu0
      %v1099 = vmax.f32 %v941, 0.0
      %v1100 = vmax.f32 %v946, 0.0
      %v1101 = vmax.f32 %v951, 0.0
      %v1102 = vmax.f32 %v956, 0.0
      %v1103 = vmax.f32 %v961, 0.0
      %v1104 = vmax.f32 %v966, 0.0
      %v1105 = vmax.f32 %v971, 0.0
      %v1106 = vmax.f32 %v976, 0.0
      %v1107 = vmax.f32 %v981, 0.0
      %v1108 = vmax.f32 %v986, 0.0
      %v1109 = vmax.f32 %v991, 0.0
      %v1110 = vmax.f32 %v996, 0.0
      %v1111 = vmax.f32 %v1001, 0.0
      %v1112 = vmax.f32 %v1006, 0.0
      %v1113 = vmax.f32 %v1011, 0.0
      %v1114 = vmax.f32 %v1016, 0.0
      %v1115 = vmax.f32 %v1021, 0.0
      %v1116 = vmax.f32 %v1026, 0.0
      %v1117 = vmax.f32 %v1031, 0.0
      %v1118 = vmax.f32 %v1036, 0.0
      %v1119 = vmax.f32 %v1041, 0.0
      %v1120 = vmax.f32 %v1046, 0.0
      %v1121 = vmax.f32 %v1051, 0.0
      %v1122 = vmax.f32 %v1056, 0.0
      %v1123 = vmax.f32 %v1061, 0.0
      %v1124 = vmax.f32 %v1066, 0.0
      %v1125 = vmax.f32 %v1071, 0.0
      %v1126 = vmax.f32 %v1076, 0.0
      %v1127 = vmax.f32 %v1081, 0.0
      %v1128 = vmax.f32 %v1086, 0.0
      %v1129 = vmax.f32 %v1091, 0.0
      %v1130 = vmax.f32 %v1096, 0.0
      %1131 = vmatprep.subr.mxu0 0.0
      %1132 = vmatpush1.msra.mxu0 %v1099
      %1133 = vmatprep.subr.mxu0 0.0
      %1134 = vmatpush1.msra.mxu0 %v1100
      %1135 = vmatprep.subr.mxu0 0.0
      %1136 = vmatpush1.msra.mxu0 %v1101
      %1137 = vmatprep.subr.mxu0 0.0
      %1138 = vmatpush1.msra.mxu0 %v1102
      %1139 = vmatprep.subr.mxu0 0.0
      %1140 = vmatpush1.msra.mxu0 %v1103
      %1141 = vmatprep.subr.mxu0 0.0
      %1142 = vmatpush1.msra.mxu0 %v1104
      %1143 = vmatprep.subr.mxu0 0.0
      %1144 = vmatpush1.msra.mxu0 %v1105
      %1145 = vmatprep.subr.mxu0 0.0
      %1146 = vmatpush1.msra.mxu0 %v1106
      %1147 = vmatprep.subr.mxu0 0.0
      %1148 = vmatpush1.msra.mxu0 %v1107
      %1149 = vmatprep.subr.mxu0 0.0
      %1150 = vmatpush1.msra.mxu0 %v1108
      %1151 = vmatprep.subr.mxu0 0.0
      %1152 = vmatpush1.msra.mxu0 %v1109
      %1153 = vmatprep.subr.mxu0 0.0
      %1154 = vmatpush1.msra.mxu0 %v1110
      %1155 = vmatprep.subr.mxu0 0.0
      %1156 = vmatpush1.msra.mxu0 %v1111
      %1157 = vmatprep.subr.mxu0 0.0
      %1158 = vmatpush1.msra.mxu0 %v1112
      %1159 = vmatprep.subr.mxu0 0.0
      %1160 = vmatpush1.msra.mxu0 %v1113
      %1161 = vmatprep.subr.mxu0 0.0
      %1162 = vmatpush1.msra.mxu0 %v1114
      %1163 = vmatprep.subr.mxu0 0.0
      %1164 = vmatpush1.msra.mxu0 %v1115
      %1165 = vmatprep.subr.mxu0 0.0
      %1166 = vmatpush1.msra.mxu0 %v1116
      %1167 = vmatprep.subr.mxu0 0.0
      %1168 = vmatpush1.msra.mxu0 %v1117
      %1169 = vmatprep.subr.mxu0 0.0
      %1170 = vmatpush1.msra.mxu0 %v1118
      %1171 = vmatprep.subr.mxu0 0.0
      %1172 = vmatpush1.msra.mxu0 %v1119
      %1173 = vmatprep.subr.mxu0 0.0
      %1174 = vmatpush1.msra.mxu0 %v1120
      %1175 = vmatprep.subr.mxu0 0.0
      %1176 = vmatpush1.msra.mxu0 %v1121
      %1177 = vmatprep.subr.mxu0 0.0
      %1178 = vmatpush1.msra.mxu0 %v1122
      %1179 = vmatprep.subr.mxu0 0.0
      %1180 = vmatpush1.msra.mxu0 %v1123
      %1181 = vmatprep.subr.mxu0 0.0
      %1182 = vmatpush1.msra.mxu0 %v1124
      %1183 = vmatprep.subr.mxu0 0.0
      %1184 = vmatpush1.msra.mxu0 %v1125
      %1185 = vmatprep.subr.mxu0 0.0
      %1186 = vmatpush1.msra.mxu0 %v1126
      %1187 = vmatprep.subr.mxu0 0.0
      %1188 = vmatpush1.msra.mxu0 %v1127
      %1189 = vmatprep.subr.mxu0 0.0
      %1190 = vmatpush1.msra.mxu0 %v1128
      %1191 = vmatprep.subr.mxu0 0.0
      %1192 = vmatpush1.msra.mxu0 %v1129
      %1193 = vmatprep.subr.mxu0 0.0
      %1194 = vmatpush1.msra.mxu0 %v1130
      %1195 = vmatprep.mubr.f32.mxu0 %v419
      %1196 = vmatmul.mubr.f32.gmra.mrb[0].mxu0 %v418
      %v1197 = vpop.f32.mrb[0].mxu0
      %v1198 = vadd.f32 0.0, %v1197
      %v1199 = vpop.f32.mrb[0].mxu0
      %1200 = vmatprep.mubr.f32.mxu0 %v421
      %1201 = vmatmul.mubr.f32.gmra.mrb[0].mxu0 %v420
      %v1202 = vpop.f32.mrb[0].mxu0
      %v1203 = vadd.f32 0.0, %v1202
      %v1204 = vpop.f32.mrb[0].mxu0
      %1205 = vmatprep.mubr.f32.mxu0 %v423
      %1206 = vmatmul.mubr.f32.gmra.mrb[0].mxu0 %v422
      %v1207 = vpop.f32.mrb[0].mxu0
      %v1208 = vadd.f32 0.0, %v1207
      %v1209 = vpop.f32.mrb[0].mxu0
      %1210 = vmatprep.mubr.f32.mxu0 %v425
      %1211 = vmatmul.mubr.f32.gmra.mrb[0].mxu0 %v424
      %v1212 = vpop.f32.mrb[0].mxu0
      %v1213 = vadd.f32 0.0, %v1212
      %v1214 = vpop.f32.mrb[0].mxu0
      %1215 = vmatprep.mubr.f32.mxu0 %v427
      %1216 = vmatmul.mubr.f32.gmra.mrb[0].mxu0 %v426
      %v1217 = vpop.f32.mrb[0].mxu0
      %v1218 = vadd.f32 0.0, %v1217
      %v1219 = vpop.f32.mrb[0].mxu0
      %1220 = vmatprep.mubr.f32.mxu0 %v429
      %1221 = vmatmul.mubr.f32.gmra.mrb[0].mxu0 %v428
      %v1222 = vpop.f32.mrb[0].mxu0
      %v1223 = vadd.f32 0.0, %v1222
      %v1224 = vpop.f32.mrb[0].mxu0
      %1225 = vmatprep.mubr.f32.mxu0 %v431
      %1226 = vmatmul.mubr.f32.gmra.mrb[0].mxu0 %v430
      %v1227 = vpop.f32.mrb[0].mxu0
      %v1228 = vadd.f32 0.0, %v1227
      %v1229 = vpop.f32.mrb[0].mxu0
      %1230 = vmatprep.mubr.f32.mxu0 %v433
      %1231 = vmatmul.mubr.f32.gmra.mrb[0].mxu0 %v432
      %v1232 = vpop.f32.mrb[0].mxu0
      %v1233 = vadd.f32 0.0, %v1232
      %v1234 = vpop.f32.mrb[0].mxu0
      %1235 = vmatprep.mubr.f32.mxu0 %v435
      %1236 = vmatmul.mubr.f32.gmra.mrb[0].mxu0 %v434
      %v1237 = vpop.f32.mrb[0].mxu0
      %v1238 = vadd.f32 0.0, %v1237
      %v1239 = vpop.f32.mrb[0].mxu0
      %1240 = vmatprep.mubr.f32.mxu0 %v437
      %1241 = vmatmul.mubr.f32.gmra.mrb[0].mxu0 %v436
      %v1242 = vpop.f32.mrb[0].mxu0
      %v1243 = vadd.f32 0.0, %v1242
      %v1244 = vpop.f32.mrb[0].mxu0
      %1245 = vmatprep.mubr.f32.mxu0 %v439
      %1246 = vmatmul.mubr.f32.gmra.mrb[0].mxu0 %v438
      %v1247 = vpop.f32.mrb[0].mxu0
      %v1248 = vadd.f32 0.0, %v1247
      %v1249 = vpop.f32.mrb[0].mxu0
      %1250 = vmatprep.mubr.f32.mxu0 %v441
      %1251 = vmatmul.mubr.f32.gmra.mrb[0].mxu0 %v440
      %v1252 = vpop.f32.mrb[0].mxu0
      %v1253 = vadd.f32 0.0, %v1252
      %v1254 = vpop.f32.mrb[0].mxu0
      %1255 = vmatprep.mubr.f32.mxu0 %v443
      %1256 = vmatmul.mubr.f32.gmra.mrb[0].mxu0 %v442
      %v1257 = vpop.f32.mrb[0].mxu0
      %v1258 = vadd.f32 0.0, %v1257
      %v1259 = vpop.f32.mrb[0].mxu0
      %1260 = vmatprep.mubr.f32.mxu0 %v445
      %1261 = vmatmul.mubr.f32.gmra.mrb[0].mxu0 %v444
      %v1262 = vpop.f32.mrb[0].mxu0
      %v1263 = vadd.f32 0.0, %v1262
      %v1264 = vpop.f32.mrb[0].mxu0
      %1265 = vmatprep.mubr.f32.mxu0 %v447
      %1266 = vmatmul.mubr.f32.gmra.mrb[0].mxu0 %v446
      %v1267 = vpop.f32.mrb[0].mxu0
      %v1268 = vadd.f32 0.0, %v1267
      %v1269 = vpop.f32.mrb[0].mxu0
      %1270 = vmatprep.mubr.f32.mxu0 %v449
      %1271 = vmatmul.mubr.f32.gmra.mrb[0].mxu0 %v448
      %v1272 = vpop.f32.mrb[0].mxu0
      %v1273 = vadd.f32 0.0, %v1272
      %v1274 = vpop.f32.mrb[0].mxu0
      %1275 = vmatprep.mubr.f32.mxu0 %v451
      %1276 = vmatmul.mubr.f32.gmra.mrb[0].mxu0 %v450
      %v1277 = vpop.f32.mrb[0].mxu0
      %v1278 = vadd.f32 0.0, %v1277
      %v1279 = vpop.f32.mrb[0].mxu0
      %1280 = vmatprep.mubr.f32.mxu0 %v453
      %1281 = vmatmul.mubr.f32.gmra.mrb[0].mxu0 %v452
      %v1282 = vpop.f32.mrb[0].mxu0
      %v1283 = vadd.f32 0.0, %v1282
      %v1284 = vpop.f32.mrb[0].mxu0
      %1285 = vmatprep.mubr.f32.mxu0 %v455
      %1286 = vmatmul.mubr.f32.gmra.mrb[0].mxu0 %v454
      %v1287 = vpop.f32.mrb[0].mxu0
      %v1288 = vadd.f32 0.0, %v1287
      %v1289 = vpop.f32.mrb[0].mxu0
      %1290 = vmatprep.mubr.f32.mxu0 %v457
      %1291 = vmatmul.mubr.f32.gmra.mrb[0].mxu0 %v456
      %v1292 = vpop.f32.mrb[0].mxu0
      %v1293 = vadd.f32 0.0, %v1292
      %v1294 = vpop.f32.mrb[0].mxu0
      %1295 = vmatprep.mubr.f32.mxu0 %v459
      %1296 = vmatmul.mubr.f32.gmra.mrb[0].mxu0 %v458
      %v1297 = vpop.f32.mrb[0].mxu0
      %v1298 = vadd.f32 0.0, %v1297
      %v1299 = vpop.f32.mrb[0].mxu0
      %1300 = vmatprep.mubr.f32.mxu0 %v461
      %1301 = vmatmul.mubr.f32.gmra.mrb[0].mxu0 %v460
      %v1302 = vpop.f32.mrb[0].mxu0
      %v1303 = vadd.f32 0.0, %v1302
      %v1304 = vpop.f32.mrb[0].mxu0
      %1305 = vmatprep.mubr.f32.mxu0 %v463
      %1306 = vmatmul.mubr.f32.gmra.mrb[0].mxu0 %v462
      %v1307 = vpop.f32.mrb[0].mxu0
      %v1308 = vadd.f32 0.0, %v1307
      %v1309 = vpop.f32.mrb[0].mxu0
      %1310 = vmatprep.mubr.f32.mxu0 %v465
      %1311 = vmatmul.mubr.f32.gmra.mrb[0].mxu0 %v464
      %v1312 = vpop.f32.mrb[0].mxu0
      %v1313 = vadd.f32 0.0, %v1312
      %v1314 = vpop.f32.mrb[0].mxu0
      %1315 = vmatprep.mubr.f32.mxu0 %v467
      %1316 = vmatmul.mubr.f32.gmra.mrb[0].mxu0 %v466
      %v1317 = vpop.f32.mrb[0].mxu0
      %v1318 = vadd.f32 0.0, %v1317
      %v1319 = vpop.f32.mrb[0].mxu0
      %1320 = vmatprep.mubr.f32.mxu0 %v469
      %1321 = vmatmul.mubr.f32.gmra.mrb[0].mxu0 %v468
      %v1322 = vpop.f32.mrb[0].mxu0
      %v1323 = vadd.f32 0.0, %v1322
      %v1324 = vpop.f32.mrb[0].mxu0
      %1325 = vmatprep.mubr.f32.mxu0 %v471
      %1326 = vmatmul.mubr.f32.gmra.mrb[0].mxu0 %v470
      %v1327 = vpop.f32.mrb[0].mxu0
      %v1328 = vadd.f32 0.0, %v1327
      %v1329 = vpop.f32.mrb[0].mxu0
      %1330 = vmatprep.mubr.f32.mxu0 %v473
      %1331 = vmatmul.mubr.f32.gmra.mrb[0].mxu0 %v472
      %v1332 = vpop.f32.mrb[0].mxu0
      %v1333 = vadd.f32 0.0, %v1332
      %v1334 = vpop.f32.mrb[0].mxu0
      %1335 = vmatprep.mubr.f32.mxu0 %v475
      %1336 = vmatmul.mubr.f32.gmra.mrb[0].mxu0 %v474
      %v1337 = vpop.f32.mrb[0].mxu0
      %v1338 = vadd.f32 0.0, %v1337
      %v1339 = vpop.f32.mrb[0].mxu0
      %1340 = vmatprep.mubr.f32.mxu0 %v477
      %1341 = vmatmul.mubr.f32.gmra.mrb[0].mxu0 %v476
      %v1342 = vpop.f32.mrb[0].mxu0
      %v1343 = vadd.f32 0.0, %v1342
      %v1344 = vpop.f32.mrb[0].mxu0
      %1345 = vmatprep.mubr.f32.mxu0 %v479
      %1346 = vmatmul.mubr.f32.gmra.mrb[0].mxu0 %v478
      %v1347 = vpop.f32.mrb[0].mxu0
      %v1348 = vadd.f32 0.0, %v1347
      %v1349 = vpop.f32.mrb[0].mxu0
      %1350 = vmatprep.mubr.f32.mxu0 %v481
      %1351 = vmatmul.mubr.f32.gmra.mrb[0].mxu0 %v480
      %v1352 = vpop.f32.mrb[0].mxu0
      %v1353 = vadd.f32 0.0, %v1352
      %v1354 = vpop.f32.mrb[0].mxu0
      %1355 = vdwg.mxu0
      %v1356 = vlaneseq
      %v1357 = vshrl.u32 %v1356, 7
      %v1358 = vsub.s32 1, %v1357
      %v1359 = vrot.slane %v405, %v1358
      %vm1360 = vcmask 261120
      %v1362 = vsel %vm1360, %v1198, 0
      %v1365 = vsel %vm1360, %v1203, 0
      %v1368 = vsel %vm1360, %v1208, 0
      %v1371 = vsel %vm1360, %v1213, 0
      %v1374 = vsel %vm1360, %v1218, 0
      %v1377 = vsel %vm1360, %v1223, 0
      %v1380 = vsel %vm1360, %v1228, 0
      %v1383 = vsel %vm1360, %v1233, 0
      %v1386 = vsel %vm1360, %v1238, 0
      %v1389 = vsel %vm1360, %v1243, 0
      %v1392 = vsel %vm1360, %v1248, 0
      %v1395 = vsel %vm1360, %v1253, 0
      %v1398 = vsel %vm1360, %v1258, 0
      %v1401 = vsel %vm1360, %v1263, 0
      %v1404 = vsel %vm1360, %v1268, 0
      %v1407 = vsel %vm1360, %v1273, 0
      %v1410 = vsel %vm1360, %v1278, 0
      %v1413 = vsel %vm1360, %v1283, 0
      %v1416 = vsel %vm1360, %v1288, 0
      %v1419 = vsel %vm1360, %v1293, 0
      %v1422 = vsel %vm1360, %v1298, 0
      %v1425 = vsel %vm1360, %v1303, 0
      %v1428 = vsel %vm1360, %v1308, 0
      %v1431 = vsel %vm1360, %v1313, 0
      %v1434 = vsel %vm1360, %v1318, 0
      %v1437 = vsel %vm1360, %v1323, 0
      %v1440 = vsel %vm1360, %v1328, 0
      %v1443 = vsel %vm1360, %v1333, 0
      %v1446 = vsel %vm1360, %v1338, 0
      %v1449 = vsel %vm1360, %v1343, 0
      %v1452 = vsel %vm1360, %v1348, 0
      %v1455 = vsel %vm1360, %v1353, 0
      %1457 = vmatprep.subr.mxu0 0.0
      %1458 = vmatpush1.msra.mxu0 %v393
      %1459 = vmatprep.subr.mxu0 0.0
      %1460 = vmatpush1.msra.mxu0 %v394
      %1461 = vmatprep.subr.mxu0 0.0
      %1462 = vmatpush1.msra.mxu0 %v395
      %1463 = vmatprep.subr.mxu0 0.0
      %1464 = vmatpush1.msra.mxu0 %v396
      %1465 = vmatprep.subr.mxu0 0.0
      %1466 = vmatpush1.msra.mxu0 0.0
      %1467 = vmatprep.subr.mxu0 0.0
      %1468 = vmatpush1.msra.mxu0 0.0
      %1469 = vmatprep.subr.mxu0 0.0
      %1470 = vmatpush1.msra.mxu0 0.0
      %1471 = vmatprep.subr.mxu0 0.0
      %1472 = vmatpush1.msra.mxu0 0.0
      %1473 = vmatprep.subr.mxu0 0.0
      %1474 = vmatpush1.msra.mxu0 0.0
      %1475 = vmatprep.subr.mxu0 0.0
      %1476 = vmatpush1.msra.mxu0 0.0
      %1477 = vmatprep.subr.mxu0 0.0
      %1478 = vmatpush1.msra.mxu0 0.0
      %1479 = vmatprep.subr.mxu0 0.0
      %1480 = vmatpush1.msra.mxu0 0.0
      %1481 = vmatprep.subr.mxu0 0.0
      %1482 = vmatpush1.msra.mxu0 0.0
      %1483 = vmatprep.subr.mxu0 0.0
      %1484 = vmatpush1.msra.mxu0 0.0
      %1485 = vmatprep.subr.mxu0 0.0
      %1486 = vmatpush1.msra.mxu0 0.0
      %1487 = vmatprep.subr.mxu0 0.0
      %1488 = vmatpush1.msra.mxu0 0.0
      %1489 = vmatprep.subr.mxu0 0.0
      %1490 = vmatpush1.msra.mxu0 0.0
      %1491 = vmatprep.subr.mxu0 0.0
      %1492 = vmatpush1.msra.mxu0 0.0
      %1493 = vmatprep.subr.mxu0 0.0
      %1494 = vmatpush1.msra.mxu0 0.0
      %1495 = vmatprep.subr.mxu0 0.0
      %1496 = vmatpush1.msra.mxu0 0.0
      %1497 = vmatprep.subr.mxu0 0.0
      %1498 = vmatpush1.msra.mxu0 0.0
      %1499 = vmatprep.subr.mxu0 0.0
      %1500 = vmatpush1.msra.mxu0 0.0
      %1501 = vmatprep.subr.mxu0 0.0
      %1502 = vmatpush1.msra.mxu0 0.0
      %1503 = vmatprep.subr.mxu0 0.0
      %1504 = vmatpush1.msra.mxu0 0.0
      %1505 = vmatprep.subr.mxu0 0.0
      %1506 = vmatpush1.msra.mxu0 0.0
      %1507 = vmatprep.subr.mxu0 0.0
      %1508 = vmatpush1.msra.mxu0 0.0
      %1509 = vmatprep.subr.mxu0 0.0
      %1510 = vmatpush1.msra.mxu0 0.0
      %1511 = vmatprep.subr.mxu0 0.0
      %1512 = vmatpush1.msra.mxu0 0.0
      %1513 = vmatprep.subr.mxu0 0.0
      %1514 = vmatpush1.msra.mxu0 0.0
      %1515 = vmatprep.subr.mxu0 0.0
      %1516 = vmatpush1.msra.mxu0 0.0
      %1517 = vmatprep.subr.mxu0 0.0
      %1518 = vmatpush1.msra.mxu0 0.0
      %1519 = vmatprep.subr.mxu0 0.0
      %1520 = vmatpush1.msra.mxu0 0.0
      %1521 = vmatprep.mubr.f32.mxu0 0.0
      %1522 = vmatmul.mubr.f32.gmra.mrb[0].mxu0 %v1362
      %v1523 = vpop.f32.mrb[0].mxu0
      %v1524 = vadd.f32 %v1359, %v1523
      %v1525 = vpop.f32.mrb[0].mxu0
      %1526 = vmatprep.mubr.f32.mxu0 0.0
      %1527 = vmatmul.mubr.f32.gmra.mrb[0].mxu0 %v1365
      %v1528 = vpop.f32.mrb[0].mxu0
      %v1529 = vadd.f32 %v1359, %v1528
      %v1530 = vpop.f32.mrb[0].mxu0
      %1531 = vmatprep.mubr.f32.mxu0 0.0
      %1532 = vmatmul.mubr.f32.gmra.mrb[0].mxu0 %v1368
      %v1533 = vpop.f32.mrb[0].mxu0
      %v1534 = vadd.f32 %v1359, %v1533
      %v1535 = vpop.f32.mrb[0].mxu0
      %1536 = vmatprep.mubr.f32.mxu0 0.0
      %1537 = vmatmul.mubr.f32.gmra.mrb[0].mxu0 %v1371
      %v1538 = vpop.f32.mrb[0].mxu0
      %v1539 = vadd.f32 %v1359, %v1538
      %v1540 = vpop.f32.mrb[0].mxu0
      %1541 = vmatprep.mubr.f32.mxu0 0.0
      %1542 = vmatmul.mubr.f32.gmra.mrb[0].mxu0 %v1374
      %v1543 = vpop.f32.mrb[0].mxu0
      %v1544 = vadd.f32 %v1359, %v1543
      %v1545 = vpop.f32.mrb[0].mxu0
      %1546 = vmatprep.mubr.f32.mxu0 0.0
      %1547 = vmatmul.mubr.f32.gmra.mrb[0].mxu0 %v1377
      %v1548 = vpop.f32.mrb[0].mxu0
      %v1549 = vadd.f32 %v1359, %v1548
      %v1550 = vpop.f32.mrb[0].mxu0
      %1551 = vmatprep.mubr.f32.mxu0 0.0
      %1552 = vmatmul.mubr.f32.gmra.mrb[0].mxu0 %v1380
      %v1553 = vpop.f32.mrb[0].mxu0
      %v1554 = vadd.f32 %v1359, %v1553
      %v1555 = vpop.f32.mrb[0].mxu0
      %1556 = vmatprep.mubr.f32.mxu0 0.0
      %1557 = vmatmul.mubr.f32.gmra.mrb[0].mxu0 %v1383
      %v1558 = vpop.f32.mrb[0].mxu0
      %v1559 = vadd.f32 %v1359, %v1558
      %v1560 = vpop.f32.mrb[0].mxu0
      %1561 = vmatprep.mubr.f32.mxu0 0.0
      %1562 = vmatmul.mubr.f32.gmra.mrb[0].mxu0 %v1386
      %v1563 = vpop.f32.mrb[0].mxu0
      %v1564 = vadd.f32 %v1359, %v1563
      %v1565 = vpop.f32.mrb[0].mxu0
      %1566 = vmatprep.mubr.f32.mxu0 0.0
      %1567 = vmatmul.mubr.f32.gmra.mrb[0].mxu0 %v1389
      %v1568 = vpop.f32.mrb[0].mxu0
      %v1569 = vadd.f32 %v1359, %v1568
      %v1570 = vpop.f32.mrb[0].mxu0
      %1571 = vmatprep.mubr.f32.mxu0 0.0
      %1572 = vmatmul.mubr.f32.gmra.mrb[0].mxu0 %v1392
      %v1573 = vpop.f32.mrb[0].mxu0
      %v1574 = vadd.f32 %v1359, %v1573
      %v1575 = vpop.f32.mrb[0].mxu0
      %1576 = vmatprep.mubr.f32.mxu0 0.0
      %1577 = vmatmul.mubr.f32.gmra.mrb[0].mxu0 %v1395
      %v1578 = vpop.f32.mrb[0].mxu0
      %v1579 = vadd.f32 %v1359, %v1578
      %v1580 = vpop.f32.mrb[0].mxu0
      %1581 = vmatprep.mubr.f32.mxu0 0.0
      %1582 = vmatmul.mubr.f32.gmra.mrb[0].mxu0 %v1398
      %v1583 = vpop.f32.mrb[0].mxu0
      %v1584 = vadd.f32 %v1359, %v1583
      %v1585 = vpop.f32.mrb[0].mxu0
      %1586 = vmatprep.mubr.f32.mxu0 0.0
      %1587 = vmatmul.mubr.f32.gmra.mrb[0].mxu0 %v1401
      %v1588 = vpop.f32.mrb[0].mxu0
      %v1589 = vadd.f32 %v1359, %v1588
      %v1590 = vpop.f32.mrb[0].mxu0
      %1591 = vmatprep.mubr.f32.mxu0 0.0
      %1592 = vmatmul.mubr.f32.gmra.mrb[0].mxu0 %v1404
      %v1593 = vpop.f32.mrb[0].mxu0
      %v1594 = vadd.f32 %v1359, %v1593
      %v1595 = vpop.f32.mrb[0].mxu0
      %1596 = vmatprep.mubr.f32.mxu0 0.0
      %1597 = vmatmul.mubr.f32.gmra.mrb[0].mxu0 %v1407
      %v1598 = vpop.f32.mrb[0].mxu0
      %v1599 = vadd.f32 %v1359, %v1598
      %v1600 = vpop.f32.mrb[0].mxu0
      %1601 = vmatprep.mubr.f32.mxu0 0.0
      %1602 = vmatmul.mubr.f32.gmra.mrb[0].mxu0 %v1410
      %v1603 = vpop.f32.mrb[0].mxu0
      %v1604 = vadd.f32 %v1359, %v1603
      %v1605 = vpop.f32.mrb[0].mxu0
      %1606 = vmatprep.mubr.f32.mxu0 0.0
      %1607 = vmatmul.mubr.f32.gmra.mrb[0].mxu0 %v1413
      %v1608 = vpop.f32.mrb[0].mxu0
      %v1609 = vadd.f32 %v1359, %v1608
      %v1610 = vpop.f32.mrb[0].mxu0
      %1611 = vmatprep.mubr.f32.mxu0 0.0
      %1612 = vmatmul.mubr.f32.gmra.mrb[0].mxu0 %v1416
      %v1613 = vpop.f32.mrb[0].mxu0
      %v1614 = vadd.f32 %v1359, %v1613
      %v1615 = vpop.f32.mrb[0].mxu0
      %1616 = vmatprep.mubr.f32.mxu0 0.0
      %1617 = vmatmul.mubr.f32.gmra.mrb[0].mxu0 %v1419
      %v1618 = vpop.f32.mrb[0].mxu0
      %v1619 = vadd.f32 %v1359, %v1618
      %v1620 = vpop.f32.mrb[0].mxu0
      %1621 = vmatprep.mubr.f32.mxu0 0.0
      %1622 = vmatmul.mubr.f32.gmra.mrb[0].mxu0 %v1422
      %v1623 = vpop.f32.mrb[0].mxu0
      %v1624 = vadd.f32 %v1359, %v1623
      %v1625 = vpop.f32.mrb[0].mxu0
      %1626 = vmatprep.mubr.f32.mxu0 0.0
      %1627 = vmatmul.mubr.f32.gmra.mrb[0].mxu0 %v1425
      %v1628 = vpop.f32.mrb[0].mxu0
      %v1629 = vadd.f32 %v1359, %v1628
      %v1630 = vpop.f32.mrb[0].mxu0
      %1631 = vmatprep.mubr.f32.mxu0 0.0
      %1632 = vmatmul.mubr.f32.gmra.mrb[0].mxu0 %v1428
      %v1633 = vpop.f32.mrb[0].mxu0
      %v1634 = vadd.f32 %v1359, %v1633
      %v1635 = vpop.f32.mrb[0].mxu0
      %1636 = vmatprep.mubr.f32.mxu0 0.0
      %1637 = vmatmul.mubr.f32.gmra.mrb[0].mxu0 %v1431
      %v1638 = vpop.f32.mrb[0].mxu0
      %v1639 = vadd.f32 %v1359, %v1638
      %v1640 = vpop.f32.mrb[0].mxu0
      %1641 = vmatprep.mubr.f32.mxu0 0.0
      %1642 = vmatmul.mubr.f32.gmra.mrb[0].mxu0 %v1434
      %v1643 = vpop.f32.mrb[0].mxu0
      %v1644 = vadd.f32 %v1359, %v1643
      %v1645 = vpop.f32.mrb[0].mxu0
      %1646 = vmatprep.mubr.f32.mxu0 0.0
      %1647 = vmatmul.mubr.f32.gmra.mrb[0].mxu0 %v1437
      %v1648 = vpop.f32.mrb[0].mxu0
      %v1649 = vadd.f32 %v1359, %v1648
      %v1650 = vpop.f32.mrb[0].mxu0
      %1651 = vmatprep.mubr.f32.mxu0 0.0
      %1652 = vmatmul.mubr.f32.gmra.mrb[0].mxu0 %v1440
      %v1653 = vpop.f32.mrb[0].mxu0
      %v1654 = vadd.f32 %v1359, %v1653
      %v1655 = vpop.f32.mrb[0].mxu0
      %1656 = vmatprep.mubr.f32.mxu0 0.0
      %1657 = vmatmul.mubr.f32.gmra.mrb[0].mxu0 %v1443
      %v1658 = vpop.f32.mrb[0].mxu0
      %v1659 = vadd.f32 %v1359, %v1658
      %v1660 = vpop.f32.mrb[0].mxu0
      %1661 = vmatprep.mubr.f32.mxu0 0.0
      %1662 = vmatmul.mubr.f32.gmra.mrb[0].mxu0 %v1446
      %v1663 = vpop.f32.mrb[0].mxu0
      %v1664 = vadd.f32 %v1359, %v1663
      %v1665 = vpop.f32.mrb[0].mxu0
      %1666 = vmatprep.mubr.f32.mxu0 0.0
      %1667 = vmatmul.mubr.f32.gmra.mrb[0].mxu0 %v1449
      %v1668 = vpop.f32.mrb[0].mxu0
      %v1669 = vadd.f32 %v1359, %v1668
      %v1670 = vpop.f32.mrb[0].mxu0
      %1671 = vmatprep.mubr.f32.mxu0 0.0
      %1672 = vmatmul.mubr.f32.gmra.mrb[0].mxu0 %v1452
      %v1673 = vpop.f32.mrb[0].mxu0
      %v1674 = vadd.f32 %v1359, %v1673
      %v1675 = vpop.f32.mrb[0].mxu0
      %1676 = vmatprep.mubr.f32.mxu0 0.0
      %1677 = vmatmul.mubr.f32.gmra.mrb[0].mxu0 %v1455
      %v1678 = vpop.f32.mrb[0].mxu0
      %v1679 = vadd.f32 %v1359, %v1678
      %v1680 = vpop.f32.mrb[0].mxu0
      %1681 = vdwg.mxu0
      %v1682 = vmax.f32 %v1524, 0.0
      %v1683 = vmax.f32 %v1529, 0.0
      %v1684 = vmax.f32 %v1534, 0.0
      %v1685 = vmax.f32 %v1539, 0.0
      %v1686 = vmax.f32 %v1544, 0.0
      %v1687 = vmax.f32 %v1549, 0.0
      %v1688 = vmax.f32 %v1554, 0.0
      %v1689 = vmax.f32 %v1559, 0.0
      %v1690 = vmax.f32 %v1564, 0.0
      %v1691 = vmax.f32 %v1569, 0.0
      %v1692 = vmax.f32 %v1574, 0.0
      %v1693 = vmax.f32 %v1579, 0.0
      %v1694 = vmax.f32 %v1584, 0.0
      %v1695 = vmax.f32 %v1589, 0.0
      %v1696 = vmax.f32 %v1594, 0.0
      %v1697 = vmax.f32 %v1599, 0.0
      %v1698 = vmax.f32 %v1604, 0.0
      %v1699 = vmax.f32 %v1609, 0.0
      %v1700 = vmax.f32 %v1614, 0.0
      %v1701 = vmax.f32 %v1619, 0.0
      %v1702 = vmax.f32 %v1624, 0.0
      %v1703 = vmax.f32 %v1629, 0.0
      %v1704 = vmax.f32 %v1634, 0.0
      %v1705 = vmax.f32 %v1639, 0.0
      %v1706 = vmax.f32 %v1644, 0.0
      %v1707 = vmax.f32 %v1649, 0.0
      %v1708 = vmax.f32 %v1654, 0.0
      %v1709 = vmax.f32 %v1659, 0.0
      %v1710 = vmax.f32 %v1664, 0.0
      %v1711 = vmax.f32 %v1669, 0.0
      %v1712 = vmax.f32 %v1674, 0.0
      %v1713 = vmax.f32 %v1679, 0.0
      %1714 = vmatprep.subr.mxu0 0.0
      %1715 = vmatpush1.msra.mxu0 %v1682
      %1716 = vmatprep.subr.mxu0 0.0
      %1717 = vmatpush1.msra.mxu0 %v1683
      %1718 = vmatprep.subr.mxu0 0.0
      %1719 = vmatpush1.msra.mxu0 %v1684
      %1720 = vmatprep.subr.mxu0 0.0
      %1721 = vmatpush1.msra.mxu0 %v1685
      %1722 = vmatprep.subr.mxu0 0.0
      %1723 = vmatpush1.msra.mxu0 %v1686
      %1724 = vmatprep.subr.mxu0 0.0
      %1725 = vmatpush1.msra.mxu0 %v1687
      %1726 = vmatprep.subr.mxu0 0.0
      %1727 = vmatpush1.msra.mxu0 %v1688
      %1728 = vmatprep.subr.mxu0 0.0
      %1729 = vmatpush1.msra.mxu0 %v1689
      %1730 = vmatprep.subr.mxu0 0.0
      %1731 = vmatpush1.msra.mxu0 %v1690
      %1732 = vmatprep.subr.mxu0 0.0
      %1733 = vmatpush1.msra.mxu0 %v1691
      %1734 = vmatprep.subr.mxu0 0.0
      %1735 = vmatpush1.msra.mxu0 %v1692
      %1736 = vmatprep.subr.mxu0 0.0
      %1737 = vmatpush1.msra.mxu0 %v1693
      %1738 = vmatprep.subr.mxu0 0.0
      %1739 = vmatpush1.msra.mxu0 %v1694
      %1740 = vmatprep.subr.mxu0 0.0
      %1741 = vmatpush1.msra.mxu0 %v1695
      %1742 = vmatprep.subr.mxu0 0.0
      %1743 = vmatpush1.msra.mxu0 %v1696
      %1744 = vmatprep.subr.mxu0 0.0
      %1745 = vmatpush1.msra.mxu0 %v1697
      %1746 = vmatprep.subr.mxu0 0.0
      %1747 = vmatpush1.msra.mxu0 %v1698
      %1748 = vmatprep.subr.mxu0 0.0
      %1749 = vmatpush1.msra.mxu0 %v1699
      %1750 = vmatprep.subr.mxu0 0.0
      %1751 = vmatpush1.msra.mxu0 %v1700
      %1752 = vmatprep.subr.mxu0 0.0
      %1753 = vmatpush1.msra.mxu0 %v1701
      %1754 = vmatprep.subr.mxu0 0.0
      %1755 = vmatpush1.msra.mxu0 %v1702
      %1756 = vmatprep.subr.mxu0 0.0
      %1757 = vmatpush1.msra.mxu0 %v1703
      %1758 = vmatprep.subr.mxu0 0.0
      %1759 = vmatpush1.msra.mxu0 %v1704
      %1760 = vmatprep.subr.mxu0 0.0
      %1761 = vmatpush1.msra.mxu0 %v1705
      %1762 = vmatprep.subr.mxu0 0.0
      %1763 = vmatpush1.msra.mxu0 %v1706
      %1764 = vmatprep.subr.mxu0 0.0
      %1765 = vmatpush1.msra.mxu0 %v1707
      %1766 = vmatprep.subr.mxu0 0.0
      %1767 = vmatpush1.msra.mxu0 %v1708
      %1768 = vmatprep.subr.mxu0 0.0
      %1769 = vmatpush1.msra.mxu0 %v1709
      %1770 = vmatprep.subr.mxu0 0.0
      %1771 = vmatpush1.msra.mxu0 %v1710
      %1772 = vmatprep.subr.mxu0 0.0
      %1773 = vmatpush1.msra.mxu0 %v1711
      %1774 = vmatprep.subr.mxu0 0.0
      %1775 = vmatpush1.msra.mxu0 %v1712
      %1776 = vmatprep.subr.mxu0 0.0
      %1777 = vmatpush1.msra.mxu0 %v1713
      %1778 = vmatprep.mubr.f32.mxu0 %v419
      %1779 = vmatmul.mubr.f32.gmra.mrb[0].mxu0 %v418
      %v1780 = vpop.f32.mrb[0].mxu0
      %v1781 = vadd.f32 0.0, %v1780
      %v1782 = vpop.f32.mrb[0].mxu0
      %1783 = vmatprep.mubr.f32.mxu0 %v421
      %1784 = vmatmul.mubr.f32.gmra.mrb[0].mxu0 %v420
      %v1785 = vpop.f32.mrb[0].mxu0
      %v1786 = vadd.f32 0.0, %v1785
      %v1787 = vpop.f32.mrb[0].mxu0
      %1788 = vmatprep.mubr.f32.mxu0 %v423
      %1789 = vmatmul.mubr.f32.gmra.mrb[0].mxu0 %v422
      %v1790 = vpop.f32.mrb[0].mxu0
      %v1791 = vadd.f32 0.0, %v1790
      %v1792 = vpop.f32.mrb[0].mxu0
      %1793 = vmatprep.mubr.f32.mxu0 %v425
      %1794 = vmatmul.mubr.f32.gmra.mrb[0].mxu0 %v424
      %v1795 = vpop.f32.mrb[0].mxu0
      %v1796 = vadd.f32 0.0, %v1795
      %v1797 = vpop.f32.mrb[0].mxu0
      %1798 = vmatprep.mubr.f32.mxu0 %v427
      %1799 = vmatmul.mubr.f32.gmra.mrb[0].mxu0 %v426
      %v1800 = vpop.f32.mrb[0].mxu0
      %v1801 = vadd.f32 0.0, %v1800
      %v1802 = vpop.f32.mrb[0].mxu0
      %1803 = vmatprep.mubr.f32.mxu0 %v429
      %1804 = vmatmul.mubr.f32.gmra.mrb[0].mxu0 %v428
      %v1805 = vpop.f32.mrb[0].mxu0
      %v1806 = vadd.f32 0.0, %v1805
      %v1807 = vpop.f32.mrb[0].mxu0
      %1808 = vmatprep.mubr.f32.mxu0 %v431
      %1809 = vmatmul.mubr.f32.gmra.mrb[0].mxu0 %v430
      %v1810 = vpop.f32.mrb[0].mxu0
      %v1811 = vadd.f32 0.0, %v1810
      %v1812 = vpop.f32.mrb[0].mxu0
      %1813 = vmatprep.mubr.f32.mxu0 %v433
      %1814 = vmatmul.mubr.f32.gmra.mrb[0].mxu0 %v432
      %v1815 = vpop.f32.mrb[0].mxu0
      %v1816 = vadd.f32 0.0, %v1815
      %v1817 = vpop.f32.mrb[0].mxu0
      %1818 = vmatprep.mubr.f32.mxu0 %v435
      %1819 = vmatmul.mubr.f32.gmra.mrb[0].mxu0 %v434
      %v1820 = vpop.f32.mrb[0].mxu0
      %v1821 = vadd.f32 0.0, %v1820
      %v1822 = vpop.f32.mrb[0].mxu0
      %1823 = vmatprep.mubr.f32.mxu0 %v437
      %1824 = vmatmul.mubr.f32.gmra.mrb[0].mxu0 %v436
      %v1825 = vpop.f32.mrb[0].mxu0
      %v1826 = vadd.f32 0.0, %v1825
      %v1827 = vpop.f32.mrb[0].mxu0
      %1828 = vmatprep.mubr.f32.mxu0 %v439
      %1829 = vmatmul.mubr.f32.gmra.mrb[0].mxu0 %v438
      %v1830 = vpop.f32.mrb[0].mxu0
      %v1831 = vadd.f32 0.0, %v1830
      %v1832 = vpop.f32.mrb[0].mxu0
      %1833 = vmatprep.mubr.f32.mxu0 %v441
      %1834 = vmatmul.mubr.f32.gmra.mrb[0].mxu0 %v440
      %v1835 = vpop.f32.mrb[0].mxu0
      %v1836 = vadd.f32 0.0, %v1835
      %v1837 = vpop.f32.mrb[0].mxu0
      %1838 = vmatprep.mubr.f32.mxu0 %v443
      %1839 = vmatmul.mubr.f32.gmra.mrb[0].mxu0 %v442
      %v1840 = vpop.f32.mrb[0].mxu0
      %v1841 = vadd.f32 0.0, %v1840
      %v1842 = vpop.f32.mrb[0].mxu0
      %1843 = vmatprep.mubr.f32.mxu0 %v445
      %1844 = vmatmul.mubr.f32.gmra.mrb[0].mxu0 %v444
      %v1845 = vpop.f32.mrb[0].mxu0
      %v1846 = vadd.f32 0.0, %v1845
      %v1847 = vpop.f32.mrb[0].mxu0
      %1848 = vmatprep.mubr.f32.mxu0 %v447
      %1849 = vmatmul.mubr.f32.gmra.mrb[0].mxu0 %v446
      %v1850 = vpop.f32.mrb[0].mxu0
      %v1851 = vadd.f32 0.0, %v1850
      %v1852 = vpop.f32.mrb[0].mxu0
      %1853 = vmatprep.mubr.f32.mxu0 %v449
      %1854 = vmatmul.mubr.f32.gmra.mrb[0].mxu0 %v448
      %v1855 = vpop.f32.mrb[0].mxu0
      %v1856 = vadd.f32 0.0, %v1855
      %v1857 = vpop.f32.mrb[0].mxu0
      %1858 = vmatprep.mubr.f32.mxu0 %v451
      %1859 = vmatmul.mubr.f32.gmra.mrb[0].mxu0 %v450
      %v1860 = vpop.f32.mrb[0].mxu0
      %v1861 = vadd.f32 0.0, %v1860
      %v1862 = vpop.f32.mrb[0].mxu0
      %1863 = vmatprep.mubr.f32.mxu0 %v453
      %1864 = vmatmul.mubr.f32.gmra.mrb[0].mxu0 %v452
      %v1865 = vpop.f32.mrb[0].mxu0
      %v1866 = vadd.f32 0.0, %v1865
      %v1867 = vpop.f32.mrb[0].mxu0
      %1868 = vmatprep.mubr.f32.mxu0 %v455
      %1869 = vmatmul.mubr.f32.gmra.mrb[0].mxu0 %v454
      %v1870 = vpop.f32.mrb[0].mxu0
      %v1871 = vadd.f32 0.0, %v1870
      %v1872 = vpop.f32.mrb[0].mxu0
      %1873 = vmatprep.mubr.f32.mxu0 %v457
      %1874 = vmatmul.mubr.f32.gmra.mrb[0].mxu0 %v456
      %v1875 = vpop.f32.mrb[0].mxu0
      %v1876 = vadd.f32 0.0, %v1875
      %v1877 = vpop.f32.mrb[0].mxu0
      %1878 = vmatprep.mubr.f32.mxu0 %v459
      %1879 = vmatmul.mubr.f32.gmra.mrb[0].mxu0 %v458
      %v1880 = vpop.f32.mrb[0].mxu0
      %v1881 = vadd.f32 0.0, %v1880
      %v1882 = vpop.f32.mrb[0].mxu0
      %1883 = vmatprep.mubr.f32.mxu0 %v461
      %1884 = vmatmul.mubr.f32.gmra.mrb[0].mxu0 %v460
      %v1885 = vpop.f32.mrb[0].mxu0
      %v1886 = vadd.f32 0.0, %v1885
      %v1887 = vpop.f32.mrb[0].mxu0
      %1888 = vmatprep.mubr.f32.mxu0 %v463
      %1889 = vmatmul.mubr.f32.gmra.mrb[0].mxu0 %v462
      %v1890 = vpop.f32.mrb[0].mxu0
      %v1891 = vadd.f32 0.0, %v1890
      %v1892 = vpop.f32.mrb[0].mxu0
      %1893 = vmatprep.mubr.f32.mxu0 %v465
      %1894 = vmatmul.mubr.f32.gmra.mrb[0].mxu0 %v464
      %v1895 = vpop.f32.mrb[0].mxu0
      %v1896 = vadd.f32 0.0, %v1895
      %v1897 = vpop.f32.mrb[0].mxu0
      %1898 = vmatprep.mubr.f32.mxu0 %v467
      %1899 = vmatmul.mubr.f32.gmra.mrb[0].mxu0 %v466
      %v1900 = vpop.f32.mrb[0].mxu0
      %v1901 = vadd.f32 0.0, %v1900
      %v1902 = vpop.f32.mrb[0].mxu0
      %1903 = vmatprep.mubr.f32.mxu0 %v469
      %1904 = vmatmul.mubr.f32.gmra.mrb[0].mxu0 %v468
      %v1905 = vpop.f32.mrb[0].mxu0
      %v1906 = vadd.f32 0.0, %v1905
      %v1907 = vpop.f32.mrb[0].mxu0
      %1908 = vmatprep.mubr.f32.mxu0 %v471
      %1909 = vmatmul.mubr.f32.gmra.mrb[0].mxu0 %v470
      %v1910 = vpop.f32.mrb[0].mxu0
      %v1911 = vadd.f32 0.0, %v1910
      %v1912 = vpop.f32.mrb[0].mxu0
      %1913 = vmatprep.mubr.f32.mxu0 %v473
      %1914 = vmatmul.mubr.f32.gmra.mrb[0].mxu0 %v472
      %v1915 = vpop.f32.mrb[0].mxu0
      %v1916 = vadd.f32 0.0, %v1915
      %v1917 = vpop.f32.mrb[0].mxu0
      %1918 = vmatprep.mubr.f32.mxu0 %v475
      %1919 = vmatmul.mubr.f32.gmra.mrb[0].mxu0 %v474
      %v1920 = vpop.f32.mrb[0].mxu0
      %v1921 = vadd.f32 0.0, %v1920
      %v1922 = vpop.f32.mrb[0].mxu0
      %1923 = vmatprep.mubr.f32.mxu0 %v477
      %1924 = vmatmul.mubr.f32.gmra.mrb[0].mxu0 %v476
      %v1925 = vpop.f32.mrb[0].mxu0
      %v1926 = vadd.f32 0.0, %v1925
      %v1927 = vpop.f32.mrb[0].mxu0
      %1928 = vmatprep.mubr.f32.mxu0 %v479
      %1929 = vmatmul.mubr.f32.gmra.mrb[0].mxu0 %v478
      %v1930 = vpop.f32.mrb[0].mxu0
      %v1931 = vadd.f32 0.0, %v1930
      %v1932 = vpop.f32.mrb[0].mxu0
      %1933 = vmatprep.mubr.f32.mxu0 %v481
      %1934 = vmatmul.mubr.f32.gmra.mrb[0].mxu0 %v480
      %v1935 = vpop.f32.mrb[0].mxu0
      %v1936 = vadd.f32 0.0, %v1935
      %v1937 = vpop.f32.mrb[0].mxu0
      %1938 = vdwg.mxu0
      %v1939 = vlaneseq
      %v1940 = vshrl.u32 %v1939, 7
      %v1941 = vsub.s32 2, %v1940
      %v1942 = vrot.slane %v405, %v1941
      %v1944 = vsel %vm1360, %v1781, 0
      %v1947 = vsel %vm1360, %v1786, 0
      %v1950 = vsel %vm1360, %v1791, 0
      %v1953 = vsel %vm1360, %v1796, 0
      %v1956 = vsel %vm1360, %v1801, 0
      %v1959 = vsel %vm1360, %v1806, 0
      %v1962 = vsel %vm1360, %v1811, 0
      %v1965 = vsel %vm1360, %v1816, 0
      %v1968 = vsel %vm1360, %v1821, 0
      %v1971 = vsel %vm1360, %v1826, 0
      %v1974 = vsel %vm1360, %v1831, 0
      %v1977 = vsel %vm1360, %v1836, 0
      %v1980 = vsel %vm1360, %v1841, 0
      %v1983 = vsel %vm1360, %v1846, 0
      %v1986 = vsel %vm1360, %v1851, 0
      %v1989 = vsel %vm1360, %v1856, 0
      %v1992 = vsel %vm1360, %v1861, 0
      %v1995 = vsel %vm1360, %v1866, 0
      %v1998 = vsel %vm1360, %v1871, 0
      %v2001 = vsel %vm1360, %v1876, 0
      %v2004 = vsel %vm1360, %v1881, 0
      %v2007 = vsel %vm1360, %v1886, 0
      %v2010 = vsel %vm1360, %v1891, 0
      %v2013 = vsel %vm1360, %v1896, 0
      %v2016 = vsel %vm1360, %v1901, 0
      %v2019 = vsel %vm1360, %v1906, 0
      %v2022 = vsel %vm1360, %v1911, 0
      %v2025 = vsel %vm1360, %v1916, 0
      %v2028 = vsel %vm1360, %v1921, 0
      %v2031 = vsel %vm1360, %v1926, 0
      %v2034 = vsel %vm1360, %v1931, 0
      %v2037 = vsel %vm1360, %v1936, 0
      %2039 = vmatprep.subr.mxu0 0.0
      %2040 = vmatpush1.msra.mxu0 %v397
      %2041 = vmatprep.subr.mxu0 0.0
      %2042 = vmatpush1.msra.mxu0 %v398
      %2043 = vmatprep.subr.mxu0 0.0
      %2044 = vmatpush1.msra.mxu0 %v399
      %2045 = vmatprep.subr.mxu0 0.0
      %2046 = vmatpush1.msra.mxu0 %v400
      %2047 = vmatprep.subr.mxu0 0.0
      %2048 = vmatpush1.msra.mxu0 0.0
      %2049 = vmatprep.subr.mxu0 0.0
      %2050 = vmatpush1.msra.mxu0 0.0
      %2051 = vmatprep.subr.mxu0 0.0
      %2052 = vmatpush1.msra.mxu0 0.0
      %2053 = vmatprep.subr.mxu0 0.0
      %2054 = vmatpush1.msra.mxu0 0.0
      %2055 = vmatprep.subr.mxu0 0.0
      %2056 = vmatpush1.msra.mxu0 0.0
      %2057 = vmatprep.subr.mxu0 0.0
      %2058 = vmatpush1.msra.mxu0 0.0
      %2059 = vmatprep.subr.mxu0 0.0
      %2060 = vmatpush1.msra.mxu0 0.0
      %2061 = vmatprep.subr.mxu0 0.0
      %2062 = vmatpush1.msra.mxu0 0.0
      %2063 = vmatprep.subr.mxu0 0.0
      %2064 = vmatpush1.msra.mxu0 0.0
      %2065 = vmatprep.subr.mxu0 0.0
      %2066 = vmatpush1.msra.mxu0 0.0
      %2067 = vmatprep.subr.mxu0 0.0
      %2068 = vmatpush1.msra.mxu0 0.0
      %2069 = vmatprep.subr.mxu0 0.0
      %2070 = vmatpush1.msra.mxu0 0.0
      %2071 = vmatprep.subr.mxu0 0.0
      %2072 = vmatpush1.msra.mxu0 0.0
      %2073 = vmatprep.subr.mxu0 0.0
      %2074 = vmatpush1.msra.mxu0 0.0
      %2075 = vmatprep.subr.mxu0 0.0
      %2076 = vmatpush1.msra.mxu0 0.0
      %2077 = vmatprep.subr.mxu0 0.0
      %2078 = vmatpush1.msra.mxu0 0.0
      %2079 = vmatprep.subr.mxu0 0.0
      %2080 = vmatpush1.msra.mxu0 0.0
      %2081 = vmatprep.subr.mxu0 0.0
      %2082 = vmatpush1.msra.mxu0 0.0
      %2083 = vmatprep.subr.mxu0 0.0
      %2084 = vmatpush1.msra.mxu0 0.0
      %2085 = vmatprep.subr.mxu0 0.0
      %2086 = vmatpush1.msra.mxu0 0.0
      %2087 = vmatprep.subr.mxu0 0.0
      %2088 = vmatpush1.msra.mxu0 0.0
      %2089 = vmatprep.subr.mxu0 0.0
      %2090 = vmatpush1.msra.mxu0 0.0
      %2091 = vmatprep.subr.mxu0 0.0
      %2092 = vmatpush1.msra.mxu0 0.0
      %2093 = vmatprep.subr.mxu0 0.0
      %2094 = vmatpush1.msra.mxu0 0.0
      %2095 = vmatprep.subr.mxu0 0.0
      %2096 = vmatpush1.msra.mxu0 0.0
      %2097 = vmatprep.subr.mxu0 0.0
      %2098 = vmatpush1.msra.mxu0 0.0
      %2099 = vmatprep.subr.mxu0 0.0
      %2100 = vmatpush1.msra.mxu0 0.0
      %2101 = vmatprep.subr.mxu0 0.0
      %2102 = vmatpush1.msra.mxu0 0.0
      %2103 = vmatprep.mubr.f32.mxu0 0.0
      %2104 = vmatmul.mubr.f32.gmra.mrb[0].mxu0 %v1944
      %v2105 = vpop.f32.mrb[0].mxu0
      %v2106 = vadd.f32 %v1942, %v2105
      %v2107 = vpop.f32.mrb[0].mxu0
      %2108 = vmatprep.mubr.f32.mxu0 0.0
      %2109 = vmatmul.mubr.f32.gmra.mrb[0].mxu0 %v1947
      %v2110 = vpop.f32.mrb[0].mxu0
      %v2111 = vadd.f32 %v1942, %v2110
      %v2112 = vpop.f32.mrb[0].mxu0
      %2113 = vmatprep.mubr.f32.mxu0 0.0
      %2114 = vmatmul.mubr.f32.gmra.mrb[0].mxu0 %v1950
      %v2115 = vpop.f32.mrb[0].mxu0
      %v2116 = vadd.f32 %v1942, %v2115
      %v2117 = vpop.f32.mrb[0].mxu0
      %2118 = vmatprep.mubr.f32.mxu0 0.0
      %2119 = vmatmul.mubr.f32.gmra.mrb[0].mxu0 %v1953
      %v2120 = vpop.f32.mrb[0].mxu0
      %v2121 = vadd.f32 %v1942, %v2120
      %v2122 = vpop.f32.mrb[0].mxu0
      %2123 = vmatprep.mubr.f32.mxu0 0.0
      %2124 = vmatmul.mubr.f32.gmra.mrb[0].mxu0 %v1956
      %v2125 = vpop.f32.mrb[0].mxu0
      %v2126 = vadd.f32 %v1942, %v2125
      %v2127 = vpop.f32.mrb[0].mxu0
      %2128 = vmatprep.mubr.f32.mxu0 0.0
      %2129 = vmatmul.mubr.f32.gmra.mrb[0].mxu0 %v1959
      %v2130 = vpop.f32.mrb[0].mxu0
      %v2131 = vadd.f32 %v1942, %v2130
      %v2132 = vpop.f32.mrb[0].mxu0
      %2133 = vmatprep.mubr.f32.mxu0 0.0
      %2134 = vmatmul.mubr.f32.gmra.mrb[0].mxu0 %v1962
      %v2135 = vpop.f32.mrb[0].mxu0
      %v2136 = vadd.f32 %v1942, %v2135
      %v2137 = vpop.f32.mrb[0].mxu0
      %2138 = vmatprep.mubr.f32.mxu0 0.0
      %2139 = vmatmul.mubr.f32.gmra.mrb[0].mxu0 %v1965
      %v2140 = vpop.f32.mrb[0].mxu0
      %v2141 = vadd.f32 %v1942, %v2140
      %v2142 = vpop.f32.mrb[0].mxu0
      %2143 = vmatprep.mubr.f32.mxu0 0.0
      %2144 = vmatmul.mubr.f32.gmra.mrb[0].mxu0 %v1968
      %v2145 = vpop.f32.mrb[0].mxu0
      %v2146 = vadd.f32 %v1942, %v2145
      %v2147 = vpop.f32.mrb[0].mxu0
      %2148 = vmatprep.mubr.f32.mxu0 0.0
      %2149 = vmatmul.mubr.f32.gmra.mrb[0].mxu0 %v1971
      %v2150 = vpop.f32.mrb[0].mxu0
      %v2151 = vadd.f32 %v1942, %v2150
      %v2152 = vpop.f32.mrb[0].mxu0
      %2153 = vmatprep.mubr.f32.mxu0 0.0
      %2154 = vmatmul.mubr.f32.gmra.mrb[0].mxu0 %v1974
      %v2155 = vpop.f32.mrb[0].mxu0
      %v2156 = vadd.f32 %v1942, %v2155
      %v2157 = vpop.f32.mrb[0].mxu0
      %2158 = vmatprep.mubr.f32.mxu0 0.0
      %2159 = vmatmul.mubr.f32.gmra.mrb[0].mxu0 %v1977
      %v2160 = vpop.f32.mrb[0].mxu0
      %v2161 = vadd.f32 %v1942, %v2160
      %v2162 = vpop.f32.mrb[0].mxu0
      %2163 = vmatprep.mubr.f32.mxu0 0.0
      %2164 = vmatmul.mubr.f32.gmra.mrb[0].mxu0 %v1980
      %v2165 = vpop.f32.mrb[0].mxu0
      %v2166 = vadd.f32 %v1942, %v2165
      %v2167 = vpop.f32.mrb[0].mxu0
      %2168 = vmatprep.mubr.f32.mxu0 0.0
      %2169 = vmatmul.mubr.f32.gmra.mrb[0].mxu0 %v1983
      %v2170 = vpop.f32.mrb[0].mxu0
      %v2171 = vadd.f32 %v1942, %v2170
      %v2172 = vpop.f32.mrb[0].mxu0
      %2173 = vmatprep.mubr.f32.mxu0 0.0
      %2174 = vmatmul.mubr.f32.gmra.mrb[0].mxu0 %v1986
      %v2175 = vpop.f32.mrb[0].mxu0
      %v2176 = vadd.f32 %v1942, %v2175
      %v2177 = vpop.f32.mrb[0].mxu0
      %2178 = vmatprep.mubr.f32.mxu0 0.0
      %2179 = vmatmul.mubr.f32.gmra.mrb[0].mxu0 %v1989
      %v2180 = vpop.f32.mrb[0].mxu0
      %v2181 = vadd.f32 %v1942, %v2180
      %v2182 = vpop.f32.mrb[0].mxu0
      %2183 = vmatprep.mubr.f32.mxu0 0.0
      %2184 = vmatmul.mubr.f32.gmra.mrb[0].mxu0 %v1992
      %v2185 = vpop.f32.mrb[0].mxu0
      %v2186 = vadd.f32 %v1942, %v2185
      %v2187 = vpop.f32.mrb[0].mxu0
      %2188 = vmatprep.mubr.f32.mxu0 0.0
      %2189 = vmatmul.mubr.f32.gmra.mrb[0].mxu0 %v1995
      %v2190 = vpop.f32.mrb[0].mxu0
      %v2191 = vadd.f32 %v1942, %v2190
      %v2192 = vpop.f32.mrb[0].mxu0
      %2193 = vmatprep.mubr.f32.mxu0 0.0
      %2194 = vmatmul.mubr.f32.gmra.mrb[0].mxu0 %v1998
      %v2195 = vpop.f32.mrb[0].mxu0
      %v2196 = vadd.f32 %v1942, %v2195
      %v2197 = vpop.f32.mrb[0].mxu0
      %2198 = vmatprep.mubr.f32.mxu0 0.0
      %2199 = vmatmul.mubr.f32.gmra.mrb[0].mxu0 %v2001
      %v2200 = vpop.f32.mrb[0].mxu0
      %v2201 = vadd.f32 %v1942, %v2200
      %v2202 = vpop.f32.mrb[0].mxu0
      %2203 = vmatprep.mubr.f32.mxu0 0.0
      %2204 = vmatmul.mubr.f32.gmra.mrb[0].mxu0 %v2004
      %v2205 = vpop.f32.mrb[0].mxu0
      %v2206 = vadd.f32 %v1942, %v2205
      %v2207 = vpop.f32.mrb[0].mxu0
      %2208 = vmatprep.mubr.f32.mxu0 0.0
      %2209 = vmatmul.mubr.f32.gmra.mrb[0].mxu0 %v2007
      %v2210 = vpop.f32.mrb[0].mxu0
      %v2211 = vadd.f32 %v1942, %v2210
      %v2212 = vpop.f32.mrb[0].mxu0
      %2213 = vmatprep.mubr.f32.mxu0 0.0
      %2214 = vmatmul.mubr.f32.gmra.mrb[0].mxu0 %v2010
      %v2215 = vpop.f32.mrb[0].mxu0
      %v2216 = vadd.f32 %v1942, %v2215
      %v2217 = vpop.f32.mrb[0].mxu0
      %2218 = vmatprep.mubr.f32.mxu0 0.0
      %2219 = vmatmul.mubr.f32.gmra.mrb[0].mxu0 %v2013
      %v2220 = vpop.f32.mrb[0].mxu0
      %v2221 = vadd.f32 %v1942, %v2220
      %v2222 = vpop.f32.mrb[0].mxu0
      %2223 = vmatprep.mubr.f32.mxu0 0.0
      %2224 = vmatmul.mubr.f32.gmra.mrb[0].mxu0 %v2016
      %v2225 = vpop.f32.mrb[0].mxu0
      %v2226 = vadd.f32 %v1942, %v2225
      %v2227 = vpop.f32.mrb[0].mxu0
      %2228 = vmatprep.mubr.f32.mxu0 0.0
      %2229 = vmatmul.mubr.f32.gmra.mrb[0].mxu0 %v2019
      %v2230 = vpop.f32.mrb[0].mxu0
      %v2231 = vadd.f32 %v1942, %v2230
      %v2232 = vpop.f32.mrb[0].mxu0
      %2233 = vmatprep.mubr.f32.mxu0 0.0
      %2234 = vmatmul.mubr.f32.gmra.mrb[0].mxu0 %v2022
      %v2235 = vpop.f32.mrb[0].mxu0
      %v2236 = vadd.f32 %v1942, %v2235
      %v2237 = vpop.f32.mrb[0].mxu0
      %2238 = vmatprep.mubr.f32.mxu0 0.0
      %2239 = vmatmul.mubr.f32.gmra.mrb[0].mxu0 %v2025
      %v2240 = vpop.f32.mrb[0].mxu0
      %v2241 = vadd.f32 %v1942, %v2240
      %v2242 = vpop.f32.mrb[0].mxu0
      %2243 = vmatprep.mubr.f32.mxu0 0.0
      %2244 = vmatmul.mubr.f32.gmra.mrb[0].mxu0 %v2028
      %v2245 = vpop.f32.mrb[0].mxu0
      %v2246 = vadd.f32 %v1942, %v2245
      %v2247 = vpop.f32.mrb[0].mxu0
      %2248 = vmatprep.mubr.f32.mxu0 0.0
      %2249 = vmatmul.mubr.f32.gmra.mrb[0].mxu0 %v2031
      %v2250 = vpop.f32.mrb[0].mxu0
      %v2251 = vadd.f32 %v1942, %v2250
      %v2252 = vpop.f32.mrb[0].mxu0
      %2253 = vmatprep.mubr.f32.mxu0 0.0
      %2254 = vmatmul.mubr.f32.gmra.mrb[0].mxu0 %v2034
      %v2255 = vpop.f32.mrb[0].mxu0
      %v2256 = vadd.f32 %v1942, %v2255
      %v2257 = vpop.f32.mrb[0].mxu0
      %2258 = vmatprep.mubr.f32.mxu0 0.0
      %2259 = vmatmul.mubr.f32.gmra.mrb[0].mxu0 %v2037
      %v2260 = vpop.f32.mrb[0].mxu0
      %v2261 = vadd.f32 %v1942, %v2260
      %v2262 = vpop.f32.mrb[0].mxu0
      %2263 = vdwg.mxu0
      %2264 = vxpose.xlu0.b32.start [1/16] %v514, 128
      %2265 = vxpose.xlu0.b32.cont [2/16] %v515, 128
      %2266 = vxpose.xlu0.b32.cont [3/16] %v516, 128
      %2267 = vxpose.xlu0.b32.cont [4/16] %v517, 128
      %2268 = vxpose.xlu0.b32.cont [5/16] %v518, 128
      %2269 = vxpose.xlu0.b32.cont [6/16] %v519, 128
      %2270 = vxpose.xlu0.b32.cont [7/16] %v520, 128
      %2271 = vxpose.xlu0.b32.cont [8/16] %v521, 128
      %2272 = vxpose.xlu0.b32.cont [9/16] %v522, 128
      %2273 = vxpose.xlu0.b32.cont [10/16] %v523, 128
      %2274 = vxpose.xlu0.b32.cont [11/16] %v524, 128
      %2275 = vxpose.xlu0.b32.cont [12/16] %v525, 128
      %2276 = vxpose.xlu0.b32.cont [13/16] %v526, 128
      %2277 = vxpose.xlu0.b32.cont [14/16] %v527, 128
      %2278 = vxpose.xlu0.b32.cont [15/16] %v528, 128
      %2279 = vxpose.xlu0.b32.end [16/16] %v529, 128
      %v2280 = vpop.trf.xlu0
      %v2281 = vpop.trf.xlu0
      %v2282 = vpop.trf.xlu0
      %v2283 = vpop.trf.xlu0
      %v2284 = vpop.trf.xlu0
      %v2285 = vpop.trf.xlu0
      %v2286 = vpop.trf.xlu0
      %v2287 = vpop.trf.xlu0
      %v2288 = vpop.trf.xlu0
      %v2289 = vpop.trf.xlu0
      %v2290 = vpop.trf.xlu0
      %v2291 = vpop.trf.xlu0
      %v2292 = vpop.trf.xlu0
      %v2293 = vpop.trf.xlu0
      %v2294 = vpop.trf.xlu0
      %v2295 = vpop.trf.xlu0
      %2296 = vxpose.xlu0.b32.start [1/16] %v530, 128
      %2297 = vxpose.xlu0.b32.cont [2/16] %v531, 128
      %2298 = vxpose.xlu0.b32.cont [3/16] %v532, 128
      %2299 = vxpose.xlu0.b32.cont [4/16] %v533, 128
      %2300 = vxpose.xlu0.b32.cont [5/16] %v534, 128
      %2301 = vxpose.xlu0.b32.cont [6/16] %v535, 128
      %2302 = vxpose.xlu0.b32.cont [7/16] %v536, 128
      %2303 = vxpose.xlu0.b32.cont [8/16] %v537, 128
      %2304 = vxpose.xlu0.b32.cont [9/16] %v538, 128
      %2305 = vxpose.xlu0.b32.cont [10/16] %v539, 128
      %2306 = vxpose.xlu0.b32.cont [11/16] %v540, 128
      %2307 = vxpose.xlu0.b32.cont [12/16] %v541, 128
      %2308 = vxpose.xlu0.b32.cont [13/16] %v542, 128
      %2309 = vxpose.xlu0.b32.cont [14/16] %v543, 128
      %2310 = vxpose.xlu0.b32.cont [15/16] %v544, 128
      %2311 = vxpose.xlu0.b32.end [16/16] %v545, 128
      %v2312 = vpop.trf.xlu0
      %v2313 = vpop.trf.xlu0
      %v2314 = vpop.trf.xlu0
      %v2315 = vpop.trf.xlu0
      %v2316 = vpop.trf.xlu0
      %v2317 = vpop.trf.xlu0
      %v2318 = vpop.trf.xlu0
      %v2319 = vpop.trf.xlu0
      %v2320 = vpop.trf.xlu0
      %v2321 = vpop.trf.xlu0
      %v2322 = vpop.trf.xlu0
      %v2323 = vpop.trf.xlu0
      %v2324 = vpop.trf.xlu0
      %v2325 = vpop.trf.xlu0
      %v2326 = vpop.trf.xlu0
      %v2327 = vpop.trf.xlu0
      %2328 = vmatprep.subr.mxu0 0.0
      %2329 = vmatpush1.msra.mxu0 %v2106
      %2330 = vmatprep.subr.mxu0 0.0
      %2331 = vmatpush1.msra.mxu0 %v2111
      %2332 = vmatprep.subr.mxu0 0.0
      %2333 = vmatpush1.msra.mxu0 %v2116
      %2334 = vmatprep.subr.mxu0 0.0
      %2335 = vmatpush1.msra.mxu0 %v2121
      %2336 = vmatprep.subr.mxu0 0.0
      %2337 = vmatpush1.msra.mxu0 %v2126
      %2338 = vmatprep.subr.mxu0 0.0
      %2339 = vmatpush1.msra.mxu0 %v2131
      %2340 = vmatprep.subr.mxu0 0.0
      %2341 = vmatpush1.msra.mxu0 %v2136
      %2342 = vmatprep.subr.mxu0 0.0
      %2343 = vmatpush1.msra.mxu0 %v2141
      %2344 = vmatprep.subr.mxu0 0.0
      %2345 = vmatpush1.msra.mxu0 %v2146
      %2346 = vmatprep.subr.mxu0 0.0
      %2347 = vmatpush1.msra.mxu0 %v2151
      %2348 = vmatprep.subr.mxu0 0.0
      %2349 = vmatpush1.msra.mxu0 %v2156
      %2350 = vmatprep.subr.mxu0 0.0
      %2351 = vmatpush1.msra.mxu0 %v2161
      %2352 = vmatprep.subr.mxu0 0.0
      %2353 = vmatpush1.msra.mxu0 %v2166
      %2354 = vmatprep.subr.mxu0 0.0
      %2355 = vmatpush1.msra.mxu0 %v2171
      %2356 = vmatprep.subr.mxu0 0.0
      %2357 = vmatpush1.msra.mxu0 %v2176
      %2358 = vmatprep.subr.mxu0 0.0
      %2359 = vmatpush1.msra.mxu0 %v2181
      %2360 = vmatprep.subr.mxu0 0.0
      %2361 = vmatpush1.msra.mxu0 %v2186
      %2362 = vmatprep.subr.mxu0 0.0
      %2363 = vmatpush1.msra.mxu0 %v2191
      %2364 = vmatprep.subr.mxu0 0.0
      %2365 = vmatpush1.msra.mxu0 %v2196
      %2366 = vmatprep.subr.mxu0 0.0
      %2367 = vmatpush1.msra.mxu0 %v2201
      %2368 = vmatprep.subr.mxu0 0.0
      %2369 = vmatpush1.msra.mxu0 %v2206
      %2370 = vmatprep.subr.mxu0 0.0
      %2371 = vmatpush1.msra.mxu0 %v2211
      %2372 = vmatprep.subr.mxu0 0.0
      %2373 = vmatpush1.msra.mxu0 %v2216
      %2374 = vmatprep.subr.mxu0 0.0
      %2375 = vmatpush1.msra.mxu0 %v2221
      %2376 = vmatprep.subr.mxu0 0.0
      %2377 = vmatpush1.msra.mxu0 %v2226
      %2378 = vmatprep.subr.mxu0 0.0
      %2379 = vmatpush1.msra.mxu0 %v2231
      %2380 = vmatprep.subr.mxu0 0.0
      %2381 = vmatpush1.msra.mxu0 %v2236
      %2382 = vmatprep.subr.mxu0 0.0
      %2383 = vmatpush1.msra.mxu0 %v2241
      %2384 = vmatprep.subr.mxu0 0.0
      %2385 = vmatpush1.msra.mxu0 %v2246
      %2386 = vmatprep.subr.mxu0 0.0
      %2387 = vmatpush1.msra.mxu0 %v2251
      %2388 = vmatprep.subr.mxu0 0.0
      %2389 = vmatpush1.msra.mxu0 %v2256
      %2390 = vmatprep.subr.mxu0 0.0
      %2391 = vmatpush1.msra.mxu0 %v2261
      %2392 = vmatprep.mubr.f32.mxu0 %v2312
      %2393 = vmatmul.mubr.f32.gmra.mrb[0].mxu0 %v2280
      %v2394 = vpop.f32.mrb[0].mxu0
      %v2395 = vadd.f32 0.0, %v2394
      %v2396 = vpop.f32.mrb[0].mxu0
      %2397 = vmatprep.mubr.f32.mxu0 %v2313
      %2398 = vmatmul.mubr.f32.gmra.mrb[0].mxu0 %v2281
      %v2399 = vpop.f32.mrb[0].mxu0
      %v2400 = vadd.f32 0.0, %v2399
      %v2401 = vpop.f32.mrb[0].mxu0
      %2402 = vdwg.mxu0
      %2404 = vset.pattern.permute.xlu0 0
      %2405 = vperm.xlu0 %2404, %v546
      %v2406 = vpop.permute.xlu0 %2405
      %2409 = vset.pattern.permute.xlu0 0
      %2410 = vperm.xlu0 %2409, %v547
      %v2411 = vpop.permute.xlu0 %2410
      %v2413 = vmul.f32 %v2395, %v2406
      %v2414 = vmul.f32 %v2400, %v2411
      %v2416 = vsel %vm1360, %v2413, 0
      %v2419 = vsel %vm1360, %v2414, 0
      %2421 = vmatprep.subr.mxu0 0.0
      %2422 = vmatpush1.msra.mxu0 %v401
      %2423 = vmatprep.subr.mxu0 0.0
      %2424 = vmatpush1.msra.mxu0 %v402
      %2425 = vmatprep.subr.mxu0 0.0
      %2426 = vmatpush1.msra.mxu0 %v403
      %2427 = vmatprep.subr.mxu0 0.0
      %2428 = vmatpush1.msra.mxu0 %v404
      %2429 = vmatprep.subr.mxu0 0.0
      %2430 = vmatpush1.msra.mxu0 0.0
      %2431 = vmatprep.subr.mxu0 0.0
      %2432 = vmatpush1.msra.mxu0 0.0
      %2433 = vmatprep.subr.mxu0 0.0
      %2434 = vmatpush1.msra.mxu0 0.0
      %2435 = vmatprep.subr.mxu0 0.0
      %2436 = vmatpush1.msra.mxu0 0.0
      %2437 = vmatprep.subr.mxu0 0.0
      %2438 = vmatpush1.msra.mxu0 0.0
      %2439 = vmatprep.subr.mxu0 0.0
      %2440 = vmatpush1.msra.mxu0 0.0
      %2441 = vmatprep.subr.mxu0 0.0
      %2442 = vmatpush1.msra.mxu0 0.0
      %2443 = vmatprep.subr.mxu0 0.0
      %2444 = vmatpush1.msra.mxu0 0.0
      %2445 = vmatprep.subr.mxu0 0.0
      %2446 = vmatpush1.msra.mxu0 0.0
      %2447 = vmatprep.subr.mxu0 0.0
      %2448 = vmatpush1.msra.mxu0 0.0
      %2449 = vmatprep.subr.mxu0 0.0
      %2450 = vmatpush1.msra.mxu0 0.0
      %2451 = vmatprep.subr.mxu0 0.0
      %2452 = vmatpush1.msra.mxu0 0.0
      %2453 = vmatprep.subr.mxu0 0.0
      %2454 = vmatpush1.msra.mxu0 0.0
      %2455 = vmatprep.subr.mxu0 0.0
      %2456 = vmatpush1.msra.mxu0 0.0
      %2457 = vmatprep.subr.mxu0 0.0
      %2458 = vmatpush1.msra.mxu0 0.0
      %2459 = vmatprep.subr.mxu0 0.0
      %2460 = vmatpush1.msra.mxu0 0.0
      %2461 = vmatprep.subr.mxu0 0.0
      %2462 = vmatpush1.msra.mxu0 0.0
      %2463 = vmatprep.subr.mxu0 0.0
      %2464 = vmatpush1.msra.mxu0 0.0
      %2465 = vmatprep.subr.mxu0 0.0
      %2466 = vmatpush1.msra.mxu0 0.0
      %2467 = vmatprep.subr.mxu0 0.0
      %2468 = vmatpush1.msra.mxu0 0.0
      %2469 = vmatprep.subr.mxu0 0.0
      %2470 = vmatpush1.msra.mxu0 0.0
      %2471 = vmatprep.subr.mxu0 0.0
      %2472 = vmatpush1.msra.mxu0 0.0
      %2473 = vmatprep.subr.mxu0 0.0
      %2474 = vmatpush1.msra.mxu0 0.0
      %2475 = vmatprep.subr.mxu0 0.0
      %2476 = vmatpush1.msra.mxu0 0.0
      %2477 = vmatprep.subr.mxu0 0.0
      %2478 = vmatpush1.msra.mxu0 0.0
      %2479 = vmatprep.subr.mxu0 0.0
      %2480 = vmatpush1.msra.mxu0 0.0
      %2481 = vmatprep.subr.mxu0 0.0
      %2482 = vmatpush1.msra.mxu0 0.0
      %2483 = vmatprep.subr.mxu0 0.0
      %2484 = vmatpush1.msra.mxu0 0.0
      %2485 = vmatprep.mubr.f32.mxu0 0.0
      %2486 = vmatmul.mubr.f32.gmra.mrb[0].mxu0 %v2416
      %v2487 = vpop.f32.mrb[0].mxu0
      %v2488 = vadd.f32 0.0, %v2487
      %v2489 = vpop.f32.mrb[0].mxu0
      %2490 = vmatprep.mubr.f32.mxu0 0.0
      %2491 = vmatmul.mubr.f32.gmra.mrb[0].mxu0 %v2419
      %v2492 = vpop.f32.mrb[0].mxu0
      %v2493 = vadd.f32 0.0, %v2492
      %v2494 = vpop.f32.mrb[0].mxu0
      %2495 = vdwg.mxu0
      %v2496 = vtanh.pop %v2488
      %v2497 = vtanh.pop %v2493
      %v2499 = vsel %vm777, %v514, 0
      %v2502 = vsel %vm777, %v515, 0
      %v2505 = vsel %vm777, %v516, 0
      %v2508 = vsel %vm777, %v517, 0
      %v2511 = vsel %vm777, %v518, 0
      %v2514 = vsel %vm777, %v519, 0
      %v2517 = vsel %vm777, %v520, 0
      %v2520 = vsel %vm777, %v521, 0
      %v2523 = vsel %vm777, %v522, 0
      %v2526 = vsel %vm777, %v523, 0
      %v2529 = vsel %vm777, %v524, 0
      %v2532 = vsel %vm777, %v525, 0
      %v2535 = vsel %vm777, %v526, 0
      %v2538 = vsel %vm777, %v527, 0
      %v2541 = vsel %vm777, %v528, 0
      %v2544 = vsel %vm777, %v529, 0
      %v2547 = vsel %vm777, %v530, 0
      %v2550 = vsel %vm777, %v531, 0
      %v2553 = vsel %vm777, %v532, 0
      %v2556 = vsel %vm777, %v533, 0
      %v2559 = vsel %vm777, %v534, 0
      %v2562 = vsel %vm777, %v535, 0
      %v2565 = vsel %vm777, %v536, 0
      %v2568 = vsel %vm777, %v537, 0
      %v2571 = vsel %vm777, %v538, 0
      %v2574 = vsel %vm777, %v539, 0
      %v2577 = vsel %vm777, %v540, 0
      %v2580 = vsel %vm777, %v541, 0
      %v2583 = vsel %vm777, %v542, 0
      %v2586 = vsel %vm777, %v543, 0
      %v2589 = vsel %vm777, %v544, 0
      %v2592 = vsel %vm777, %v545, 0
      %2594 = vmatprep.subr.mxu0 0.0
      %2595 = vmatpush1.msra.mxu0 %v2496
      %2596 = vmatprep.subr.mxu0 0.0
      %2597 = vmatpush1.msra.mxu0 %v2497
      %2598 = vmatprep.subr.mxu0 0.0
      %2599 = vmatpush1.msra.mxu0 0.0
      %2600 = vmatprep.subr.mxu0 0.0
      %2601 = vmatpush1.msra.mxu0 0.0
      %2602 = vmatprep.subr.mxu0 0.0
      %2603 = vmatpush1.msra.mxu0 0.0
      %2604 = vmatprep.subr.mxu0 0.0
      %2605 = vmatpush1.msra.mxu0 0.0
      %2606 = vmatprep.subr.mxu0 0.0
      %2607 = vmatpush1.msra.mxu0 0.0
      %2608 = vmatprep.subr.mxu0 0.0
      %2609 = vmatpush1.msra.mxu0 0.0
      %2610 = vmatprep.subr.mxu0 0.0
      %2611 = vmatpush1.msra.mxu0 0.0
      %2612 = vmatprep.subr.mxu0 0.0
      %2613 = vmatpush1.msra.mxu0 0.0
      %2614 = vmatprep.subr.mxu0 0.0
      %2615 = vmatpush1.msra.mxu0 0.0
      %2616 = vmatprep.subr.mxu0 0.0
      %2617 = vmatpush1.msra.mxu0 0.0
      %2618 = vmatprep.subr.mxu0 0.0
      %2619 = vmatpush1.msra.mxu0 0.0
      %2620 = vmatprep.subr.mxu0 0.0
      %2621 = vmatpush1.msra.mxu0 0.0
      %2622 = vmatprep.subr.mxu0 0.0
      %2623 = vmatpush1.msra.mxu0 0.0
      %2624 = vmatprep.subr.mxu0 0.0
      %2625 = vmatpush1.msra.mxu0 0.0
      %2626 = vmatprep.subr.mxu0 0.0
      %2627 = vmatpush1.msra.mxu0 0.0
      %2628 = vmatprep.subr.mxu0 0.0
      %2629 = vmatpush1.msra.mxu0 0.0
      %2630 = vmatprep.subr.mxu0 0.0
      %2631 = vmatpush1.msra.mxu0 0.0
      %2632 = vmatprep.subr.mxu0 0.0
      %2633 = vmatpush1.msra.mxu0 0.0
      %2634 = vmatprep.subr.mxu0 0.0
      %2635 = vmatpush1.msra.mxu0 0.0
      %2636 = vmatprep.subr.mxu0 0.0
      %2637 = vmatpush1.msra.mxu0 0.0
      %2638 = vmatprep.subr.mxu0 0.0
      %2639 = vmatpush1.msra.mxu0 0.0
      %2640 = vmatprep.subr.mxu0 0.0
      %2641 = vmatpush1.msra.mxu0 0.0
      %2642 = vmatprep.subr.mxu0 0.0
      %2643 = vmatpush1.msra.mxu0 0.0
      %2644 = vmatprep.subr.mxu0 0.0
      %2645 = vmatpush1.msra.mxu0 0.0
      %2646 = vmatprep.subr.mxu0 0.0
      %2647 = vmatpush1.msra.mxu0 0.0
      %2648 = vmatprep.subr.mxu0 0.0
      %2649 = vmatpush1.msra.mxu0 0.0
      %2650 = vmatprep.subr.mxu0 0.0
      %2651 = vmatpush1.msra.mxu0 0.0
      %2652 = vmatprep.subr.mxu0 0.0
      %2653 = vmatpush1.msra.mxu0 0.0
      %2654 = vmatprep.subr.mxu0 0.0
      %2655 = vmatpush1.msra.mxu0 0.0
      %2656 = vmatprep.subr.mxu0 0.0
      %2657 = vmatpush1.msra.mxu0 0.0
      %2658 = vmatprep.mubr.f32.mxu0 0.0
      %2659 = vmatmul.mubr.f32.gmra.mrb[0].mxu0 %v2499
      %v2660 = vpop.f32.mrb[0].mxu0
      %v2661 = vadd.f32 0.0, %v2660
      %v2662 = vpop.f32.mrb[0].mxu0
      %2663 = vmatprep.mubr.f32.mxu0 0.0
      %2664 = vmatmul.mubr.f32.gmra.mrb[0].mxu0 %v2502
      %v2665 = vpop.f32.mrb[0].mxu0
      %v2666 = vadd.f32 0.0, %v2665
      %v2667 = vpop.f32.mrb[0].mxu0
      %2668 = vmatprep.mubr.f32.mxu0 0.0
      %2669 = vmatmul.mubr.f32.gmra.mrb[0].mxu0 %v2505
      %v2670 = vpop.f32.mrb[0].mxu0
      %v2671 = vadd.f32 0.0, %v2670
      %v2672 = vpop.f32.mrb[0].mxu0
      %2673 = vmatprep.mubr.f32.mxu0 0.0
      %2674 = vmatmul.mubr.f32.gmra.mrb[0].mxu0 %v2508
      %v2675 = vpop.f32.mrb[0].mxu0
      %v2676 = vadd.f32 0.0, %v2675
      %v2677 = vpop.f32.mrb[0].mxu0
      %2678 = vmatprep.mubr.f32.mxu0 0.0
      %2679 = vmatmul.mubr.f32.gmra.mrb[0].mxu0 %v2511
      %v2680 = vpop.f32.mrb[0].mxu0
      %v2681 = vadd.f32 0.0, %v2680
      %v2682 = vpop.f32.mrb[0].mxu0
      %2683 = vmatprep.mubr.f32.mxu0 0.0
      %2684 = vmatmul.mubr.f32.gmra.mrb[0].mxu0 %v2514
      %v2685 = vpop.f32.mrb[0].mxu0
      %v2686 = vadd.f32 0.0, %v2685
      %v2687 = vpop.f32.mrb[0].mxu0
      %2688 = vmatprep.mubr.f32.mxu0 0.0
      %2689 = vmatmul.mubr.f32.gmra.mrb[0].mxu0 %v2517
      %v2690 = vpop.f32.mrb[0].mxu0
      %v2691 = vadd.f32 0.0, %v2690
      %v2692 = vpop.f32.mrb[0].mxu0
      %2693 = vmatprep.mubr.f32.mxu0 0.0
      %2694 = vmatmul.mubr.f32.gmra.mrb[0].mxu0 %v2520
      %v2695 = vpop.f32.mrb[0].mxu0
      %v2696 = vadd.f32 0.0, %v2695
      %v2697 = vpop.f32.mrb[0].mxu0
      %2698 = vmatprep.mubr.f32.mxu0 0.0
      %2699 = vmatmul.mubr.f32.gmra.mrb[0].mxu0 %v2523
      %v2700 = vpop.f32.mrb[0].mxu0
      %v2701 = vadd.f32 0.0, %v2700
      %v2702 = vpop.f32.mrb[0].mxu0
      %2703 = vmatprep.mubr.f32.mxu0 0.0
      %2704 = vmatmul.mubr.f32.gmra.mrb[0].mxu0 %v2526
      %v2705 = vpop.f32.mrb[0].mxu0
      %v2706 = vadd.f32 0.0, %v2705
      %v2707 = vpop.f32.mrb[0].mxu0
      %2708 = vmatprep.mubr.f32.mxu0 0.0
      %2709 = vmatmul.mubr.f32.gmra.mrb[0].mxu0 %v2529
      %v2710 = vpop.f32.mrb[0].mxu0
      %v2711 = vadd.f32 0.0, %v2710
      %v2712 = vpop.f32.mrb[0].mxu0
      %2713 = vmatprep.mubr.f32.mxu0 0.0
      %2714 = vmatmul.mubr.f32.gmra.mrb[0].mxu0 %v2532
      %v2715 = vpop.f32.mrb[0].mxu0
      %v2716 = vadd.f32 0.0, %v2715
      %v2717 = vpop.f32.mrb[0].mxu0
      %2718 = vmatprep.mubr.f32.mxu0 0.0
      %2719 = vmatmul.mubr.f32.gmra.mrb[0].mxu0 %v2535
      %v2720 = vpop.f32.mrb[0].mxu0
      %v2721 = vadd.f32 0.0, %v2720
      %v2722 = vpop.f32.mrb[0].mxu0
      %2723 = vmatprep.mubr.f32.mxu0 0.0
      %2724 = vmatmul.mubr.f32.gmra.mrb[0].mxu0 %v2538
      %v2725 = vpop.f32.mrb[0].mxu0
      %v2726 = vadd.f32 0.0, %v2725
      %v2727 = vpop.f32.mrb[0].mxu0
      %2728 = vmatprep.mubr.f32.mxu0 0.0
      %2729 = vmatmul.mubr.f32.gmra.mrb[0].mxu0 %v2541
      %v2730 = vpop.f32.mrb[0].mxu0
      %v2731 = vadd.f32 0.0, %v2730
      %v2732 = vpop.f32.mrb[0].mxu0
      %2733 = vmatprep.mubr.f32.mxu0 0.0
      %2734 = vmatmul.mubr.f32.gmra.mrb[0].mxu0 %v2544
      %v2735 = vpop.f32.mrb[0].mxu0
      %v2736 = vadd.f32 0.0, %v2735
      %v2737 = vpop.f32.mrb[0].mxu0
      %2738 = vmatprep.mubr.f32.mxu0 0.0
      %2739 = vmatmul.mubr.f32.gmra.mrb[0].mxu0 %v2547
      %v2740 = vpop.f32.mrb[0].mxu0
      %v2741 = vadd.f32 0.0, %v2740
      %v2742 = vpop.f32.mrb[0].mxu0
      %2743 = vmatprep.mubr.f32.mxu0 0.0
      %2744 = vmatmul.mubr.f32.gmra.mrb[0].mxu0 %v2550
      %v2745 = vpop.f32.mrb[0].mxu0
      %v2746 = vadd.f32 0.0, %v2745
      %v2747 = vpop.f32.mrb[0].mxu0
      %2748 = vmatprep.mubr.f32.mxu0 0.0
      %2749 = vmatmul.mubr.f32.gmra.mrb[0].mxu0 %v2553
      %v2750 = vpop.f32.mrb[0].mxu0
      %v2751 = vadd.f32 0.0, %v2750
      %v2752 = vpop.f32.mrb[0].mxu0
      %2753 = vmatprep.mubr.f32.mxu0 0.0
      %2754 = vmatmul.mubr.f32.gmra.mrb[0].mxu0 %v2556
      %v2755 = vpop.f32.mrb[0].mxu0
      %v2756 = vadd.f32 0.0, %v2755
      %v2757 = vpop.f32.mrb[0].mxu0
      %2758 = vmatprep.mubr.f32.mxu0 0.0
      %2759 = vmatmul.mubr.f32.gmra.mrb[0].mxu0 %v2559
      %v2760 = vpop.f32.mrb[0].mxu0
      %v2761 = vadd.f32 0.0, %v2760
      %v2762 = vpop.f32.mrb[0].mxu0
      %2763 = vmatprep.mubr.f32.mxu0 0.0
      %2764 = vmatmul.mubr.f32.gmra.mrb[0].mxu0 %v2562
      %v2765 = vpop.f32.mrb[0].mxu0
      %v2766 = vadd.f32 0.0, %v2765
      %v2767 = vpop.f32.mrb[0].mxu0
      %2768 = vmatprep.mubr.f32.mxu0 0.0
      %2769 = vmatmul.mubr.f32.gmra.mrb[0].mxu0 %v2565
      %v2770 = vpop.f32.mrb[0].mxu0
      %v2771 = vadd.f32 0.0, %v2770
      %v2772 = vpop.f32.mrb[0].mxu0
      %2773 = vmatprep.mubr.f32.mxu0 0.0
      %2774 = vmatmul.mubr.f32.gmra.mrb[0].mxu0 %v2568
      %v2775 = vpop.f32.mrb[0].mxu0
      %v2776 = vadd.f32 0.0, %v2775
      %v2777 = vpop.f32.mrb[0].mxu0
      %2778 = vmatprep.mubr.f32.mxu0 0.0
      %2779 = vmatmul.mubr.f32.gmra.mrb[0].mxu0 %v2571
      %v2780 = vpop.f32.mrb[0].mxu0
      %v2781 = vadd.f32 0.0, %v2780
      %v2782 = vpop.f32.mrb[0].mxu0
      %2783 = vmatprep.mubr.f32.mxu0 0.0
      %2784 = vmatmul.mubr.f32.gmra.mrb[0].mxu0 %v2574
      %v2785 = vpop.f32.mrb[0].mxu0
      %v2786 = vadd.f32 0.0, %v2785
      %v2787 = vpop.f32.mrb[0].mxu0
      %2788 = vmatprep.mubr.f32.mxu0 0.0
      %2789 = vmatmul.mubr.f32.gmra.mrb[0].mxu0 %v2577
      %v2790 = vpop.f32.mrb[0].mxu0
      %v2791 = vadd.f32 0.0, %v2790
      %v2792 = vpop.f32.mrb[0].mxu0
      %2793 = vmatprep.mubr.f32.mxu0 0.0
      %2794 = vmatmul.mubr.f32.gmra.mrb[0].mxu0 %v2580
      %v2795 = vpop.f32.mrb[0].mxu0
      %v2796 = vadd.f32 0.0, %v2795
      %v2797 = vpop.f32.mrb[0].mxu0
      %2798 = vmatprep.mubr.f32.mxu0 0.0
      %2799 = vmatmul.mubr.f32.gmra.mrb[0].mxu0 %v2583
      %v2800 = vpop.f32.mrb[0].mxu0
      %v2801 = vadd.f32 0.0, %v2800
      %v2802 = vpop.f32.mrb[0].mxu0
      %2803 = vmatprep.mubr.f32.mxu0 0.0
      %2804 = vmatmul.mubr.f32.gmra.mrb[0].mxu0 %v2586
      %v2805 = vpop.f32.mrb[0].mxu0
      %v2806 = vadd.f32 0.0, %v2805
      %v2807 = vpop.f32.mrb[0].mxu0
      %2808 = vmatprep.mubr.f32.mxu0 0.0
      %2809 = vmatmul.mubr.f32.gmra.mrb[0].mxu0 %v2589
      %v2810 = vpop.f32.mrb[0].mxu0
      %v2811 = vadd.f32 0.0, %v2810
      %v2812 = vpop.f32.mrb[0].mxu0
      %2813 = vmatprep.mubr.f32.mxu0 0.0
      %2814 = vmatmul.mubr.f32.gmra.mrb[0].mxu0 %v2592
      %v2815 = vpop.f32.mrb[0].mxu0
      %v2816 = vadd.f32 0.0, %v2815
      %v2817 = vpop.f32.mrb[0].mxu0
      %2818 = vdwg.mxu0
      %v2819 = vmul.f32 %v2106, %v2661
      %v2820 = vmul.f32 %v2111, %v2666
      %v2821 = vmul.f32 %v2116, %v2671
      %v2822 = vmul.f32 %v2121, %v2676
      %v2823 = vmul.f32 %v2126, %v2681
      %v2824 = vmul.f32 %v2131, %v2686
      %v2825 = vmul.f32 %v2136, %v2691
      %v2826 = vmul.f32 %v2141, %v2696
      %v2827 = vmul.f32 %v2146, %v2701
      %v2828 = vmul.f32 %v2151, %v2706
      %v2829 = vmul.f32 %v2156, %v2711
      %v2830 = vmul.f32 %v2161, %v2716
      %v2831 = vmul.f32 %v2166, %v2721
      %v2832 = vmul.f32 %v2171, %v2726
      %v2833 = vmul.f32 %v2176, %v2731
      %v2834 = vmul.f32 %v2181, %v2736
      %v2835 = vmul.f32 %v2186, %v2741
      %v2836 = vmul.f32 %v2191, %v2746
      %v2837 = vmul.f32 %v2196, %v2751
      %v2838 = vmul.f32 %v2201, %v2756
      %v2839 = vmul.f32 %v2206, %v2761
      %v2840 = vmul.f32 %v2211, %v2766
      %v2841 = vmul.f32 %v2216, %v2771
      %v2842 = vmul.f32 %v2221, %v2776
      %v2843 = vmul.f32 %v2226, %v2781
      %v2844 = vmul.f32 %v2231, %v2786
      %v2845 = vmul.f32 %v2236, %v2791
      %v2846 = vmul.f32 %v2241, %v2796
      %v2847 = vmul.f32 %v2246, %v2801
      %v2848 = vmul.f32 %v2251, %v2806
      %v2849 = vmul.f32 %v2256, %v2811
      %v2850 = vmul.f32 %v2261, %v2816
      %v2852 = vsel %vm1360, %v2819, 0
      %v2855 = vsel %vm1360, %v2820, 0
      %v2858 = vsel %vm1360, %v2821, 0
      %v2861 = vsel %vm1360, %v2822, 0
      %v2864 = vsel %vm1360, %v2823, 0
      %v2867 = vsel %vm1360, %v2824, 0
      %v2870 = vsel %vm1360, %v2825, 0
      %v2873 = vsel %vm1360, %v2826, 0
      %v2876 = vsel %vm1360, %v2827, 0
      %v2879 = vsel %vm1360, %v2828, 0
      %v2882 = vsel %vm1360, %v2829, 0
      %v2885 = vsel %vm1360, %v2830, 0
      %v2888 = vsel %vm1360, %v2831, 0
      %v2891 = vsel %vm1360, %v2832, 0
      %v2894 = vsel %vm1360, %v2833, 0
      %v2897 = vsel %vm1360, %v2834, 0
      %v2900 = vsel %vm1360, %v2835, 0
      %v2903 = vsel %vm1360, %v2836, 0
      %v2906 = vsel %vm1360, %v2837, 0
      %v2909 = vsel %vm1360, %v2838, 0
      %v2912 = vsel %vm1360, %v2839, 0
      %v2915 = vsel %vm1360, %v2840, 0
      %v2918 = vsel %vm1360, %v2841, 0
      %v2921 = vsel %vm1360, %v2842, 0
      %v2924 = vsel %vm1360, %v2843, 0
      %v2927 = vsel %vm1360, %v2844, 0
      %v2930 = vsel %vm1360, %v2845, 0
      %v2933 = vsel %vm1360, %v2846, 0
      %v2936 = vsel %vm1360, %v2847, 0
      %v2939 = vsel %vm1360, %v2848, 0
      %v2942 = vsel %vm1360, %v2849, 0
      %v2945 = vsel %vm1360, %v2850, 0
      %2947 = vmatprep.subr.mxu0 0.0
      %2948 = vmatpush1.msra.mxu0 1.0
      %2949 = vmatprep.subr.mxu0 0.0
      %2950 = vmatpush1.msra.mxu0 1.0
      %2951 = vmatprep.subr.mxu0 0.0
      %2952 = vmatpush1.msra.mxu0 1.0
      %2953 = vmatprep.subr.mxu0 0.0
      %2954 = vmatpush1.msra.mxu0 1.0
      %2955 = vmatprep.subr.mxu0 0.0
      %2956 = vmatpush1.msra.mxu0 0.0
      %2957 = vmatprep.subr.mxu0 0.0
      %2958 = vmatpush1.msra.mxu0 0.0
      %2959 = vmatprep.subr.mxu0 0.0
      %2960 = vmatpush1.msra.mxu0 0.0
      %2961 = vmatprep.subr.mxu0 0.0
      %2962 = vmatpush1.msra.mxu0 0.0
      %2963 = vmatprep.subr.mxu0 0.0
      %2964 = vmatpush1.msra.mxu0 0.0
      %2965 = vmatprep.subr.mxu0 0.0
      %2966 = vmatpush1.msra.mxu0 0.0
      %2967 = vmatprep.subr.mxu0 0.0
      %2968 = vmatpush1.msra.mxu0 0.0
      %2969 = vmatprep.subr.mxu0 0.0
      %2970 = vmatpush1.msra.mxu0 0.0
      %2971 = vmatprep.subr.mxu0 0.0
      %2972 = vmatpush1.msra.mxu0 0.0
      %2973 = vmatprep.subr.mxu0 0.0
      %2974 = vmatpush1.msra.mxu0 0.0
      %2975 = vmatprep.subr.mxu0 0.0
      %2976 = vmatpush1.msra.mxu0 0.0
      %2977 = vmatprep.subr.mxu0 0.0
      %2978 = vmatpush1.msra.mxu0 0.0
      %2979 = vmatprep.subr.mxu0 0.0
      %2980 = vmatpush1.msra.mxu0 0.0
      %2981 = vmatprep.subr.mxu0 0.0
      %2982 = vmatpush1.msra.mxu0 0.0
      %2983 = vmatprep.subr.mxu0 0.0
      %2984 = vmatpush1.msra.mxu0 0.0
      %2985 = vmatprep.subr.mxu0 0.0
      %2986 = vmatpush1.msra.mxu0 0.0
      %2987 = vmatprep.subr.mxu0 0.0
      %2988 = vmatpush1.msra.mxu0 0.0
      %2989 = vmatprep.subr.mxu0 0.0
      %2990 = vmatpush1.msra.mxu0 0.0
      %2991 = vmatprep.subr.mxu0 0.0
      %2992 = vmatpush1.msra.mxu0 0.0
      %2993 = vmatprep.subr.mxu0 0.0
      %2994 = vmatpush1.msra.mxu0 0.0
      %2995 = vmatprep.subr.mxu0 0.0
      %2996 = vmatpush1.msra.mxu0 0.0
      %2997 = vmatprep.subr.mxu0 0.0
      %2998 = vmatpush1.msra.mxu0 0.0
      %2999 = vmatprep.subr.mxu0 0.0
      %3000 = vmatpush1.msra.mxu0 0.0
      %3001 = vmatprep.subr.mxu0 0.0
      %3002 = vmatpush1.msra.mxu0 0.0
      %3003 = vmatprep.subr.mxu0 0.0
      %3004 = vmatpush1.msra.mxu0 0.0
      %3005 = vmatprep.subr.mxu0 0.0
      %3006 = vmatpush1.msra.mxu0 0.0
      %3007 = vmatprep.subr.mxu0 0.0
      %3008 = vmatpush1.msra.mxu0 0.0
      %3009 = vmatprep.subr.mxu0 0.0
      %3010 = vmatpush1.msra.mxu0 0.0
      %3011 = vmatprep.mubr.f32.mxu0 0.0
      %3012 = vmatmul.mubr.f32.gmra.mrb[0].mxu0 %v2852
      %v3013 = vpop.f32.mrb[0].mxu0
      %v3014 = vadd.f32 0.0, %v3013
      %v3015 = vpop.f32.mrb[0].mxu0
      %3016 = vmatprep.mubr.f32.mxu0 0.0
      %3017 = vmatmul.mubr.f32.gmra.mrb[0].mxu0 %v2855
      %v3018 = vpop.f32.mrb[0].mxu0
      %v3019 = vadd.f32 0.0, %v3018
      %v3020 = vpop.f32.mrb[0].mxu0
      %3021 = vmatprep.mubr.f32.mxu0 0.0
      %3022 = vmatmul.mubr.f32.gmra.mrb[0].mxu0 %v2858
      %v3023 = vpop.f32.mrb[0].mxu0
      %v3024 = vadd.f32 0.0, %v3023
      %v3025 = vpop.f32.mrb[0].mxu0
      %3026 = vmatprep.mubr.f32.mxu0 0.0
      %3027 = vmatmul.mubr.f32.gmra.mrb[0].mxu0 %v2861
      %v3028 = vpop.f32.mrb[0].mxu0
      %v3029 = vadd.f32 0.0, %v3028
      %v3030 = vpop.f32.mrb[0].mxu0
      %3031 = vmatprep.mubr.f32.mxu0 0.0
      %3032 = vmatmul.mubr.f32.gmra.mrb[0].mxu0 %v2864
      %v3033 = vpop.f32.mrb[0].mxu0
      %v3034 = vadd.f32 0.0, %v3033
      %v3035 = vpop.f32.mrb[0].mxu0
      %3036 = vmatprep.mubr.f32.mxu0 0.0
      %3037 = vmatmul.mubr.f32.gmra.mrb[0].mxu0 %v2867
      %v3038 = vpop.f32.mrb[0].mxu0
      %v3039 = vadd.f32 0.0, %v3038
      %v3040 = vpop.f32.mrb[0].mxu0
      %3041 = vmatprep.mubr.f32.mxu0 0.0
      %3042 = vmatmul.mubr.f32.gmra.mrb[0].mxu0 %v2870
      %v3043 = vpop.f32.mrb[0].mxu0
      %v3044 = vadd.f32 0.0, %v3043
      %v3045 = vpop.f32.mrb[0].mxu0
      %3046 = vmatprep.mubr.f32.mxu0 0.0
      %3047 = vmatmul.mubr.f32.gmra.mrb[0].mxu0 %v2873
      %v3048 = vpop.f32.mrb[0].mxu0
      %v3049 = vadd.f32 0.0, %v3048
      %v3050 = vpop.f32.mrb[0].mxu0
      %3051 = vmatprep.mubr.f32.mxu0 0.0
      %3052 = vmatmul.mubr.f32.gmra.mrb[0].mxu0 %v2876
      %v3053 = vpop.f32.mrb[0].mxu0
      %v3054 = vadd.f32 0.0, %v3053
      %v3055 = vpop.f32.mrb[0].mxu0
      %3056 = vmatprep.mubr.f32.mxu0 0.0
      %3057 = vmatmul.mubr.f32.gmra.mrb[0].mxu0 %v2879
      %v3058 = vpop.f32.mrb[0].mxu0
      %v3059 = vadd.f32 0.0, %v3058
      %v3060 = vpop.f32.mrb[0].mxu0
      %3061 = vmatprep.mubr.f32.mxu0 0.0
      %3062 = vmatmul.mubr.f32.gmra.mrb[0].mxu0 %v2882
      %v3063 = vpop.f32.mrb[0].mxu0
      %v3064 = vadd.f32 0.0, %v3063
      %v3065 = vpop.f32.mrb[0].mxu0
      %3066 = vmatprep.mubr.f32.mxu0 0.0
      %3067 = vmatmul.mubr.f32.gmra.mrb[0].mxu0 %v2885
      %v3068 = vpop.f32.mrb[0].mxu0
      %v3069 = vadd.f32 0.0, %v3068
      %v3070 = vpop.f32.mrb[0].mxu0
      %3071 = vmatprep.mubr.f32.mxu0 0.0
      %3072 = vmatmul.mubr.f32.gmra.mrb[0].mxu0 %v2888
      %v3073 = vpop.f32.mrb[0].mxu0
      %v3074 = vadd.f32 0.0, %v3073
      %v3075 = vpop.f32.mrb[0].mxu0
      %3076 = vmatprep.mubr.f32.mxu0 0.0
      %3077 = vmatmul.mubr.f32.gmra.mrb[0].mxu0 %v2891
      %v3078 = vpop.f32.mrb[0].mxu0
      %v3079 = vadd.f32 0.0, %v3078
      %v3080 = vpop.f32.mrb[0].mxu0
      %3081 = vmatprep.mubr.f32.mxu0 0.0
      %3082 = vmatmul.mubr.f32.gmra.mrb[0].mxu0 %v2894
      %v3083 = vpop.f32.mrb[0].mxu0
      %v3084 = vadd.f32 0.0, %v3083
      %v3085 = vpop.f32.mrb[0].mxu0
      %3086 = vmatprep.mubr.f32.mxu0 0.0
      %3087 = vmatmul.mubr.f32.gmra.mrb[0].mxu0 %v2897
      %v3088 = vpop.f32.mrb[0].mxu0
      %v3089 = vadd.f32 0.0, %v3088
      %v3090 = vpop.f32.mrb[0].mxu0
      %3091 = vmatprep.mubr.f32.mxu0 0.0
      %3092 = vmatmul.mubr.f32.gmra.mrb[0].mxu0 %v2900
      %v3093 = vpop.f32.mrb[0].mxu0
      %v3094 = vadd.f32 0.0, %v3093
      %v3095 = vpop.f32.mrb[0].mxu0
      %3096 = vmatprep.mubr.f32.mxu0 0.0
      %3097 = vmatmul.mubr.f32.gmra.mrb[0].mxu0 %v2903
      %v3098 = vpop.f32.mrb[0].mxu0
      %v3099 = vadd.f32 0.0, %v3098
      %v3100 = vpop.f32.mrb[0].mxu0
      %3101 = vmatprep.mubr.f32.mxu0 0.0
      %3102 = vmatmul.mubr.f32.gmra.mrb[0].mxu0 %v2906
      %v3103 = vpop.f32.mrb[0].mxu0
      %v3104 = vadd.f32 0.0, %v3103
      %v3105 = vpop.f32.mrb[0].mxu0
      %3106 = vmatprep.mubr.f32.mxu0 0.0
      %3107 = vmatmul.mubr.f32.gmra.mrb[0].mxu0 %v2909
      %v3108 = vpop.f32.mrb[0].mxu0
      %v3109 = vadd.f32 0.0, %v3108
      %v3110 = vpop.f32.mrb[0].mxu0
      %3111 = vmatprep.mubr.f32.mxu0 0.0
      %3112 = vmatmul.mubr.f32.gmra.mrb[0].mxu0 %v2912
      %v3113 = vpop.f32.mrb[0].mxu0
      %v3114 = vadd.f32 0.0, %v3113
      %v3115 = vpop.f32.mrb[0].mxu0
      %3116 = vmatprep.mubr.f32.mxu0 0.0
      %3117 = vmatmul.mubr.f32.gmra.mrb[0].mxu0 %v2915
      %v3118 = vpop.f32.mrb[0].mxu0
      %v3119 = vadd.f32 0.0, %v3118
      %v3120 = vpop.f32.mrb[0].mxu0
      %3121 = vmatprep.mubr.f32.mxu0 0.0
      %3122 = vmatmul.mubr.f32.gmra.mrb[0].mxu0 %v2918
      %v3123 = vpop.f32.mrb[0].mxu0
      %v3124 = vadd.f32 0.0, %v3123
      %v3125 = vpop.f32.mrb[0].mxu0
      %3126 = vmatprep.mubr.f32.mxu0 0.0
      %3127 = vmatmul.mubr.f32.gmra.mrb[0].mxu0 %v2921
      %v3128 = vpop.f32.mrb[0].mxu0
      %v3129 = vadd.f32 0.0, %v3128
      %v3130 = vpop.f32.mrb[0].mxu0
      %3131 = vmatprep.mubr.f32.mxu0 0.0
      %3132 = vmatmul.mubr.f32.gmra.mrb[0].mxu0 %v2924
      %v3133 = vpop.f32.mrb[0].mxu0
      %v3134 = vadd.f32 0.0, %v3133
      %v3135 = vpop.f32.mrb[0].mxu0
      %3136 = vmatprep.mubr.f32.mxu0 0.0
      %3137 = vmatmul.mubr.f32.gmra.mrb[0].mxu0 %v2927
      %v3138 = vpop.f32.mrb[0].mxu0
      %v3139 = vadd.f32 0.0, %v3138
      %v3140 = vpop.f32.mrb[0].mxu0
      %3141 = vmatprep.mubr.f32.mxu0 0.0
      %3142 = vmatmul.mubr.f32.gmra.mrb[0].mxu0 %v2930
      %v3143 = vpop.f32.mrb[0].mxu0
      %v3144 = vadd.f32 0.0, %v3143
      %v3145 = vpop.f32.mrb[0].mxu0
      %3146 = vmatprep.mubr.f32.mxu0 0.0
      %3147 = vmatmul.mubr.f32.gmra.mrb[0].mxu0 %v2933
      %v3148 = vpop.f32.mrb[0].mxu0
      %v3149 = vadd.f32 0.0, %v3148
      %v3150 = vpop.f32.mrb[0].mxu0
      %3151 = vmatprep.mubr.f32.mxu0 0.0
      %3152 = vmatmul.mubr.f32.gmra.mrb[0].mxu0 %v2936
      %v3153 = vpop.f32.mrb[0].mxu0
      %v3154 = vadd.f32 0.0, %v3153
      %v3155 = vpop.f32.mrb[0].mxu0
      %3156 = vmatprep.mubr.f32.mxu0 0.0
      %3157 = vmatmul.mubr.f32.gmra.mrb[0].mxu0 %v2939
      %v3158 = vpop.f32.mrb[0].mxu0
      %v3159 = vadd.f32 0.0, %v3158
      %v3160 = vpop.f32.mrb[0].mxu0
      %3161 = vmatprep.mubr.f32.mxu0 0.0
      %3162 = vmatmul.mubr.f32.gmra.mrb[0].mxu0 %v2942
      %v3163 = vpop.f32.mrb[0].mxu0
      %v3164 = vadd.f32 0.0, %v3163
      %v3165 = vpop.f32.mrb[0].mxu0
      %3166 = vmatprep.mubr.f32.mxu0 0.0
      %3167 = vmatmul.mubr.f32.gmra.mrb[0].mxu0 %v2945
      %v3168 = vpop.f32.mrb[0].mxu0
      %v3169 = vadd.f32 0.0, %v3168
      %v3170 = vpop.f32.mrb[0].mxu0
      %3171 = vdwg.mxu0
      %v3172 = vxor.u32 %v3014, 2147483648
      %v3173 = vxor.u32 %v3019, 2147483648
      %v3174 = vxor.u32 %v3024, 2147483648
      %v3175 = vxor.u32 %v3029, 2147483648
      %v3176 = vxor.u32 %v3034, 2147483648
      %v3177 = vxor.u32 %v3039, 2147483648
      %v3178 = vxor.u32 %v3044, 2147483648
      %v3179 = vxor.u32 %v3049, 2147483648
      %v3180 = vxor.u32 %v3054, 2147483648
      %v3181 = vxor.u32 %v3059, 2147483648
      %v3182 = vxor.u32 %v3064, 2147483648
      %v3183 = vxor.u32 %v3069, 2147483648
      %v3184 = vxor.u32 %v3074, 2147483648
      %v3185 = vxor.u32 %v3079, 2147483648
      %v3186 = vxor.u32 %v3084, 2147483648
      %v3187 = vxor.u32 %v3089, 2147483648
      %v3188 = vxor.u32 %v3094, 2147483648
      %v3189 = vxor.u32 %v3099, 2147483648
      %v3190 = vxor.u32 %v3104, 2147483648
      %v3191 = vxor.u32 %v3109, 2147483648
      %v3192 = vxor.u32 %v3114, 2147483648
      %v3193 = vxor.u32 %v3119, 2147483648
      %v3194 = vxor.u32 %v3124, 2147483648
      %v3195 = vxor.u32 %v3129, 2147483648
      %v3196 = vxor.u32 %v3134, 2147483648
      %v3197 = vxor.u32 %v3139, 2147483648
      %v3198 = vxor.u32 %v3144, 2147483648
      %v3199 = vxor.u32 %v3149, 2147483648
      %v3200 = vxor.u32 %v3154, 2147483648
      %v3201 = vxor.u32 %v3159, 2147483648
      %v3202 = vxor.u32 %v3164, 2147483648
      %v3203 = vxor.u32 %v3169, 2147483648
      %v3204 = vmul.f32 %v3172, 1.442695
      %v3205 = vpow.pop %v3204
      %v3206 = vmul.f32 %v3173, 1.442695
      %v3207 = vpow.pop %v3206
      %v3208 = vmul.f32 %v3174, 1.442695
      %v3209 = vpow.pop %v3208
      %v3210 = vmul.f32 %v3175, 1.442695
      %v3211 = vpow.pop %v3210
      %v3212 = vmul.f32 %v3176, 1.442695
      %v3213 = vpow.pop %v3212
      %v3214 = vmul.f32 %v3177, 1.442695
      %v3215 = vpow.pop %v3214
      %v3216 = vmul.f32 %v3178, 1.442695
      %v3217 = vpow.pop %v3216
      %v3218 = vmul.f32 %v3179, 1.442695
      %v3219 = vpow.pop %v3218
      %v3220 = vmul.f32 %v3180, 1.442695
      %v3221 = vpow.pop %v3220
      %v3222 = vmul.f32 %v3181, 1.442695
      %v3223 = vpow.pop %v3222
      %v3224 = vmul.f32 %v3182, 1.442695
      %v3225 = vpow.pop %v3224
      %v3226 = vmul.f32 %v3183, 1.442695
      %v3227 = vpow.pop %v3226
      %v3228 = vmul.f32 %v3184, 1.442695
      %v3229 = vpow.pop %v3228
      %v3230 = vmul.f32 %v3185, 1.442695
      %v3231 = vpow.pop %v3230
      %v3232 = vmul.f32 %v3186, 1.442695
      %v3233 = vpow.pop %v3232
      %v3234 = vmul.f32 %v3187, 1.442695
      %v3235 = vpow.pop %v3234
      %v3236 = vmul.f32 %v3188, 1.442695
      %v3237 = vpow.pop %v3236
      %v3238 = vmul.f32 %v3189, 1.442695
      %v3239 = vpow.pop %v3238
      %v3240 = vmul.f32 %v3190, 1.442695
      %v3241 = vpow.pop %v3240
      %v3242 = vmul.f32 %v3191, 1.442695
      %v3243 = vpow.pop %v3242
      %v3244 = vmul.f32 %v3192, 1.442695
      %v3245 = vpow.pop %v3244
      %v3246 = vmul.f32 %v3193, 1.442695
      %v3247 = vpow.pop %v3246
      %v3248 = vmul.f32 %v3194, 1.442695
      %v3249 = vpow.pop %v3248
      %v3250 = vmul.f32 %v3195, 1.442695
      %v3251 = vpow.pop %v3250
      %v3252 = vmul.f32 %v3196, 1.442695
      %v3253 = vpow.pop %v3252
      %v3254 = vmul.f32 %v3197, 1.442695
      %v3255 = vpow.pop %v3254
      %v3256 = vmul.f32 %v3198, 1.442695
      %v3257 = vpow.pop %v3256
      %v3258 = vmul.f32 %v3199, 1.442695
      %v3259 = vpow.pop %v3258
      %v3260 = vmul.f32 %v3200, 1.442695
      %v3261 = vpow.pop %v3260
      %v3262 = vmul.f32 %v3201, 1.442695
      %v3263 = vpow.pop %v3262
      %v3264 = vmul.f32 %v3202, 1.442695
      %v3265 = vpow.pop %v3264
      %v3266 = vmul.f32 %v3203, 1.442695
      %v3267 = vpow.pop %v3266
      %v3268 = vadd.f32 %v3205, 1.0
      %v3269 = vadd.f32 %v3207, 1.0
      %v3270 = vadd.f32 %v3209, 1.0
      %v3271 = vadd.f32 %v3211, 1.0
      %v3272 = vadd.f32 %v3213, 1.0
      %v3273 = vadd.f32 %v3215, 1.0
      %v3274 = vadd.f32 %v3217, 1.0
      %v3275 = vadd.f32 %v3219, 1.0
      %v3276 = vadd.f32 %v3221, 1.0
      %v3277 = vadd.f32 %v3223, 1.0
      %v3278 = vadd.f32 %v3225, 1.0
      %v3279 = vadd.f32 %v3227, 1.0
      %v3280 = vadd.f32 %v3229, 1.0
      %v3281 = vadd.f32 %v3231, 1.0
      %v3282 = vadd.f32 %v3233, 1.0
      %v3283 = vadd.f32 %v3235, 1.0
      %v3284 = vadd.f32 %v3237, 1.0
      %v3285 = vadd.f32 %v3239, 1.0
      %v3286 = vadd.f32 %v3241, 1.0
      %v3287 = vadd.f32 %v3243, 1.0
      %v3288 = vadd.f32 %v3245, 1.0
      %v3289 = vadd.f32 %v3247, 1.0
      %v3290 = vadd.f32 %v3249, 1.0
      %v3291 = vadd.f32 %v3251, 1.0
      %v3292 = vadd.f32 %v3253, 1.0
      %v3293 = vadd.f32 %v3255, 1.0
      %v3294 = vadd.f32 %v3257, 1.0
      %v3295 = vadd.f32 %v3259, 1.0
      %v3296 = vadd.f32 %v3261, 1.0
      %v3297 = vadd.f32 %v3263, 1.0
      %v3298 = vadd.f32 %v3265, 1.0
      %v3299 = vadd.f32 %v3267, 1.0
      %v3300 = vrcp.pop %v3268
      %v3301 = vmul.f32 1.0, %v3300
      %v3302 = vrcp.pop %v3269
      %v3303 = vmul.f32 1.0, %v3302
      %v3304 = vrcp.pop %v3270
      %v3305 = vmul.f32 1.0, %v3304
      %v3306 = vrcp.pop %v3271
      %v3307 = vmul.f32 1.0, %v3306
      %v3308 = vrcp.pop %v3272
      %v3309 = vmul.f32 1.0, %v3308
      %v3310 = vrcp.pop %v3273
      %v3311 = vmul.f32 1.0, %v3310
      %v3312 = vrcp.pop %v3274
      %v3313 = vmul.f32 1.0, %v3312
      %v3314 = vrcp.pop %v3275
      %v3315 = vmul.f32 1.0, %v3314
      %v3316 = vrcp.pop %v3276
      %v3317 = vmul.f32 1.0, %v3316
      %v3318 = vrcp.pop %v3277
      %v3319 = vmul.f32 1.0, %v3318
      %v3320 = vrcp.pop %v3278
      %v3321 = vmul.f32 1.0, %v3320
      %v3322 = vrcp.pop %v3279
      %v3323 = vmul.f32 1.0, %v3322
      %v3324 = vrcp.pop %v3280
      %v3325 = vmul.f32 1.0, %v3324
      %v3326 = vrcp.pop %v3281
      %v3327 = vmul.f32 1.0, %v3326
      %v3328 = vrcp.pop %v3282
      %v3329 = vmul.f32 1.0, %v3328
      %v3330 = vrcp.pop %v3283
      %v3331 = vmul.f32 1.0, %v3330
      %v3332 = vrcp.pop %v3284
      %v3333 = vmul.f32 1.0, %v3332
      %v3334 = vrcp.pop %v3285
      %v3335 = vmul.f32 1.0, %v3334
      %v3336 = vrcp.pop %v3286
      %v3337 = vmul.f32 1.0, %v3336
      %v3338 = vrcp.pop %v3287
      %v3339 = vmul.f32 1.0, %v3338
      %v3340 = vrcp.pop %v3288
      %v3341 = vmul.f32 1.0, %v3340
      %v3342 = vrcp.pop %v3289
      %v3343 = vmul.f32 1.0, %v3342
      %v3344 = vrcp.pop %v3290
      %v3345 = vmul.f32 1.0, %v3344
      %v3346 = vrcp.pop %v3291
      %v3347 = vmul.f32 1.0, %v3346
      %v3348 = vrcp.pop %v3292
      %v3349 = vmul.f32 1.0, %v3348
      %v3350 = vrcp.pop %v3293
      %v3351 = vmul.f32 1.0, %v3350
      %v3352 = vrcp.pop %v3294
      %v3353 = vmul.f32 1.0, %v3352
      %v3354 = vrcp.pop %v3295
      %v3355 = vmul.f32 1.0, %v3354
      %v3356 = vrcp.pop %v3296
      %v3357 = vmul.f32 1.0, %v3356
      %v3358 = vrcp.pop %v3297
      %v3359 = vmul.f32 1.0, %v3358
      %v3360 = vrcp.pop %v3298
      %v3361 = vmul.f32 1.0, %v3360
      %v3362 = vrcp.pop %v3299
      %v3363 = vmul.f32 1.0, %v3362
      %3365 = vset.pattern.permute.xlu0 0
      %3366 = vperm.xlu0 %3365, %v3301
      %v3367 = vpop.permute.xlu0 %3366
      %3370 = vset.pattern.permute.xlu0 0
      %3371 = vperm.xlu0 %3370, %v3303
      %v3372 = vpop.permute.xlu0 %3371
      %3375 = vset.pattern.permute.xlu0 0
      %3376 = vperm.xlu0 %3375, %v3305
      %v3377 = vpop.permute.xlu0 %3376
      %3380 = vset.pattern.permute.xlu0 0
      %3381 = vperm.xlu0 %3380, %v3307
      %v3382 = vpop.permute.xlu0 %3381
      %3385 = vset.pattern.permute.xlu0 0
      %3386 = vperm.xlu0 %3385, %v3309
      %v3387 = vpop.permute.xlu0 %3386
      %3390 = vset.pattern.permute.xlu0 0
      %3391 = vperm.xlu0 %3390, %v3311
      %v3392 = vpop.permute.xlu0 %3391
      %3395 = vset.pattern.permute.xlu0 0
      %3396 = vperm.xlu0 %3395, %v3313
      %v3397 = vpop.permute.xlu0 %3396
      %3400 = vset.pattern.permute.xlu0 0
      %3401 = vperm.xlu0 %3400, %v3315
      %v3402 = vpop.permute.xlu0 %3401
      %3405 = vset.pattern.permute.xlu0 0
      %3406 = vperm.xlu0 %3405, %v3317
      %v3407 = vpop.permute.xlu0 %3406
      %3410 = vset.pattern.permute.xlu0 0
      %3411 = vperm.xlu0 %3410, %v3319
      %v3412 = vpop.permute.xlu0 %3411
      %3415 = vset.pattern.permute.xlu0 0
      %3416 = vperm.xlu0 %3415, %v3321
      %v3417 = vpop.permute.xlu0 %3416
      %3420 = vset.pattern.permute.xlu0 0
      %3421 = vperm.xlu0 %3420, %v3323
      %v3422 = vpop.permute.xlu0 %3421
      %3425 = vset.pattern.permute.xlu0 0
      %3426 = vperm.xlu0 %3425, %v3325
      %v3427 = vpop.permute.xlu0 %3426
      %3430 = vset.pattern.permute.xlu0 0
      %3431 = vperm.xlu0 %3430, %v3327
      %v3432 = vpop.permute.xlu0 %3431
      %3435 = vset.pattern.permute.xlu0 0
      %3436 = vperm.xlu0 %3435, %v3329
      %v3437 = vpop.permute.xlu0 %3436
      %3440 = vset.pattern.permute.xlu0 0
      %3441 = vperm.xlu0 %3440, %v3331
      %v3442 = vpop.permute.xlu0 %3441
      %3445 = vset.pattern.permute.xlu0 0
      %3446 = vperm.xlu0 %3445, %v3333
      %v3447 = vpop.permute.xlu0 %3446
      %3450 = vset.pattern.permute.xlu0 0
      %3451 = vperm.xlu0 %3450, %v3335
      %v3452 = vpop.permute.xlu0 %3451
      %3455 = vset.pattern.permute.xlu0 0
      %3456 = vperm.xlu0 %3455, %v3337
      %v3457 = vpop.permute.xlu0 %3456
      %3460 = vset.pattern.permute.xlu0 0
      %3461 = vperm.xlu0 %3460, %v3339
      %v3462 = vpop.permute.xlu0 %3461
      %3465 = vset.pattern.permute.xlu0 0
      %3466 = vperm.xlu0 %3465, %v3341
      %v3467 = vpop.permute.xlu0 %3466
      %3470 = vset.pattern.permute.xlu0 0
      %3471 = vperm.xlu0 %3470, %v3343
      %v3472 = vpop.permute.xlu0 %3471
      %3475 = vset.pattern.permute.xlu0 0
      %3476 = vperm.xlu0 %3475, %v3345
      %v3477 = vpop.permute.xlu0 %3476
      %3480 = vset.pattern.permute.xlu0 0
      %3481 = vperm.xlu0 %3480, %v3347
      %v3482 = vpop.permute.xlu0 %3481
      %3485 = vset.pattern.permute.xlu0 0
      %3486 = vperm.xlu0 %3485, %v3349
      %v3487 = vpop.permute.xlu0 %3486
      %3490 = vset.pattern.permute.xlu0 0
      %3491 = vperm.xlu0 %3490, %v3351
      %v3492 = vpop.permute.xlu0 %3491
      %3495 = vset.pattern.permute.xlu0 0
      %3496 = vperm.xlu0 %3495, %v3353
      %v3497 = vpop.permute.xlu0 %3496
      %3500 = vset.pattern.permute.xlu0 0
      %3501 = vperm.xlu0 %3500, %v3355
      %v3502 = vpop.permute.xlu0 %3501
      %3505 = vset.pattern.permute.xlu0 0
      %3506 = vperm.xlu0 %3505, %v3357
      %v3507 = vpop.permute.xlu0 %3506
      %3510 = vset.pattern.permute.xlu0 0
      %3511 = vperm.xlu0 %3510, %v3359
      %v3512 = vpop.permute.xlu0 %3511
      %3515 = vset.pattern.permute.xlu0 0
      %3516 = vperm.xlu0 %3515, %v3361
      %v3517 = vpop.permute.xlu0 %3516
      %3520 = vset.pattern.permute.xlu0 0
      %3521 = vperm.xlu0 %3520, %v3363
      %v3522 = vpop.permute.xlu0 %3521
      %v3524 = vmul.f32 %v3367, %v2106
      %v3525 = vmul.f32 %v3372, %v2111
      %v3526 = vmul.f32 %v3377, %v2116
      %v3527 = vmul.f32 %v3382, %v2121
      %v3528 = vmul.f32 %v3387, %v2126
      %v3529 = vmul.f32 %v3392, %v2131
      %v3530 = vmul.f32 %v3397, %v2136
      %v3531 = vmul.f32 %v3402, %v2141
      %v3532 = vmul.f32 %v3407, %v2146
      %v3533 = vmul.f32 %v3412, %v2151
      %v3534 = vmul.f32 %v3417, %v2156
      %v3535 = vmul.f32 %v3422, %v2161
      %v3536 = vmul.f32 %v3427, %v2166
      %v3537 = vmul.f32 %v3432, %v2171
      %v3538 = vmul.f32 %v3437, %v2176
      %v3539 = vmul.f32 %v3442, %v2181
      %v3540 = vmul.f32 %v3447, %v2186
      %v3541 = vmul.f32 %v3452, %v2191
      %v3542 = vmul.f32 %v3457, %v2196
      %v3543 = vmul.f32 %v3462, %v2201
      %v3544 = vmul.f32 %v3467, %v2206
      %v3545 = vmul.f32 %v3472, %v2211
      %v3546 = vmul.f32 %v3477, %v2216
      %v3547 = vmul.f32 %v3482, %v2221
      %v3548 = vmul.f32 %v3487, %v2226
      %v3549 = vmul.f32 %v3492, %v2231
      %v3550 = vmul.f32 %v3497, %v2236
      %v3551 = vmul.f32 %v3502, %v2241
      %v3552 = vmul.f32 %v3507, %v2246
      %v3553 = vmul.f32 %v3512, %v2251
      %v3554 = vmul.f32 %v3517, %v2256
      %v3555 = vmul.f32 %v3522, %v2261
      %3556 = vmatprep.subr.mxu0 0.0
      %3557 = vmatpush1.msra.mxu0 %v3524
      %3558 = vmatprep.subr.mxu0 0.0
      %3559 = vmatpush1.msra.mxu0 %v3525
      %3560 = vmatprep.subr.mxu0 0.0
      %3561 = vmatpush1.msra.mxu0 %v3526
      %3562 = vmatprep.subr.mxu0 0.0
      %3563 = vmatpush1.msra.mxu0 %v3527
      %3564 = vmatprep.subr.mxu0 0.0
      %3565 = vmatpush1.msra.mxu0 %v3528
      %3566 = vmatprep.subr.mxu0 0.0
      %3567 = vmatpush1.msra.mxu0 %v3529
      %3568 = vmatprep.subr.mxu0 0.0
      %3569 = vmatpush1.msra.mxu0 %v3530
      %3570 = vmatprep.subr.mxu0 0.0
      %3571 = vmatpush1.msra.mxu0 %v3531
      %3572 = vmatprep.subr.mxu0 0.0
      %3573 = vmatpush1.msra.mxu0 %v3532
      %3574 = vmatprep.subr.mxu0 0.0
      %3575 = vmatpush1.msra.mxu0 %v3533
      %3576 = vmatprep.subr.mxu0 0.0
      %3577 = vmatpush1.msra.mxu0 %v3534
      %3578 = vmatprep.subr.mxu0 0.0
      %3579 = vmatpush1.msra.mxu0 %v3535
      %3580 = vmatprep.subr.mxu0 0.0
      %3581 = vmatpush1.msra.mxu0 %v3536
      %3582 = vmatprep.subr.mxu0 0.0
      %3583 = vmatpush1.msra.mxu0 %v3537
      %3584 = vmatprep.subr.mxu0 0.0
      %3585 = vmatpush1.msra.mxu0 %v3538
      %3586 = vmatprep.subr.mxu0 0.0
      %3587 = vmatpush1.msra.mxu0 %v3539
      %3588 = vmatprep.subr.mxu0 0.0
      %3589 = vmatpush1.msra.mxu0 %v3540
      %3590 = vmatprep.subr.mxu0 0.0
      %3591 = vmatpush1.msra.mxu0 %v3541
      %3592 = vmatprep.subr.mxu0 0.0
      %3593 = vmatpush1.msra.mxu0 %v3542
      %3594 = vmatprep.subr.mxu0 0.0
      %3595 = vmatpush1.msra.mxu0 %v3543
      %3596 = vmatprep.subr.mxu0 0.0
      %3597 = vmatpush1.msra.mxu0 %v3544
      %3598 = vmatprep.subr.mxu0 0.0
      %3599 = vmatpush1.msra.mxu0 %v3545
      %3600 = vmatprep.subr.mxu0 0.0
      %3601 = vmatpush1.msra.mxu0 %v3546
      %3602 = vmatprep.subr.mxu0 0.0
      %3603 = vmatpush1.msra.mxu0 %v3547
      %3604 = vmatprep.subr.mxu0 0.0
      %3605 = vmatpush1.msra.mxu0 %v3548
      %3606 = vmatprep.subr.mxu0 0.0
      %3607 = vmatpush1.msra.mxu0 %v3549
      %3608 = vmatprep.subr.mxu0 0.0
      %3609 = vmatpush1.msra.mxu0 %v3550
      %3610 = vmatprep.subr.mxu0 0.0
      %3611 = vmatpush1.msra.mxu0 %v3551
      %3612 = vmatprep.subr.mxu0 0.0
      %3613 = vmatpush1.msra.mxu0 %v3552
      %3614 = vmatprep.subr.mxu0 0.0
      %3615 = vmatpush1.msra.mxu0 %v3553
      %3616 = vmatprep.subr.mxu0 0.0
      %3617 = vmatpush1.msra.mxu0 %v3554
      %3618 = vmatprep.subr.mxu0 0.0
      %3619 = vmatpush1.msra.mxu0 %v3555
      %3620 = vmatprep.mubr.f32.mxu0 %v2312
      %3621 = vmatmul.mubr.f32.gmra.mrb[0].mxu0 %v2280
      %v3622 = vpop.f32.mrb[0].mxu0
      %v3623 = vadd.f32 0.0, %v3622
      %v3624 = vpop.f32.mrb[0].mxu0
      %3625 = vmatprep.mubr.f32.mxu0 %v2313
      %3626 = vmatmul.mubr.f32.gmra.mrb[0].mxu0 %v2281
      %v3627 = vpop.f32.mrb[0].mxu0
      %v3628 = vadd.f32 0.0, %v3627
      %v3629 = vpop.f32.mrb[0].mxu0
      %3630 = vdwg.mxu0
      %v3631 = vld [vmem:[%s5] sm:$0xff]
      %v3632 = vld [vmem:[%s5 + $0x8] sm:$0xff]
      %v3633 = vld [vmem:[%s5 + $0x10] sm:$0xff]
      %v3634 = vld [vmem:[%s5 + $0x18] sm:$0xff]
      %v3635 = vld [vmem:[%s5 + $0x20] sm:$0xff]
      %v3636 = vld [vmem:[%s5 + $0x28] sm:$0xff]
      %v3637 = vld [vmem:[%s5 + $0x30] sm:$0xff]
      %v3638 = vld [vmem:[%s5 + $0x38] sm:$0xff]
      %v3639 = vld [vmem:[%s5 + $0x40] sm:$0xff]
      %v3640 = vld [vmem:[%s5 + $0x48] sm:$0xff]
      %v3641 = vld [vmem:[%s5 + $0x50] sm:$0xff]
      %v3642 = vld [vmem:[%s5 + $0x58] sm:$0xff]
      %v3643 = vld [vmem:[%s5 + $0x60] sm:$0xff]
      %v3644 = vld [vmem:[%s5 + $0x68] sm:$0xff]
      %v3645 = vld [vmem:[%s5 + $0x70] sm:$0xff]
      %v3646 = vld [vmem:[%s5 + $0x78] sm:$0xff]
      %v3648 = vsel %vm1360, %v3623, 0
      %3650 = vmatprep.subr.mxu0 %v3632
      %3651 = vmatpush1.msra.mxu0 %v3631
      %3652 = vmatprep.subr.mxu0 %v3636
      %3653 = vmatpush1.msra.mxu0 %v3635
      %3654 = vmatprep.subr.mxu0 %v3640
      %3655 = vmatpush1.msra.mxu0 %v3639
      %3656 = vmatprep.subr.mxu0 %v3644
      %3657 = vmatpush1.msra.mxu0 %v3643
      %3658 = vmatprep.subr.mxu0 0.0
      %3659 = vmatpush1.msra.mxu0 0.0
      %3660 = vmatprep.subr.mxu0 0.0
      %3661 = vmatpush1.msra.mxu0 0.0
      %3662 = vmatprep.subr.mxu0 0.0
      %3663 = vmatpush1.msra.mxu0 0.0
      %3664 = vmatprep.subr.mxu0 0.0
      %3665 = vmatpush1.msra.mxu0 0.0
      %3666 = vmatprep.subr.mxu0 0.0
      %3667 = vmatpush1.msra.mxu0 0.0
      %3668 = vmatprep.subr.mxu0 0.0
      %3669 = vmatpush1.msra.mxu0 0.0
      %3670 = vmatprep.subr.mxu0 0.0
      %3671 = vmatpush1.msra.mxu0 0.0
      %3672 = vmatprep.subr.mxu0 0.0
      %3673 = vmatpush1.msra.mxu0 0.0
      %3674 = vmatprep.subr.mxu0 0.0
      %3675 = vmatpush1.msra.mxu0 0.0
      %3676 = vmatprep.subr.mxu0 0.0
      %3677 = vmatpush1.msra.mxu0 0.0
      %3678 = vmatprep.subr.mxu0 0.0
      %3679 = vmatpush1.msra.mxu0 0.0
      %3680 = vmatprep.subr.mxu0 0.0
      %3681 = vmatpush1.msra.mxu0 0.0
      %3682 = vmatprep.subr.mxu0 0.0
      %3683 = vmatpush1.msra.mxu0 0.0
      %3684 = vmatprep.subr.mxu0 0.0
      %3685 = vmatpush1.msra.mxu0 0.0
      %3686 = vmatprep.subr.mxu0 0.0
      %3687 = vmatpush1.msra.mxu0 0.0
      %3688 = vmatprep.subr.mxu0 0.0
      %3689 = vmatpush1.msra.mxu0 0.0
      %3690 = vmatprep.subr.mxu0 0.0
      %3691 = vmatpush1.msra.mxu0 0.0
      %3692 = vmatprep.subr.mxu0 0.0
      %3693 = vmatpush1.msra.mxu0 0.0
      %3694 = vmatprep.subr.mxu0 0.0
      %3695 = vmatpush1.msra.mxu0 0.0
      %3696 = vmatprep.subr.mxu0 0.0
      %3697 = vmatpush1.msra.mxu0 0.0
      %3698 = vmatprep.subr.mxu0 0.0
      %3699 = vmatpush1.msra.mxu0 0.0
      %3700 = vmatprep.subr.mxu0 0.0
      %3701 = vmatpush1.msra.mxu0 0.0
      %3702 = vmatprep.subr.mxu0 0.0
      %3703 = vmatpush1.msra.mxu0 0.0
      %3704 = vmatprep.subr.mxu0 0.0
      %3705 = vmatpush1.msra.mxu0 0.0
      %3706 = vmatprep.subr.mxu0 0.0
      %3707 = vmatpush1.msra.mxu0 0.0
      %3708 = vmatprep.subr.mxu0 0.0
      %3709 = vmatpush1.msra.mxu0 0.0
      %3710 = vmatprep.subr.mxu0 0.0
      %3711 = vmatpush1.msra.mxu0 0.0
      %3712 = vmatprep.subr.mxu0 0.0
      %3713 = vmatpush1.msra.mxu0 0.0
      %3714 = vmatprep.mubr.f32.mxu0 0.0
      %3715 = vmatmul.mubr.f32.gmra.mrb[0].mxu0 %v3648
      %v3716 = vpop.f32.mrb[0].mxu0
      %v3717 = vadd.f32 0.0, %v3716
      %v3718 = vpop.f32.mrb[0].mxu0
      %v3719 = vadd.f32 0.0, %v3718
      %3720 = vdwg.mxu0
      %3721 = vmatprep.subr.mxu0 %v3634
      %3722 = vmatpush1.msra.mxu0 %v3633
      %3723 = vmatprep.subr.mxu0 %v3638
      %3724 = vmatpush1.msra.mxu0 %v3637
      %3725 = vmatprep.subr.mxu0 %v3642
      %3726 = vmatpush1.msra.mxu0 %v3641
      %3727 = vmatprep.subr.mxu0 %v3646
      %3728 = vmatpush1.msra.mxu0 %v3645
      %3729 = vmatprep.subr.mxu0 0.0
      %3730 = vmatpush1.msra.mxu0 0.0
      %3731 = vmatprep.subr.mxu0 0.0
      %3732 = vmatpush1.msra.mxu0 0.0
      %3733 = vmatprep.subr.mxu0 0.0
      %3734 = vmatpush1.msra.mxu0 0.0
      %3735 = vmatprep.subr.mxu0 0.0
      %3736 = vmatpush1.msra.mxu0 0.0
      %3737 = vmatprep.subr.mxu0 0.0
      %3738 = vmatpush1.msra.mxu0 0.0
      %3739 = vmatprep.subr.mxu0 0.0
      %3740 = vmatpush1.msra.mxu0 0.0
      %3741 = vmatprep.subr.mxu0 0.0
      %3742 = vmatpush1.msra.mxu0 0.0
      %3743 = vmatprep.subr.mxu0 0.0
      %3744 = vmatpush1.msra.mxu0 0.0
      %3745 = vmatprep.subr.mxu0 0.0
      %3746 = vmatpush1.msra.mxu0 0.0
      %3747 = vmatprep.subr.mxu0 0.0
      %3748 = vmatpush1.msra.mxu0 0.0
      %3749 = vmatprep.subr.mxu0 0.0
      %3750 = vmatpush1.msra.mxu0 0.0
      %3751 = vmatprep.subr.mxu0 0.0
      %3752 = vmatpush1.msra.mxu0 0.0
      %3753 = vmatprep.subr.mxu0 0.0
      %3754 = vmatpush1.msra.mxu0 0.0
      %3755 = vmatprep.subr.mxu0 0.0
      %3756 = vmatpush1.msra.mxu0 0.0
      %3757 = vmatprep.subr.mxu0 0.0
      %3758 = vmatpush1.msra.mxu0 0.0
      %3759 = vmatprep.subr.mxu0 0.0
      %3760 = vmatpush1.msra.mxu0 0.0
      %3761 = vmatprep.subr.mxu0 0.0
      %3762 = vmatpush1.msra.mxu0 0.0
      %3763 = vmatprep.subr.mxu0 0.0
      %3764 = vmatpush1.msra.mxu0 0.0
      %3765 = vmatprep.subr.mxu0 0.0
      %3766 = vmatpush1.msra.mxu0 0.0
      %3767 = vmatprep.subr.mxu0 0.0
      %3768 = vmatpush1.msra.mxu0 0.0
      %3769 = vmatprep.subr.mxu0 0.0
      %3770 = vmatpush1.msra.mxu0 0.0
      %3771 = vmatprep.subr.mxu0 0.0
      %3772 = vmatpush1.msra.mxu0 0.0
      %3773 = vmatprep.subr.mxu0 0.0
      %3774 = vmatpush1.msra.mxu0 0.0
      %3775 = vmatprep.subr.mxu0 0.0
      %3776 = vmatpush1.msra.mxu0 0.0
      %3777 = vmatprep.subr.mxu0 0.0
      %3778 = vmatpush1.msra.mxu0 0.0
      %3779 = vmatprep.subr.mxu0 0.0
      %3780 = vmatpush1.msra.mxu0 0.0
      %3781 = vmatprep.subr.mxu0 0.0
      %3782 = vmatpush1.msra.mxu0 0.0
      %3783 = vmatprep.subr.mxu0 0.0
      %3784 = vmatpush1.msra.mxu0 0.0
      %3785 = vmatprep.mubr.f32.mxu0 0.0
      %3786 = vmatmul.mubr.f32.gmra.mrb[0].mxu0 %v3648
      %v3787 = vpop.f32.mrb[0].mxu0
      %v3788 = vadd.f32 0.0, %v3787
      %v3789 = vpop.f32.mrb[0].mxu0
      %v3790 = vadd.f32 0.0, %v3789
      %3791 = vdwg.mxu0
      %3793 = vrot.lane.b32.xlu0 %v3628, 32
      %v3794 = vpop.permute.xlu0 %3793
      %3796 = vrot.lane.b32.xlu0 %v3628, 64
      %v3797 = vpop.permute.xlu0 %3796
      %3799 = vrot.lane.b32.xlu0 %v3628, 96
      %v3800 = vpop.permute.xlu0 %3799
      %v3802 = vsel %vm1360, %v3628, %v3794
      %vm3803 = vcmask 523264
      %v3804 = vsel %vm3803, %v3802, %v3797
      %vm3805 = vcmask 785408
      %v3806 = vsel %vm3805, %v3804, %v3800
      %v3807 = vmul.f32 %v3717, %v3806
      %v3808 = vmul.f32 %v3719, %v3806
      %v3809 = vmul.f32 %v3788, %v3806
      %v3810 = vmul.f32 %v3790, %v3806
      %v3811 = vld [vmem:[%s6] sm:$0xff]
      %v3812 = vld [vmem:[%s6 + $0x8] sm:$0xff]
      %v3813 = vld [vmem:[%s6 + $0x10] sm:$0xff]
      %v3814 = vld [vmem:[%s6 + $0x18] sm:$0xff]
      %v3815 = vld [vmem:[%s6 + $0x20] sm:$0xff]
      %v3816 = vld [vmem:[%s6 + $0x28] sm:$0xff]
      %v3817 = vld [vmem:[%s6 + $0x30] sm:$0xff]
      %v3818 = vld [vmem:[%s6 + $0x38] sm:$0xff]
      %v3819 = vld [vmem:[%s6 + $0x40] sm:$0xff]
      %v3820 = vld [vmem:[%s6 + $0x48] sm:$0xff]
      %v3821 = vld [vmem:[%s6 + $0x50] sm:$0xff]
      %v3822 = vld [vmem:[%s6 + $0x58] sm:$0xff]
      %v3823 = vld [vmem:[%s6 + $0x60] sm:$0xff]
      %v3824 = vld [vmem:[%s6 + $0x68] sm:$0xff]
      %v3825 = vld [vmem:[%s6 + $0x70] sm:$0xff]
      %v3826 = vld [vmem:[%s6 + $0x78] sm:$0xff]
      %v3827 = vld [vmem:[%s6 + $0x80] sm:$0xff]
      %v3828 = vld [vmem:[%s6 + $0x88] sm:$0xff]
      %v3829 = vld [vmem:[%s6 + $0x90] sm:$0xff]
      %v3830 = vld [vmem:[%s6 + $0x98] sm:$0xff]
      %v3831 = vld [vmem:[%s6 + $0xa0] sm:$0xff]
      %v3832 = vld [vmem:[%s6 + $0xa8] sm:$0xff]
      %v3833 = vld [vmem:[%s6 + $0xb0] sm:$0xff]
      %v3834 = vld [vmem:[%s6 + $0xb8] sm:$0xff]
      %v3835 = vld [vmem:[%s6 + $0xc0] sm:$0xff]
      %v3836 = vld [vmem:[%s6 + $0xc8] sm:$0xff]
      %v3837 = vld [vmem:[%s6 + $0xd0] sm:$0xff]
      %v3838 = vld [vmem:[%s6 + $0xd8] sm:$0xff]
      %v3839 = vld [vmem:[%s6 + $0xe0] sm:$0xff]
      %v3840 = vld [vmem:[%s6 + $0xe8] sm:$0xff]
      %v3841 = vld [vmem:[%s6 + $0xf0] sm:$0xff]
      %v3842 = vld [vmem:[%s6 + $0xf8] sm:$0xff]
      %v3843 = vld [vmem:[%s6 + $0x100] sm:$0xff]
      %v3844 = vld [vmem:[%s6 + $0x108] sm:$0xff]
      %v3845 = vld [vmem:[%s6 + $0x110] sm:$0xff]
      %v3846 = vld [vmem:[%s6 + $0x118] sm:$0xff]
      %v3847 = vld [vmem:[%s6 + $0x120] sm:$0xff]
      %v3848 = vld [vmem:[%s6 + $0x128] sm:$0xff]
      %v3849 = vld [vmem:[%s6 + $0x130] sm:$0xff]
      %v3850 = vld [vmem:[%s6 + $0x138] sm:$0xff]
      %v3851 = vld [vmem:[%s6 + $0x140] sm:$0xff]
      %v3852 = vld [vmem:[%s6 + $0x148] sm:$0xff]
      %v3853 = vld [vmem:[%s6 + $0x150] sm:$0xff]
      %v3854 = vld [vmem:[%s6 + $0x158] sm:$0xff]
      %v3855 = vld [vmem:[%s6 + $0x160] sm:$0xff]
      %v3856 = vld [vmem:[%s6 + $0x168] sm:$0xff]
      %v3857 = vld [vmem:[%s6 + $0x170] sm:$0xff]
      %v3858 = vld [vmem:[%s6 + $0x178] sm:$0xff]
      %v3859 = vld [vmem:[%s6 + $0x180] sm:$0xff]
      %v3860 = vld [vmem:[%s6 + $0x188] sm:$0xff]
      %v3861 = vld [vmem:[%s6 + $0x190] sm:$0xff]
      %v3862 = vld [vmem:[%s6 + $0x198] sm:$0xff]
      %v3863 = vld [vmem:[%s6 + $0x1a0] sm:$0xff]
      %v3864 = vld [vmem:[%s6 + $0x1a8] sm:$0xff]
      %v3865 = vld [vmem:[%s6 + $0x1b0] sm:$0xff]
      %v3866 = vld [vmem:[%s6 + $0x1b8] sm:$0xff]
      %v3867 = vld [vmem:[%s6 + $0x1c0] sm:$0xff]
      %v3868 = vld [vmem:[%s6 + $0x1c8] sm:$0xff]
      %v3869 = vld [vmem:[%s6 + $0x1d0] sm:$0xff]
      %v3870 = vld [vmem:[%s6 + $0x1d8] sm:$0xff]
      %v3871 = vld [vmem:[%s6 + $0x1e0] sm:$0xff]
      %v3872 = vld [vmem:[%s6 + $0x1e8] sm:$0xff]
      %v3873 = vld [vmem:[%s6 + $0x1f0] sm:$0xff]
      %v3874 = vld [vmem:[%s6 + $0x1f8] sm:$0xff]
      %v3875 = vsel %vm1360, %v3628, 0
      %3877 = vmatprep.subr.mxu0 0.0
      %3878 = vmatpush1.msra.mxu0 %v410
      %3879 = vmatprep.subr.mxu0 0.0
      %3880 = vmatpush1.msra.mxu0 %v411
      %3881 = vmatprep.subr.mxu0 0.0
      %3882 = vmatpush1.msra.mxu0 %v412
      %3883 = vmatprep.subr.mxu0 0.0
      %3884 = vmatpush1.msra.mxu0 %v413
      %3885 = vmatprep.subr.mxu0 0.0
      %3886 = vmatpush1.msra.mxu0 0.0
      %3887 = vmatprep.subr.mxu0 0.0
      %3888 = vmatpush1.msra.mxu0 0.0
      %3889 = vmatprep.subr.mxu0 0.0
      %3890 = vmatpush1.msra.mxu0 0.0
      %3891 = vmatprep.subr.mxu0 0.0
      %3892 = vmatpush1.msra.mxu0 0.0
      %3893 = vmatprep.subr.mxu0 0.0
      %3894 = vmatpush1.msra.mxu0 0.0
      %3895 = vmatprep.subr.mxu0 0.0
      %3896 = vmatpush1.msra.mxu0 0.0
      %3897 = vmatprep.subr.mxu0 0.0
      %3898 = vmatpush1.msra.mxu0 0.0
      %3899 = vmatprep.subr.mxu0 0.0
      %3900 = vmatpush1.msra.mxu0 0.0
      %3901 = vmatprep.subr.mxu0 0.0
      %3902 = vmatpush1.msra.mxu0 0.0
      %3903 = vmatprep.subr.mxu0 0.0
      %3904 = vmatpush1.msra.mxu0 0.0
      %3905 = vmatprep.subr.mxu0 0.0
      %3906 = vmatpush1.msra.mxu0 0.0
      %3907 = vmatprep.subr.mxu0 0.0
      %3908 = vmatpush1.msra.mxu0 0.0
      %3909 = vmatprep.subr.mxu0 0.0
      %3910 = vmatpush1.msra.mxu0 0.0
      %3911 = vmatprep.subr.mxu0 0.0
      %3912 = vmatpush1.msra.mxu0 0.0
      %3913 = vmatprep.subr.mxu0 0.0
      %3914 = vmatpush1.msra.mxu0 0.0
      %3915 = vmatprep.subr.mxu0 0.0
      %3916 = vmatpush1.msra.mxu0 0.0
      %3917 = vmatprep.subr.mxu0 0.0
      %3918 = vmatpush1.msra.mxu0 0.0
      %3919 = vmatprep.subr.mxu0 0.0
      %3920 = vmatpush1.msra.mxu0 0.0
      %3921 = vmatprep.subr.mxu0 0.0
      %3922 = vmatpush1.msra.mxu0 0.0
      %3923 = vmatprep.subr.mxu0 0.0
      %3924 = vmatpush1.msra.mxu0 0.0
      %3925 = vmatprep.subr.mxu0 0.0
      %3926 = vmatpush1.msra.mxu0 0.0
      %3927 = vmatprep.subr.mxu0 0.0
      %3928 = vmatpush1.msra.mxu0 0.0
      %3929 = vmatprep.subr.mxu0 0.0
      %3930 = vmatpush1.msra.mxu0 0.0
      %3931 = vmatprep.subr.mxu0 0.0
      %3932 = vmatpush1.msra.mxu0 0.0
      %3933 = vmatprep.subr.mxu0 0.0
      %3934 = vmatpush1.msra.mxu0 0.0
      %3935 = vmatprep.subr.mxu0 0.0
      %3936 = vmatpush1.msra.mxu0 0.0
      %3937 = vmatprep.subr.mxu0 0.0
      %3938 = vmatpush1.msra.mxu0 0.0
      %3939 = vmatprep.subr.mxu0 0.0
      %3940 = vmatpush1.msra.mxu0 0.0
      %3941 = vmatprep.mubr.f32.mxu0 0.0
      %3942 = vmatmul.mubr.f32.gmra.mrb[0].mxu0 %v3875
      %v3943 = vpop.f32.mrb[0].mxu0
      %v3944 = vadd.f32 0.0, %v3943
      %v3945 = vpop.f32.mrb[0].mxu0
      %3946 = vdwg.mxu0
      %3947 = vmatprep.subr.mxu0 0.0
      %3948 = vmatpush1.msra.mxu0 %v406
      %3949 = vmatprep.subr.mxu0 0.0
      %3950 = vmatpush1.msra.mxu0 %v407
      %3951 = vmatprep.subr.mxu0 0.0
      %3952 = vmatpush1.msra.mxu0 %v408
      %3953 = vmatprep.subr.mxu0 0.0
      %3954 = vmatpush1.msra.mxu0 %v409
      %3955 = vmatprep.subr.mxu0 0.0
      %3956 = vmatpush1.msra.mxu0 0.0
      %3957 = vmatprep.subr.mxu0 0.0
      %3958 = vmatpush1.msra.mxu0 0.0
      %3959 = vmatprep.subr.mxu0 0.0
      %3960 = vmatpush1.msra.mxu0 0.0
      %3961 = vmatprep.subr.mxu0 0.0
      %3962 = vmatpush1.msra.mxu0 0.0
      %3963 = vmatprep.subr.mxu0 0.0
      %3964 = vmatpush1.msra.mxu0 0.0
      %3965 = vmatprep.subr.mxu0 0.0
      %3966 = vmatpush1.msra.mxu0 0.0
      %3967 = vmatprep.subr.mxu0 0.0
      %3968 = vmatpush1.msra.mxu0 0.0
      %3969 = vmatprep.subr.mxu0 0.0
      %3970 = vmatpush1.msra.mxu0 0.0
      %3971 = vmatprep.subr.mxu0 0.0
      %3972 = vmatpush1.msra.mxu0 0.0
      %3973 = vmatprep.subr.mxu0 0.0
      %3974 = vmatpush1.msra.mxu0 0.0
      %3975 = vmatprep.subr.mxu0 0.0
      %3976 = vmatpush1.msra.mxu0 0.0
      %3977 = vmatprep.subr.mxu0 0.0
      %3978 = vmatpush1.msra.mxu0 0.0
      %3979 = vmatprep.subr.mxu0 0.0
      %3980 = vmatpush1.msra.mxu0 0.0
      %3981 = vmatprep.subr.mxu0 0.0
      %3982 = vmatpush1.msra.mxu0 0.0
      %3983 = vmatprep.subr.mxu0 0.0
      %3984 = vmatpush1.msra.mxu0 0.0
      %3985 = vmatprep.subr.mxu0 0.0
      %3986 = vmatpush1.msra.mxu0 0.0
      %3987 = vmatprep.subr.mxu0 0.0
      %3988 = vmatpush1.msra.mxu0 0.0
      %3989 = vmatprep.subr.mxu0 0.0
      %3990 = vmatpush1.msra.mxu0 0.0
      %3991 = vmatprep.subr.mxu0 0.0
      %3992 = vmatpush1.msra.mxu0 0.0
      %3993 = vmatprep.subr.mxu0 0.0
      %3994 = vmatpush1.msra.mxu0 0.0
      %3995 = vmatprep.subr.mxu0 0.0
      %3996 = vmatpush1.msra.mxu0 0.0
      %3997 = vmatprep.subr.mxu0 0.0
      %3998 = vmatpush1.msra.mxu0 0.0
      %3999 = vmatprep.subr.mxu0 0.0
      %4000 = vmatpush1.msra.mxu0 0.0
      %4001 = vmatprep.subr.mxu0 0.0
      %4002 = vmatpush1.msra.mxu0 0.0
      %4003 = vmatprep.subr.mxu0 0.0
      %4004 = vmatpush1.msra.mxu0 0.0
      %4005 = vmatprep.subr.mxu0 0.0
      %4006 = vmatpush1.msra.mxu0 0.0
      %4007 = vmatprep.subr.mxu0 0.0
      %4008 = vmatpush1.msra.mxu0 0.0
      %4009 = vmatprep.subr.mxu0 0.0
      %4010 = vmatpush1.msra.mxu0 0.0
      %4011 = vmatprep.mubr.f32.mxu0 0.0
      %4012 = vmatmul.mubr.f32.gmra.mrb[0].mxu0 %v3648
      %v4013 = vpop.f32.mrb[0].mxu0
      %v4014 = vadd.f32 %v3944, %v4013
      %v4015 = vpop.f32.mrb[0].mxu0
      %4016 = vdwg.mxu0
      %4017 = vmatprep.subr.mxu0 0.0
      %4018 = vmatpush1.msra.mxu0 %v3811
      %4019 = vmatprep.subr.mxu0 0.0
      %4020 = vmatpush1.msra.mxu0 %v3812
      %4021 = vmatprep.subr.mxu0 0.0
      %4022 = vmatpush1.msra.mxu0 %v3813
      %4023 = vmatprep.subr.mxu0 0.0
      %4024 = vmatpush1.msra.mxu0 %v3814
      %4025 = vmatprep.subr.mxu0 0.0
      %4026 = vmatpush1.msra.mxu0 %v3815
      %4027 = vmatprep.subr.mxu0 0.0
      %4028 = vmatpush1.msra.mxu0 %v3816
      %4029 = vmatprep.subr.mxu0 0.0
      %4030 = vmatpush1.msra.mxu0 %v3817
      %4031 = vmatprep.subr.mxu0 0.0
      %4032 = vmatpush1.msra.mxu0 %v3818
      %4033 = vmatprep.subr.mxu0 0.0
      %4034 = vmatpush1.msra.mxu0 %v3819
      %4035 = vmatprep.subr.mxu0 0.0
      %4036 = vmatpush1.msra.mxu0 %v3820
      %4037 = vmatprep.subr.mxu0 0.0
      %4038 = vmatpush1.msra.mxu0 %v3821
      %4039 = vmatprep.subr.mxu0 0.0
      %4040 = vmatpush1.msra.mxu0 %v3822
      %4041 = vmatprep.subr.mxu0 0.0
      %4042 = vmatpush1.msra.mxu0 %v3823
      %4043 = vmatprep.subr.mxu0 0.0
      %4044 = vmatpush1.msra.mxu0 %v3824
      %4045 = vmatprep.subr.mxu0 0.0
      %4046 = vmatpush1.msra.mxu0 %v3825
      %4047 = vmatprep.subr.mxu0 0.0
      %4048 = vmatpush1.msra.mxu0 %v3826
      %4049 = vmatprep.subr.mxu0 0.0
      %4050 = vmatpush1.msra.mxu0 %v3827
      %4051 = vmatprep.subr.mxu0 0.0
      %4052 = vmatpush1.msra.mxu0 %v3828
      %4053 = vmatprep.subr.mxu0 0.0
      %4054 = vmatpush1.msra.mxu0 %v3829
      %4055 = vmatprep.subr.mxu0 0.0
      %4056 = vmatpush1.msra.mxu0 %v3830
      %4057 = vmatprep.subr.mxu0 0.0
      %4058 = vmatpush1.msra.mxu0 %v3831
      %4059 = vmatprep.subr.mxu0 0.0
      %4060 = vmatpush1.msra.mxu0 %v3832
      %4061 = vmatprep.subr.mxu0 0.0
      %4062 = vmatpush1.msra.mxu0 %v3833
      %4063 = vmatprep.subr.mxu0 0.0
      %4064 = vmatpush1.msra.mxu0 %v3834
      %4065 = vmatprep.subr.mxu0 0.0
      %4066 = vmatpush1.msra.mxu0 %v3835
      %4067 = vmatprep.subr.mxu0 0.0
      %4068 = vmatpush1.msra.mxu0 %v3836
      %4069 = vmatprep.subr.mxu0 0.0
      %4070 = vmatpush1.msra.mxu0 %v3837
      %4071 = vmatprep.subr.mxu0 0.0
      %4072 = vmatpush1.msra.mxu0 %v3838
      %4073 = vmatprep.subr.mxu0 0.0
      %4074 = vmatpush1.msra.mxu0 %v3839
      %4075 = vmatprep.subr.mxu0 0.0
      %4076 = vmatpush1.msra.mxu0 %v3840
      %4077 = vmatprep.subr.mxu0 0.0
      %4078 = vmatpush1.msra.mxu0 %v3841
      %4079 = vmatprep.subr.mxu0 0.0
      %4080 = vmatpush1.msra.mxu0 %v3842
      %4081 = vmatprep.mubr.f32.mxu0 %v3808
      %4082 = vmatmul.mubr.f32.gmra.mrb[0].mxu0 %v3807
      %v4083 = vpop.f32.mrb[0].mxu0
      %v4084 = vadd.f32 %v4014, %v4083
      %v4085 = vpop.f32.mrb[0].mxu0
      %4086 = vdwg.mxu0
      %4087 = vmatprep.subr.mxu0 0.0
      %4088 = vmatpush1.msra.mxu0 %v3843
      %4089 = vmatprep.subr.mxu0 0.0
      %4090 = vmatpush1.msra.mxu0 %v3844
      %4091 = vmatprep.subr.mxu0 0.0
      %4092 = vmatpush1.msra.mxu0 %v3845
      %4093 = vmatprep.subr.mxu0 0.0
      %4094 = vmatpush1.msra.mxu0 %v3846
      %4095 = vmatprep.subr.mxu0 0.0
      %4096 = vmatpush1.msra.mxu0 %v3847
      %4097 = vmatprep.subr.mxu0 0.0
      %4098 = vmatpush1.msra.mxu0 %v3848
      %4099 = vmatprep.subr.mxu0 0.0
      %4100 = vmatpush1.msra.mxu0 %v3849
      %4101 = vmatprep.subr.mxu0 0.0
      %4102 = vmatpush1.msra.mxu0 %v3850
      %4103 = vmatprep.subr.mxu0 0.0
      %4104 = vmatpush1.msra.mxu0 %v3851
      %4105 = vmatprep.subr.mxu0 0.0
      %4106 = vmatpush1.msra.mxu0 %v3852
      %4107 = vmatprep.subr.mxu0 0.0
      %4108 = vmatpush1.msra.mxu0 %v3853
      %4109 = vmatprep.subr.mxu0 0.0
      %4110 = vmatpush1.msra.mxu0 %v3854
      %4111 = vmatprep.subr.mxu0 0.0
      %4112 = vmatpush1.msra.mxu0 %v3855
      %4113 = vmatprep.subr.mxu0 0.0
      %4114 = vmatpush1.msra.mxu0 %v3856
      %4115 = vmatprep.subr.mxu0 0.0
      %4116 = vmatpush1.msra.mxu0 %v3857
      %4117 = vmatprep.subr.mxu0 0.0
      %4118 = vmatpush1.msra.mxu0 %v3858
      %4119 = vmatprep.subr.mxu0 0.0
      %4120 = vmatpush1.msra.mxu0 %v3859
      %4121 = vmatprep.subr.mxu0 0.0
      %4122 = vmatpush1.msra.mxu0 %v3860
      %4123 = vmatprep.subr.mxu0 0.0
      %4124 = vmatpush1.msra.mxu0 %v3861
      %4125 = vmatprep.subr.mxu0 0.0
      %4126 = vmatpush1.msra.mxu0 %v3862
      %4127 = vmatprep.subr.mxu0 0.0
      %4128 = vmatpush1.msra.mxu0 %v3863
      %4129 = vmatprep.subr.mxu0 0.0
      %4130 = vmatpush1.msra.mxu0 %v3864
      %4131 = vmatprep.subr.mxu0 0.0
      %4132 = vmatpush1.msra.mxu0 %v3865
      %4133 = vmatprep.subr.mxu0 0.0
      %4134 = vmatpush1.msra.mxu0 %v3866
      %4135 = vmatprep.subr.mxu0 0.0
      %4136 = vmatpush1.msra.mxu0 %v3867
      %4137 = vmatprep.subr.mxu0 0.0
      %4138 = vmatpush1.msra.mxu0 %v3868
      %4139 = vmatprep.subr.mxu0 0.0
      %4140 = vmatpush1.msra.mxu0 %v3869
      %4141 = vmatprep.subr.mxu0 0.0
      %4142 = vmatpush1.msra.mxu0 %v3870
      %4143 = vmatprep.subr.mxu0 0.0
      %4144 = vmatpush1.msra.mxu0 %v3871
      %4145 = vmatprep.subr.mxu0 0.0
      %4146 = vmatpush1.msra.mxu0 %v3872
      %4147 = vmatprep.subr.mxu0 0.0
      %4148 = vmatpush1.msra.mxu0 %v3873
      %4149 = vmatprep.subr.mxu0 0.0
      %4150 = vmatpush1.msra.mxu0 %v3874
      %4151 = vmatprep.mubr.f32.mxu0 %v3810
      %4152 = vmatmul.mubr.f32.gmra.mrb[0].mxu0 %v3809
      %v4153 = vpop.f32.mrb[0].mxu0
      %v4154 = vadd.f32 %v4084, %v4153
      %v4155 = vpop.f32.mrb[0].mxu0
      %4156 = vdwg.mxu0
      %v4157 = vlaneseq
      %v4158 = vshrl.u32 %v4157, 7
      %v4159 = vsub.s32 3, %v4158
      %v4160 = vrot.slane %v405, %v4159
      %v4161 = vadd.f32 %v4154, %v4160
      %v4162 = vmax.f32 %v4161, 0.0
      %v4163 = vlaneseq
      %v4164 = vshrl.u32 %v4163, 7
      %v4165 = vsub.s32 4, %v4164
      %v4166 = vrot.slane %v405, %v4165
      %v4168 = vsel %vm777, %v4162, 0
      %4170 = vmatprep.subr.mxu0 0.0
      %4171 = vmatpush1.msra.mxu0 %v414
      %4172 = vmatprep.subr.mxu0 0.0
      %4173 = vmatpush1.msra.mxu0 %v415
      %4174 = vmatprep.subr.mxu0 0.0
      %4175 = vmatpush1.msra.mxu0 0.0
      %4176 = vmatprep.subr.mxu0 0.0
      %4177 = vmatpush1.msra.mxu0 0.0
      %4178 = vmatprep.subr.mxu0 0.0
      %4179 = vmatpush1.msra.mxu0 0.0
      %4180 = vmatprep.subr.mxu0 0.0
      %4181 = vmatpush1.msra.mxu0 0.0
      %4182 = vmatprep.subr.mxu0 0.0
      %4183 = vmatpush1.msra.mxu0 0.0
      %4184 = vmatprep.subr.mxu0 0.0
      %4185 = vmatpush1.msra.mxu0 0.0
      %4186 = vmatprep.subr.mxu0 0.0
      %4187 = vmatpush1.msra.mxu0 0.0
      %4188 = vmatprep.subr.mxu0 0.0
      %4189 = vmatpush1.msra.mxu0 0.0
      %4190 = vmatprep.subr.mxu0 0.0
      %4191 = vmatpush1.msra.mxu0 0.0
      %4192 = vmatprep.subr.mxu0 0.0
      %4193 = vmatpush1.msra.mxu0 0.0
      %4194 = vmatprep.subr.mxu0 0.0
      %4195 = vmatpush1.msra.mxu0 0.0
      %4196 = vmatprep.subr.mxu0 0.0
      %4197 = vmatpush1.msra.mxu0 0.0
      %4198 = vmatprep.subr.mxu0 0.0
      %4199 = vmatpush1.msra.mxu0 0.0
      %4200 = vmatprep.subr.mxu0 0.0
      %4201 = vmatpush1.msra.mxu0 0.0
      %4202 = vmatprep.subr.mxu0 0.0
      %4203 = vmatpush1.msra.mxu0 0.0
      %4204 = vmatprep.subr.mxu0 0.0
      %4205 = vmatpush1.msra.mxu0 0.0
      %4206 = vmatprep.subr.mxu0 0.0
      %4207 = vmatpush1.msra.mxu0 0.0
      %4208 = vmatprep.subr.mxu0 0.0
      %4209 = vmatpush1.msra.mxu0 0.0
      %4210 = vmatprep.subr.mxu0 0.0
      %4211 = vmatpush1.msra.mxu0 0.0
      %4212 = vmatprep.subr.mxu0 0.0
      %4213 = vmatpush1.msra.mxu0 0.0
      %4214 = vmatprep.subr.mxu0 0.0
      %4215 = vmatpush1.msra.mxu0 0.0
      %4216 = vmatprep.subr.mxu0 0.0
      %4217 = vmatpush1.msra.mxu0 0.0
      %4218 = vmatprep.subr.mxu0 0.0
      %4219 = vmatpush1.msra.mxu0 0.0
      %4220 = vmatprep.subr.mxu0 0.0
      %4221 = vmatpush1.msra.mxu0 0.0
      %4222 = vmatprep.subr.mxu0 0.0
      %4223 = vmatpush1.msra.mxu0 0.0
      %4224 = vmatprep.subr.mxu0 0.0
      %4225 = vmatpush1.msra.mxu0 0.0
      %4226 = vmatprep.subr.mxu0 0.0
      %4227 = vmatpush1.msra.mxu0 0.0
      %4228 = vmatprep.subr.mxu0 0.0
      %4229 = vmatpush1.msra.mxu0 0.0
      %4230 = vmatprep.subr.mxu0 0.0
      %4231 = vmatpush1.msra.mxu0 0.0
      %4232 = vmatprep.subr.mxu0 0.0
      %4233 = vmatpush1.msra.mxu0 0.0
      %4234 = vmatprep.mubr.f32.mxu0 0.0
      %4235 = vmatmul.mubr.f32.gmra.mrb[0].mxu0 %v4168
      %v4236 = vpop.f32.mrb[0].mxu0
      %v4237 = vadd.f32 %v4166, %v4236
      %v4238 = vpop.f32.mrb[0].mxu0
      %4239 = vdwg.mxu0
      %v4240 = vtanh.pop %v4237
      %v4242 = vsel %vm777, %v4240, 0
      %4244 = vmatprep.subr.mxu0 0.0
      %4245 = vmatpush1.msra.mxu0 %v416
      %4246 = vmatprep.subr.mxu0 0.0
      %4247 = vmatpush1.msra.mxu0 %v417
      %4248 = vmatprep.subr.mxu0 0.0
      %4249 = vmatpush1.msra.mxu0 0.0
      %4250 = vmatprep.subr.mxu0 0.0
      %4251 = vmatpush1.msra.mxu0 0.0
      %4252 = vmatprep.subr.mxu0 0.0
      %4253 = vmatpush1.msra.mxu0 0.0
      %4254 = vmatprep.subr.mxu0 0.0
      %4255 = vmatpush1.msra.mxu0 0.0
      %4256 = vmatprep.subr.mxu0 0.0
      %4257 = vmatpush1.msra.mxu0 0.0
      %4258 = vmatprep.subr.mxu0 0.0
      %4259 = vmatpush1.msra.mxu0 0.0
      %4260 = vmatprep.subr.mxu0 0.0
      %4261 = vmatpush1.msra.mxu0 0.0
      %4262 = vmatprep.subr.mxu0 0.0
      %4263 = vmatpush1.msra.mxu0 0.0
      %4264 = vmatprep.subr.mxu0 0.0
      %4265 = vmatpush1.msra.mxu0 0.0
      %4266 = vmatprep.subr.mxu0 0.0
      %4267 = vmatpush1.msra.mxu0 0.0
      %4268 = vmatprep.subr.mxu0 0.0
      %4269 = vmatpush1.msra.mxu0 0.0
      %4270 = vmatprep.subr.mxu0 0.0
      %4271 = vmatpush1.msra.mxu0 0.0
      %4272 = vmatprep.subr.mxu0 0.0
      %4273 = vmatpush1.msra.mxu0 0.0
      %4274 = vmatprep.subr.mxu0 0.0
      %4275 = vmatpush1.msra.mxu0 0.0
      %4276 = vmatprep.subr.mxu0 0.0
      %4277 = vmatpush1.msra.mxu0 0.0
      %4278 = vmatprep.subr.mxu0 0.0
      %4279 = vmatpush1.msra.mxu0 0.0
      %4280 = vmatprep.subr.mxu0 0.0
      %4281 = vmatpush1.msra.mxu0 0.0
      %4282 = vmatprep.subr.mxu0 0.0
      %4283 = vmatpush1.msra.mxu0 0.0
      %4284 = vmatprep.subr.mxu0 0.0
      %4285 = vmatpush1.msra.mxu0 0.0
      %4286 = vmatprep.subr.mxu0 0.0
      %4287 = vmatpush1.msra.mxu0 0.0
      %4288 = vmatprep.subr.mxu0 0.0
      %4289 = vmatpush1.msra.mxu0 0.0
      %4290 = vmatprep.subr.mxu0 0.0
      %4291 = vmatpush1.msra.mxu0 0.0
      %4292 = vmatprep.subr.mxu0 0.0
      %4293 = vmatpush1.msra.mxu0 0.0
      %4294 = vmatprep.subr.mxu0 0.0
      %4295 = vmatpush1.msra.mxu0 0.0
      %4296 = vmatprep.subr.mxu0 0.0
      %4297 = vmatpush1.msra.mxu0 0.0
      %4298 = vmatprep.subr.mxu0 0.0
      %4299 = vmatpush1.msra.mxu0 0.0
      %4300 = vmatprep.subr.mxu0 0.0
      %4301 = vmatpush1.msra.mxu0 0.0
      %4302 = vmatprep.subr.mxu0 0.0
      %4303 = vmatpush1.msra.mxu0 0.0
      %4304 = vmatprep.subr.mxu0 0.0
      %4305 = vmatpush1.msra.mxu0 0.0
      %4306 = vmatprep.subr.mxu0 0.0
      %4307 = vmatpush1.msra.mxu0 0.0
      %4308 = vmatprep.mubr.f32.mxu0 0.0
      %4309 = vmatmul.mubr.f32.gmra.mrb[0].mxu0 %v4242
      %v4310 = vpop.f32.mrb[0].mxu0
      %v4311 = vadd.f32 0.0, %v4310
      %v4312 = vpop.f32.mrb[0].mxu0
      %4313 = vdwg.mxu0
      %v4314 = vlaneseq
      %v4315 = vshrl.u32 %v4314, 7
      %v4316 = vsub.s32 5, %v4315
      %v4317 = vrot.slane %v405, %v4316
      %v4318 = vadd.f32 %v4311, %v4317
      %v4319 = vxor.u32 %v4318, 2147483648
      %v4320 = vmul.f32 %v4319, 1.442695
      %v4321 = vpow.pop %v4320
      %v4322 = vadd.f32 %v4321, 1.0
      %v4323 = vrcp.pop %v4322
      %v4324 = vmul.f32 1.0, %v4323
      %4326 = vset.pattern.permute.xlu0 0
      %4327 = vperm.xlu0 %4326, %v4324
      %v4328 = vpop.permute.xlu0 %4327
      %4330 = vst [vmem:[%s390] sm:$0xff] %v4328
      %p4331 = scmp.lt.s32.totalorder %s20, 1
      %s4332 = scalar_select %p4331, %s20, 1
      %s4333 = smul.addr %s4332, 8
      %s4334 = scalar_lea.vmem %s9, %s4333
      // Predicated region
      $region57: #{simgnn_forward_batch.1} parent=55 // pred_check
        %p4335 = pneg %p247
      $region58: #{simgnn_forward_batch.1} parent=55 // pred_check_branch
        %4337 = sbr.rel (%p4335) target = $region60
      $region59: #{simgnn_forward_batch.1} parent=55 // pred_region
        _
      $region60: #{simgnn_forward_batch.1} parent=55 // pred_fallthru
        _
    $region56: #{simgnn_forward_batch.1} parent=5 // pred_fallthru
      _
    %p4338 = scmp.le.s32.totalorder 2, %s15
    // Predicated region
    $region61: #{simgnn_forward_batch.1} parent=5 // pred_check
      %p4339 = pneg %p4338
    $region62: #{simgnn_forward_batch.1} parent=5 // pred_check_branch
      %4341 = sbr.rel (%p4339) target = $region64
    $region63: #{simgnn_forward_batch.1} parent=5 // pred_region
      %s4342 = ssub.s32 %s15, 2
      // Predicated region
      $region65: #{simgnn_forward_batch.1} parent=63 // pred_check
        %p4343 = pneg %p253
      $region66: #{simgnn_forward_batch.1} parent=63 // pred_check_branch
        %4345 = sbr.rel (%p4343) target = $region68
      $region67: #{simgnn_forward_batch.1} parent=63 // pred_region
        %p4346 = scmp.lt.s32.totalorder %s21, 1
        %s4347 = scalar_select %p4346, %s21, 1
        %s4348 = smul.addr %s4347, 8
        %s4349 = scalar_lea.vmem %s9, %s4348
      $region68: #{simgnn_forward_batch.1} parent=63 // pred_fallthru
        _
    $region64: #{simgnn_forward_batch.1} parent=5 // pred_fallthru
      _
  $region6: #{simgnn_forward_batch.1} parent=0 // loop_footer
    %s19 = sadd.s32 1, %s15
  $region7: #{simgnn_forward_batch.1} parent=0 // loop_footer_branch
    %14 = sbr.rel target = $region3
  $region8: #{simgnn_forward_batch.1} parent=0 // loop_exit
    _

</llo_original>
